<compile_context>
chip_gen: v6e
topology: v6e:2x2x1
jax: 0.10.0
libtpu: 0.0.40
codegen_flags: <defaults>
</compile_context>

<pallas_src>
import functools

import jax
import jax.numpy as jnp
from jax.experimental import pallas as pl
from jax.experimental.pallas import tpu as pltpu

F32 = jnp.float32
BF16 = jnp.bfloat16
LN_EPS = 1e-12
NEG_INF = -1e30


def _pick_tile(dim, target):
    """Largest tile that divides `dim`, preferring `target`, else full dim."""
    if dim <= target:
        return dim
    return target if dim % target == 0 else dim


# ----------------------------- Pallas kernels -------------------------------

def _layernorm_kernel(x_ref, g_ref, b_ref, o_ref):
    x = x_ref[...].astype(F32)
    mu = jnp.mean(x, axis=-1, keepdims=True)
    var = jnp.mean(jnp.square(x - mu), axis=-1, keepdims=True)
    y = (x - mu) * jax.lax.rsqrt(var + LN_EPS)
    o_ref[...] = (y * g_ref[...] + b_ref[...]).astype(o_ref.dtype)


def layernorm_3d(x, g, b, *, ts_target=256):
    B, S, H = x.shape
    ts = _pick_tile(S, ts_target)
    return pl.pallas_call(
        _layernorm_kernel,
        out_shape=jax.ShapeDtypeStruct((B, S, H), F32),
        grid=(B, S // ts),
        in_specs=[
            pl.BlockSpec((None, ts, H), lambda bi, si: (bi, si, 0)),
            pl.BlockSpec((1, H), lambda bi, si: (0, 0)),
            pl.BlockSpec((1, H), lambda bi, si: (0, 0)),
        ],
        out_specs=pl.BlockSpec((None, ts, H), lambda bi, si: (bi, si, 0)),
        compiler_params=pltpu.CompilerParams(
            dimension_semantics=("parallel", "parallel")),
    )(x, g.reshape(1, H), b.reshape(1, H))


def _qkv_kernel(x_ref, w_ref, b_ref, o_ref):
    # x:(tq,H) f32, w:(H,dh) bf16, b:(1,dh) f32 -> o:(tq,dh) f32
    y = jnp.dot(x_ref[...].astype(BF16), w_ref[...],
                preferred_element_type=F32)
    o_ref[...] = (y + b_ref[...]).astype(o_ref.dtype)


def qkv_project(x, wqkv, bqkv, *, tq_target=256):
    """x:[B,S,H], wqkv:[3,nH,H,dh] (bf16), bqkv:[3,nH,1,dh] -> [3,B,nH,S,dh].

    The head split happens entirely through the BlockSpec index maps; no XLA
    reshape/transpose of activations is needed.
    """
    B, S, H = x.shape
    _, nH, _, dh = wqkv.shape
    tq = _pick_tile(S, tq_target)
    return pl.pallas_call(
        _qkv_kernel,
        out_shape=jax.ShapeDtypeStruct((3, B, nH, S, dh), F32),
        grid=(B, S // tq, 3, nH),          # x block constant over (p, h) -> fetched once
        in_specs=[
            pl.BlockSpec((None, tq, H), lambda bi, qi, p, h: (bi, qi, 0)),
            pl.BlockSpec((None, None, H, dh), lambda bi, qi, p, h: (p, h, 0, 0)),
            pl.BlockSpec((None, None, 1, dh), lambda bi, qi, p, h: (p, h, 0, 0)),
        ],
        out_specs=pl.BlockSpec((None, None, None, tq, dh),
                               lambda bi, qi, p, h: (p, bi, h, qi, 0)),
        compiler_params=pltpu.CompilerParams(
            dimension_semantics=("parallel", "parallel", "parallel", "parallel")),
    )(x, wqkv, bqkv)


def _flash_attn_kernel(q_ref, k_ref, v_ref, bias_ref, o_ref,
                       m_ref, l_ref, acc_ref, *, scale):
    ki = pl.program_id(3)

    @pl.when(ki == 0)
    def _():
        m_ref[...] = jnp.full_like(m_ref, NEG_INF)
        l_ref[...] = jnp.zeros_like(l_ref)
        acc_ref[...] = jnp.zeros_like(acc_ref)

    q = (q_ref[...] * scale).astype(BF16)            # [tq, dh]  (scale folded in)
    k = k_ref[...].astype(BF16)                      # [tkv, dh]
    v = v_ref[...].astype(BF16)                      # [tkv, dh]

    s = jax.lax.dot_general(q, k, (((1,), (1,)), ((), ())),
                            preferred_element_type=F32)      # [tq, tkv]
    s = s + bias_ref[...]                                     # [1, tkv] bcast (f32 mask)

    m_prev = m_ref[...]
    m_new = jnp.maximum(m_prev, jnp.max(s, axis=-1, keepdims=True))
    alpha = jnp.exp(m_prev - m_new)
    p = jnp.exp(s - m_new)
    l_ref[...] = alpha * l_ref[...] + jnp.sum(p, axis=-1, keepdims=True)
    acc_ref[...] = alpha * acc_ref[...] + jnp.dot(
        p.astype(BF16), v, preferred_element_type=F32)
    m_ref[...] = m_new

    @pl.when(ki == pl.num_programs(3) - 1)
    def _():
        inv_l = pl.reciprocal(l_ref[...], approx=True)
        o_ref[...] = (acc_ref[...] * inv_l).astype(o_ref.dtype)


def flash_attention(qkv, mask_bias, *, tq_target=256, tkv_target=512):
    """qkv:[3,B,nH,S,dh], mask_bias:[B,1,S] additive -> [B,nH,S,dh]."""
    _, B, nH, S, dh = qkv.shape
    tq = _pick_tile(S, tq_target)
    tkv = _pick_tile(S, tkv_target)
    scale = 1.0 / (dh ** 0.5)
    return pl.pallas_call(
        functools.partial(_flash_attn_kernel, scale=scale),
        out_shape=jax.ShapeDtypeStruct((B, nH, S, dh), F32),
        grid=(B, nH, S // tq, S // tkv),
        in_specs=[
            pl.BlockSpec((None, None, None, tq, dh),
                         lambda bi, h, qi, ki: (0, bi, h, qi, 0)),
            pl.BlockSpec((None, None, None, tkv, dh),
                         lambda bi, h, qi, ki: (1, bi, h, ki, 0)),
            pl.BlockSpec((None, None, None, tkv, dh),
                         lambda bi, h, qi, ki: (2, bi, h, ki, 0)),
            pl.BlockSpec((None, 1, tkv), lambda bi, h, qi, ki: (bi, 0, ki)),
        ],
        out_specs=pl.BlockSpec((None, None, tq, dh),
                               lambda bi, h, qi, ki: (bi, h, qi, 0)),
        scratch_shapes=[
            pltpu.VMEM((tq, 1), F32),     # running max
            pltpu.VMEM((tq, 1), F32),     # running sum
            pltpu.VMEM((tq, dh), F32),    # output accumulator
        ],
        compiler_params=pltpu.CompilerParams(
            dimension_semantics=("parallel", "parallel", "parallel", "arbitrary")),
    )(qkv, qkv, qkv, mask_bias)


def _matmul_res_ln_kernel(a_ref, w_ref, bias_ref, res_ref, g_ref, beta_ref,
                          o_ref, acc_ref):
    """acc += a @ w over the last grid axis; finalize with bias+residual+LN."""
    r = pl.program_id(2)

    @pl.when(r == 0)
    def _():
        acc_ref[...] = jnp.zeros_like(acc_ref)

    acc_ref[...] += jnp.dot(a_ref[...].astype(BF16), w_ref[...],
                            preferred_element_type=F32)

    @pl.when(r == pl.num_programs(2) - 1)
    def _():
        y = acc_ref[...] + bias_ref[...] + res_ref[...]
        mu = jnp.mean(y, axis=-1, keepdims=True)
        var = jnp.mean(jnp.square(y - mu), axis=-1, keepdims=True)
        yn = (y - mu) * jax.lax.rsqrt(var + LN_EPS)
        o_ref[...] = (yn * g_ref[...] + beta_ref[...]).astype(o_ref.dtype)


def attn_out_residual_ln(ctx, wo, bo, residual, g, beta, *, ts_target=256):
    """ctx:[B,nH,S,dh], wo:[nH,dh,H] bf16 -> LN(ctx @ Wo + bo + residual)."""
    B, nH, S, dh = ctx.shape
    H = wo.shape[-1]
    ts = _pick_tile(S, ts_target)
    return pl.pallas_call(
        _matmul_res_ln_kernel,
        out_shape=jax.ShapeDtypeStruct((B, S, H), F32),
        grid=(B, S // ts, nH),          # heads = reduction axis (merge-heads fused)
        in_specs=[
            pl.BlockSpec((None, None, ts, dh), lambda bi, si, h: (bi, h, si, 0)),
            pl.BlockSpec((None, dh, H), lambda bi, si, h: (h, 0, 0)),
            pl.BlockSpec((1, H), lambda bi, si, h: (0, 0)),
            pl.BlockSpec((None, ts, H), lambda bi, si, h: (bi, si, 0)),
            pl.BlockSpec((1, H), lambda bi, si, h: (0, 0)),
            pl.BlockSpec((1, H), lambda bi, si, h: (0, 0)),
        ],
        out_specs=pl.BlockSpec((None, ts, H), lambda bi, si, h: (bi, si, 0)),
        scratch_shapes=[pltpu.VMEM((ts, H), F32)],
        compiler_params=pltpu.CompilerParams(
            dimension_semantics=("parallel", "parallel", "arbitrary")),
    )(ctx, wo, bo.reshape(1, H), residual, g.reshape(1, H), beta.reshape(1, H))


def ffn2_residual_ln(ff, w2, b2, residual, g, beta, *, ts_target=256,
                     tk_target=256):
    """ff:[B,S,F], w2:[F,H] bf16 -> LN(ff @ w2 + b2 + residual)."""
    B, S, Fd = ff.shape
    H = w2.shape[-1]
    ts = _pick_tile(S, ts_target)
    tk = _pick_tile(Fd, tk_target)
    return pl.pallas_call(
        _matmul_res_ln_kernel,
        out_shape=jax.ShapeDtypeStruct((B, S, H), F32),
        grid=(B, S // ts, Fd // tk),
        in_specs=[
            pl.BlockSpec((None, ts, tk), lambda bi, si, ki: (bi, si, ki)),
            pl.BlockSpec((tk, H), lambda bi, si, ki: (ki, 0)),
            pl.BlockSpec((1, H), lambda bi, si, ki: (0, 0)),
            pl.BlockSpec((None, ts, H), lambda bi, si, ki: (bi, si, 0)),
            pl.BlockSpec((1, H), lambda bi, si, ki: (0, 0)),
            pl.BlockSpec((1, H), lambda bi, si, ki: (0, 0)),
        ],
        out_specs=pl.BlockSpec((None, ts, H), lambda bi, si, ki: (bi, si, 0)),
        scratch_shapes=[pltpu.VMEM((ts, H), F32)],
        compiler_params=pltpu.CompilerParams(
            dimension_semantics=("parallel", "parallel", "arbitrary")),
    )(ff, w2, b2.reshape(1, H), residual, g.reshape(1, H), beta.reshape(1, H))


def _linear_act_kernel(x_ref, w_ref, b_ref, o_ref, acc_ref, *, act):
    k = pl.program_id(3)

    @pl.when(k == 0)
    def _():
        acc_ref[...] = jnp.zeros_like(acc_ref)

    acc_ref[...] += jnp.dot(x_ref[...].astype(BF16), w_ref[...],
                            preferred_element_type=F32)

    @pl.when(k == pl.num_programs(3) - 1)
    def _():
        y = acc_ref[...] + b_ref[...]
        if act == "gelu":
            # TODO(synk): HF BERT uses the exact erf GELU; the tanh
            # approximation is used here for guaranteed Mosaic lowering.
            y = jax.nn.gelu(y, approximate=True)
        elif act == "tanh":
            y = jnp.tanh(y)
        o_ref[...] = y.astype(o_ref.dtype)


def linear3d(x, w, b, act="none", *, ts_target=256, tn_target=256,
             tk_target=256):
    """Tiled y = act(x @ w + b) with f32 VMEM accumulator; x:[B,S,K], w:[K,N]."""
    B, S, K = x.shape
    N = w.shape[-1]
    ts = _pick_tile(S, ts_target)
    tn = _pick_tile(N, tn_target)
    tk = _pick_tile(K, tk_target)
    return pl.pallas_call(
        functools.partial(_linear_act_kernel, act=act),
        out_shape=jax.ShapeDtypeStruct((B, S, N), F32),
        grid=(B, S // ts, N // tn, K // tk),
        in_specs=[
            pl.BlockSpec((None, ts, tk), lambda bi, si, ni, ki: (bi, si, ki)),
            pl.BlockSpec((tk, tn), lambda bi, si, ni, ki: (ki, ni)),
            pl.BlockSpec((1, tn), lambda bi, si, ni, ki: (0, ni)),
        ],
        out_specs=pl.BlockSpec((None, ts, tn),
                               lambda bi, si, ni, ki: (bi, si, ni)),
        scratch_shapes=[pltpu.VMEM((ts, tn), F32)],
        compiler_params=pltpu.CompilerParams(
            dimension_semantics=("parallel", "parallel", "parallel", "arbitrary")),
    )(x, w, b.reshape(1, N))


def _head_kernel(cls_ref, pw_ref, pb_ref, cw_ref, cb_ref, onehot_ref,
                 negpad_ref, logits_ref, loss_ref):
    # pooler: tanh(CLS @ Wp + bp)
    pooled = jnp.tanh(
        jnp.dot(cls_ref[...].astype(BF16), pw_ref[...],
                preferred_element_type=F32) + pb_ref[...])
    # classifier (lane-padded to Cp columns; padded weight/bias are zero)
    logits = jnp.dot(pooled.astype(BF16), cw_ref[...],
                     preferred_element_type=F32) + cb_ref[...]
    logits_ref[...] = logits
    # cross entropy over the real classes only (padded columns masked to -inf)
    z = logits + negpad_ref[...]
    m = jnp.max(z, axis=-1, keepdims=True)
    lse = jnp.log(jnp.sum(jnp.exp(z - m), axis=-1, keepdims=True)) + m
    nll = lse - jnp.sum(onehot_ref[...] * z, axis=-1, keepdims=True)   # [B,1]
    loss_ref[...] = jnp.broadcast_to(jnp.sum(nll) / nll.shape[0], (1, 1))


def classifier_head(cls_tok, pool_w, pool_b, cls_w, cls_b, onehot, negpad):
    B, H = cls_tok.shape
    Cp = cls_w.shape[-1]
    logits, loss = pl.pallas_call(
        _head_kernel,
        out_shape=(jax.ShapeDtypeStruct((B, Cp), F32),
                   jax.ShapeDtypeStruct((1, 1), F32)),
        in_specs=[
            pl.BlockSpec((B, H), lambda: (0, 0)),
            pl.BlockSpec((H, H), lambda: (0, 0)),
            pl.BlockSpec((1, H), lambda: (0, 0)),
            pl.BlockSpec((H, Cp), lambda: (0, 0)),
            pl.BlockSpec((1, Cp), lambda: (0, 0)),
            pl.BlockSpec((B, Cp), lambda: (0, 0)),
            pl.BlockSpec((1, Cp), lambda: (0, 0)),
        ],
        out_specs=(pl.BlockSpec((B, Cp), lambda: (0, 0)),
                   pl.BlockSpec((1, 1), lambda: (0, 0))),
    )(cls_tok, pool_w, pool_b.reshape(1, H), cls_w, cls_b.reshape(1, Cp),
      onehot, negpad)
    return logits, loss[0, 0]


# ------------------------------ model wiring --------------------------------

def init_params(cfg, key):
    H, Fd = cfg["hidden"], cfg["ffn"]
    V, P = cfg["vocab"], cfg["max_pos"]
    C, L = cfg["num_classes"], cfg["layers"]
    nH = cfg["heads"]
    dh = H // nH
    Cp = ((C + 127) // 128) * 128            # lane-dense classifier width
    keys = iter(jax.random.split(key, 16 + 16 * L))

    def w(shape, scale=0.02, dtype=BF16):
        return (scale * jax.random.normal(next(keys), shape)).astype(dtype)

    params = {
        "word_emb": w((V, H), dtype=F32),
        "pos_emb": w((P, H), dtype=F32),
        "type_emb": w((2, H), dtype=F32),
        "emb_ln_g": jnp.ones((H,), F32),
        "emb_ln_b": jnp.zeros((H,), F32),
        "layers": [],
        "pool_w": w((H, H)),
        "pool_b": jnp.zeros((H,), F32),
        "cls_w": jnp.zeros((H, Cp), BF16).at[:, :C].set(w((H, C))),
        "cls_b": jnp.zeros((Cp,), F32),
    }
    for _ in range(L):
        params["layers"].append({
            # fused QKV weight pre-split by head: [3(q|k|v), nH, H, dh]
            "wqkv": w((3, nH, H, dh)),
            "bqkv": jnp.zeros((3, nH, 1, dh), F32),
            # output projection grouped by head rows: [nH, dh, H]
            "wo": w((nH, dh, H)),
            "bo": jnp.zeros((H,), F32),
            "ln1_g": jnp.ones((H,), F32), "ln1_b": jnp.zeros((H,), F32),
            "w1": w((H, Fd)), "b1": jnp.zeros((Fd,), F32),
            "w2": w((Fd, H)), "b2": jnp.zeros((H,), F32),
            "ln2_g": jnp.ones((H,), F32), "ln2_b": jnp.zeros((H,), F32),
        })
    return params


def text_classification_forward(params, cfg, input_ids, input_masks, labels):
    B, S = input_ids.shape
    C = cfg["num_classes"]
    Cp = params["cls_w"].shape[-1]

    # --- BERT embeddings (gather + add is XLA glue; LayerNorm is Pallas)
    emb = (jnp.take(params["word_emb"], input_ids, axis=0)
           + params["pos_emb"][:S][None, :, :]
           + params["type_emb"][0][None, None, :])
    x = layernorm_3d(emb, params["emb_ln_g"], params["emb_ln_b"])   # [B,S,H]

    # additive attention-mask bias indexed by batch only: [B,1,S] (f32)
    mask_bias = ((1.0 - input_masks.astype(F32)) * -1e9).reshape(B, 1, S)

    # --- transformer encoder layers: 5 fused pallas_calls per layer
    for p in params["layers"]:
        qkv = qkv_project(x, p["wqkv"], p["bqkv"])                  # [3,B,nH,S,dh]
        ctx = flash_attention(qkv, mask_bias)                       # [B,nH,S,dh]
        x = attn_out_residual_ln(ctx, p["wo"], p["bo"], x,
                                 p["ln1_g"], p["ln1_b"])            # [B,S,H]
        ff = linear3d(x, p["w1"], p["b1"], act="gelu")              # [B,S,F]
        x = ffn2_residual_ln(ff, p["w2"], p["b2"], x,
                             p["ln2_g"], p["ln2_b"])                # [B,S,H]

    # --- pooler (tanh on CLS) + classifier + cross-entropy, one fused kernel
    cls_tok = x[:, 0, :]                                            # [B,H]
    onehot = jax.nn.one_hot(labels, Cp, dtype=F32)
    negpad = jnp.where(jnp.arange(Cp) < C, 0.0, NEG_INF).reshape(1, Cp).astype(F32)
    logits_p, loss = classifier_head(cls_tok, params["pool_w"], params["pool_b"],
                                     params["cls_w"], params["cls_b"],
                                     onehot, negpad)
    logits = logits_p[:, :C]                                        # drop lane padding

    return {"loss": loss, "logits": logits}


# ---------------------------------- main -------------------------------------

if __name__ == "__main__":
    cfg = dict(vocab=100, hidden=32, heads=2, layers=2, ffn=64,
               max_pos=16, num_classes=4, dropout=0.1)

    key = jax.random.PRNGKey(0)
    k_param, k_ids, k_lab = jax.random.split(key, 3)
    params = init_params(cfg, k_param)

    B, S = 2, 8
    input_ids = jax.random.randint(k_ids, (B, S), 0, cfg["vocab"], dtype=jnp.int32)
    input_masks = jnp.ones((B, S), jnp.int32)
    labels = jax.random.randint(k_lab, (B,), 0, cfg["num_classes"], dtype=jnp.int32)

    fwd = jax.jit(functools.partial(text_classification_forward, params, cfg))
    out = fwd(input_ids, input_masks, labels)
    jax.block_until_ready(out)

    assert out["logits"].shape == (B, cfg["num_classes"])
    assert out["loss"].shape == ()
    assert bool(jnp.isfinite(out["loss"]))
    print("KERNEL_OK")
</pallas_src>

<mosaic_0001>
module attributes {stable_mosaic.version = 11 : i64} {
  func.func @_layernorm_kernel(%arg0: i32, %arg1: i32, %arg2: memref<1x8x32xf32, #tpu.memory_space<vmem>>, %arg3: memref<1x32xf32, #tpu.memory_space<vmem>>, %arg4: memref<1x32xf32, #tpu.memory_space<vmem>>, %arg5: memref<1x8x32xf32, #tpu.memory_space<vmem>>) attributes {dimension_semantics = [#tpu.dimension_semantics<parallel>, #tpu.dimension_semantics<parallel>], iteration_bounds = array<i64: 2, 1>, scalar_prefetch = 0 : i64, scratch_operands = 0 : i64, tpu.core_type = #tpu.core_type<tc>, window_params = [{transform_indices = @transform_0, window_bounds = array<i64: 1, 8, 32>}, {pipeline_mode = #tpu.pipeline_mode<synchronous>, transform_indices = @transform_1, window_bounds = array<i64: 1, 32>}, {pipeline_mode = #tpu.pipeline_mode<synchronous>, transform_indices = @transform_2, window_bounds = array<i64: 1, 32>}, {transform_indices = @transform_3, window_bounds = array<i64: 1, 8, 32>}]} {
    %c0 = arith.constant 0 : index
    %c0_0 = arith.constant 0 : index
    %c0_1 = arith.constant 0 : index
    %0 = vector.load %arg2[%c0, %c0_0, %c0_1] : memref<1x8x32xf32, #tpu.memory_space<vmem>>, vector<1x8x32xf32>
    %1 = vector.shape_cast %0 : vector<1x8x32xf32> to vector<8x32xf32>
    %cst = arith.constant dense<0.000000e+00> : vector<8xf32>
    %2 = vector.multi_reduction <add>, %1, %cst [1] : vector<8x32xf32> to vector<8xf32>
    %3 = vector.shape_cast %2 : vector<8xf32> to vector<8x1xf32>
    %cst_2 = arith.constant 3.200000e+01 : f32
    %4 = vector.broadcast %cst_2 : f32 to vector<8x1xf32>
    %5 = arith.divf %3, %4 : vector<8x1xf32>
    %6 = vector.broadcast %5 : vector<8x1xf32> to vector<8x32xf32>
    %7 = arith.subf %1, %6 : vector<8x32xf32>
    %8 = arith.mulf %7, %7 : vector<8x32xf32>
    %cst_3 = arith.constant dense<0.000000e+00> : vector<8xf32>
    %9 = vector.multi_reduction <add>, %8, %cst_3 [1] : vector<8x32xf32> to vector<8xf32>
    %10 = vector.shape_cast %9 : vector<8xf32> to vector<8x1xf32>
    %cst_4 = arith.constant 3.200000e+01 : f32
    %11 = vector.broadcast %cst_4 : f32 to vector<8x1xf32>
    %12 = arith.divf %10, %11 : vector<8x1xf32>
    %13 = vector.broadcast %5 : vector<8x1xf32> to vector<8x32xf32>
    %14 = arith.subf %1, %13 : vector<8x32xf32>
    %cst_5 = arith.constant 9.99999996E-13 : f32
    %15 = vector.broadcast %cst_5 : f32 to vector<8x1xf32>
    %16 = arith.addf %12, %15 : vector<8x1xf32>
    %17 = math.rsqrt %16 : vector<8x1xf32>
    %18 = vector.broadcast %17 : vector<8x1xf32> to vector<8x32xf32>
    %19 = arith.mulf %14, %18 : vector<8x32xf32>
    %c0_6 = arith.constant 0 : index
    %c0_7 = arith.constant 0 : index
    %20 = vector.load %arg3[%c0_6, %c0_7] : memref<1x32xf32, #tpu.memory_space<vmem>>, vector<1x32xf32>
    %21 = vector.broadcast %20 : vector<1x32xf32> to vector<8x32xf32>
    %22 = arith.mulf %19, %21 : vector<8x32xf32>
    %c0_8 = arith.constant 0 : index
    %c0_9 = arith.constant 0 : index
    %23 = vector.load %arg4[%c0_8, %c0_9] : memref<1x32xf32, #tpu.memory_space<vmem>>, vector<1x32xf32>
    %24 = vector.broadcast %23 : vector<1x32xf32> to vector<8x32xf32>
    %25 = arith.addf %22, %24 : vector<8x32xf32>
    %c0_10 = arith.constant 0 : index
    %c0_11 = arith.constant 0 : index
    %c0_12 = arith.constant 0 : index
    %26 = vector.load %arg5[%c0_10, %c0_11, %c0_12] : memref<1x8x32xf32, #tpu.memory_space<vmem>>, vector<1x8x32xf32>
    %27 = vector.shape_cast %26 : vector<1x8x32xf32> to vector<8x32xf32>
    %28 = vector.shape_cast %25 : vector<8x32xf32> to vector<1x8x32xf32>
    tpu.vector_store %arg5[%c0_10, %c0_11, %c0_12], %28 {strides = array<i32>} : memref<1x8x32xf32, #tpu.memory_space<vmem>>, vector<1x8x32xf32>,
    return
  }
  func.func @transform_0(%arg0: i32, %arg1: i32) -> (i32, i32, i32) {
    %c0_i32 = arith.constant 0 : i32
    %c0_i32_0 = arith.constant 0 : i32
    return %arg0, %arg1, %c0_i32 : i32, i32, i32
  }
  func.func @transform_1(%arg0: i32, %arg1: i32) -> (i32, i32) {
    %c0_i32 = arith.constant 0 : i32
    %c0_i32_0 = arith.constant 0 : i32
    %c0_i32_1 = arith.constant 0 : i32
    return %c0_i32, %c0_i32_0 : i32, i32
  }
  func.func @transform_2(%arg0: i32, %arg1: i32) -> (i32, i32) {
    %c0_i32 = arith.constant 0 : i32
    %c0_i32_0 = arith.constant 0 : i32
    %c0_i32_1 = arith.constant 0 : i32
    return %c0_i32, %c0_i32_0 : i32, i32
  }
  func.func @transform_3(%arg0: i32, %arg1: i32) -> (i32, i32, i32) {
    %c0_i32 = arith.constant 0 : i32
    %c0_i32_0 = arith.constant 0 : i32
    return %arg0, %arg1, %c0_i32 : i32, i32, i32
  }
}

module attributes {stable_mosaic.version = 11 : i64} {
  func.func @_qkv_kernel(%arg0: i32, %arg1: i32, %arg2: i32, %arg3: i32, %arg4: memref<1x8x32xf32, #tpu.memory_space<vmem>>, %arg5: memref<1x1x32x16xbf16, #tpu.memory_space<vmem>>, %arg6: memref<1x1x1x16xf32, #tpu.memory_space<vmem>>, %arg7: memref<1x1x1x8x16xf32, #tpu.memory_space<vmem>>) attributes {dimension_semantics = [#tpu.dimension_semantics<parallel>, #tpu.dimension_semantics<parallel>, #tpu.dimension_semantics<parallel>, #tpu.dimension_semantics<parallel>], iteration_bounds = array<i64: 2, 1, 3, 2>, scalar_prefetch = 0 : i64, scratch_operands = 0 : i64, tpu.core_type = #tpu.core_type<tc>, window_params = [{transform_indices = @transform_0, window_bounds = array<i64: 1, 8, 32>}, {transform_indices = @transform_1, window_bounds = array<i64: 1, 1, 32, 16>}, {transform_indices = @transform_2, window_bounds = array<i64: 1, 1, 1, 16>}, {transform_indices = @transform_3, window_bounds = array<i64: 1, 1, 1, 8, 16>}]} {
    %c0 = arith.constant 0 : index
    %c0_0 = arith.constant 0 : index
    %c0_1 = arith.constant 0 : index
    %0 = vector.load %arg4[%c0, %c0_0, %c0_1] : memref<1x8x32xf32, #tpu.memory_space<vmem>>, vector<1x8x32xf32>
    %1 = vector.shape_cast %0 : vector<1x8x32xf32> to vector<8x32xf32>
    %2 = arith.truncf %1 : vector<8x32xf32> to vector<8x32xbf16>
    %c0_2 = arith.constant 0 : index
    %c0_3 = arith.constant 0 : index
    %c0_4 = arith.constant 0 : index
    %c0_5 = arith.constant 0 : index
    %3 = vector.load %arg5[%c0_2, %c0_3, %c0_4, %c0_5] : memref<1x1x32x16xbf16, #tpu.memory_space<vmem>>, vector<1x1x32x16xbf16>
    %4 = vector.shape_cast %3 : vector<1x1x32x16xbf16> to vector<32x16xbf16>
    %cst = arith.constant dense<0.000000e+00> : vector<8x16xf32>
    %5 = tpu.matmul %2, %4, %cst {dimension_numbers = #tpu.dot_dimension_numbers<[1], [0], [0], [1], [0, 0, 1, 1], [], []>} : vector<8x32xbf16>, vector<32x16xbf16>, vector<8x16xf32> -> vector<8x16xf32>
    %c0_6 = arith.constant 0 : index
    %c0_7 = arith.constant 0 : index
    %c0_8 = arith.constant 0 : index
    %c0_9 = arith.constant 0 : index
    %6 = vector.load %arg6[%c0_6, %c0_7, %c0_8, %c0_9] : memref<1x1x1x16xf32, #tpu.memory_space<vmem>>, vector<1x1x1x16xf32>
    %7 = vector.shape_cast %6 : vector<1x1x1x16xf32> to vector<1x16xf32>
    %8 = vector.broadcast %7 : vector<1x16xf32> to vector<8x16xf32>
    %9 = arith.addf %5, %8 : vector<8x16xf32>
    %c0_10 = arith.constant 0 : index
    %c0_11 = arith.constant 0 : index
    %c0_12 = arith.constant 0 : index
    %c0_13 = arith.constant 0 : index
    %c0_14 = arith.constant 0 : index
    %10 = vector.load %arg7[%c0_10, %c0_11, %c0_12, %c0_13, %c0_14] : memref<1x1x1x8x16xf32, #tpu.memory_space<vmem>>, vector<1x1x1x8x16xf32>
    %11 = vector.shape_cast %10 : vector<1x1x1x8x16xf32> to vector<8x16xf32>
    %12 = vector.shape_cast %9 : vector<8x16xf32> to vector<1x1x1x8x16xf32>
    tpu.vector_store %arg7[%c0_10, %c0_11, %c0_12, %c0_13, %c0_14], %12 {strides = array<i32>} : memref<1x1x1x8x16xf32, #tpu.memory_space<vmem>>, vector<1x1x1x8x16xf32>,
    return
  }
  func.func @transform_0(%arg0: i32, %arg1: i32, %arg2: i32, %arg3: i32) -> (i32, i32, i32) {
    %c0_i32 = arith.constant 0 : i32
    %c0_i32_0 = arith.constant 0 : i32
    return %arg0, %arg1, %c0_i32 : i32, i32, i32
  }
  func.func @transform_1(%arg0: i32, %arg1: i32, %arg2: i32, %arg3: i32) -> (i32, i32, i32, i32) {
    %c0_i32 = arith.constant 0 : i32
    %c0_i32_0 = arith.constant 0 : i32
    %c0_i32_1 = arith.constant 0 : i32
    return %arg2, %arg3, %c0_i32, %c0_i32_0 : i32, i32, i32, i32
  }
  func.func @transform_2(%arg0: i32, %arg1: i32, %arg2: i32, %arg3: i32) -> (i32, i32, i32, i32) {
    %c0_i32 = arith.constant 0 : i32
    %c0_i32_0 = arith.constant 0 : i32
    %c0_i32_1 = arith.constant 0 : i32
    return %arg2, %arg3, %c0_i32, %c0_i32_0 : i32, i32, i32, i32
  }
  func.func @transform_3(%arg0: i32, %arg1: i32, %arg2: i32, %arg3: i32) -> (i32, i32, i32, i32, i32) {
    %c0_i32 = arith.constant 0 : i32
    %c0_i32_0 = arith.constant 0 : i32
    return %arg2, %arg0, %arg3, %arg1, %c0_i32 : i32, i32, i32, i32, i32
  }
}

module attributes {stable_mosaic.version = 11 : i64} {
  func.func @_matmul_res_ln_kernel(%arg0: i32, %arg1: i32, %arg2: i32, %arg3: memref<1x1x8x16xf32, #tpu.memory_space<vmem>>, %arg4: memref<1x16x32xbf16, #tpu.memory_space<vmem>>, %arg5: memref<1x32xf32, #tpu.memory_space<vmem>>, %arg6: memref<1x8x32xf32, #tpu.memory_space<vmem>>, %arg7: memref<1x32xf32, #tpu.memory_space<vmem>>, %arg8: memref<1x32xf32, #tpu.memory_space<vmem>>, %arg9: memref<1x8x32xf32, #tpu.memory_space<vmem>>, %arg10: memref<8x32xf32, #tpu.memory_space<vmem>>) attributes {dimension_semantics = [#tpu.dimension_semantics<parallel>, #tpu.dimension_semantics<parallel>, #tpu.dimension_semantics<arbitrary>], iteration_bounds = array<i64: 2, 1, 2>, scalar_prefetch = 0 : i64, scratch_operands = 1 : i64, tpu.core_type = #tpu.core_type<tc>, window_params = [{transform_indices = @transform_0, window_bounds = array<i64: 1, 1, 8, 16>}, {transform_indices = @transform_1, window_bounds = array<i64: 1, 16, 32>}, {pipeline_mode = #tpu.pipeline_mode<synchronous>, transform_indices = @transform_2, window_bounds = array<i64: 1, 32>}, {transform_indices = @transform_3, window_bounds = array<i64: 1, 8, 32>}, {pipeline_mode = #tpu.pipeline_mode<synchronous>, transform_indices = @transform_4, window_bounds = array<i64: 1, 32>}, {pipeline_mode = #tpu.pipeline_mode<synchronous>, transform_indices = @transform_5, window_bounds = array<i64: 1, 32>}, {transform_indices = @transform_6, window_bounds = array<i64: 1, 8, 32>}]} {
    %c0_i32 = arith.constant 0 : i32
    %0 = arith.cmpi eq, %arg2, %c0_i32 : i32
    %1 = arith.extui %0 : i1 to i32
    %c0_i32_0 = arith.constant 0 : i32
    %2 = arith.cmpi ne, %1, %c0_i32_0 : i32
    scf.if %2 {
      %cst_12 = arith.constant 0.000000e+00 : f32
      %15 = vector.broadcast %cst_12 : f32 to vector<8x32xf32>
      %c0_13 = arith.constant 0 : index
      %c0_14 = arith.constant 0 : index
      %16 = vector.load %arg10[%c0_13, %c0_14] : memref<8x32xf32, #tpu.memory_space<vmem>>, vector<8x32xf32>
      tpu.vector_store %arg10[%c0_13, %c0_14], %15 {strides = array<i32>} : memref<8x32xf32, #tpu.memory_space<vmem>>, vector<8x32xf32>,
    } else {
    }
    %c0 = arith.constant 0 : index
    %c0_1 = arith.constant 0 : index
    %3 = vector.load %arg10[%c0, %c0_1] : memref<8x32xf32, #tpu.memory_space<vmem>>, vector<8x32xf32>
    %c0_2 = arith.constant 0 : index
    %c0_3 = arith.constant 0 : index
    %c0_4 = arith.constant 0 : index
    %c0_5 = arith.constant 0 : index
    %4 = vector.load %arg3[%c0_2, %c0_3, %c0_4, %c0_5] : memref<1x1x8x16xf32, #tpu.memory_space<vmem>>, vector<1x1x8x16xf32>
    %5 = vector.shape_cast %4 : vector<1x1x8x16xf32> to vector<8x16xf32>
    %6 = arith.truncf %5 : vector<8x16xf32> to vector<8x16xbf16>
    %c0_6 = arith.constant 0 : index
    %c0_7 = arith.constant 0 : index
    %c0_8 = arith.constant 0 : index
    %7 = vector.load %arg4[%c0_6, %c0_7, %c0_8] : memref<1x16x32xbf16, #tpu.memory_space<vmem>>, vector<1x16x32xbf16>
    %8 = vector.shape_cast %7 : vector<1x16x32xbf16> to vector<16x32xbf16>
    %cst = arith.constant dense<0.000000e+00> : vector<8x32xf32>
    %9 = tpu.matmul %6, %8, %cst {dimension_numbers = #tpu.dot_dimension_numbers<[1], [0], [0], [1], [0, 0, 1, 1], [], []>} : vector<8x16xbf16>, vector<16x32xbf16>, vector<8x32xf32> -> vector<8x32xf32>
    %10 = arith.addf %3, %9 : vector<8x32xf32>
    %c0_9 = arith.constant 0 : index
    %c0_10 = arith.constant 0 : index
    %11 = vector.load %arg10[%c0_9, %c0_10] : memref<8x32xf32, #tpu.memory_space<vmem>>, vector<8x32xf32>
    tpu.vector_store %arg10[%c0_9, %c0_10], %10 {strides = array<i32>} : memref<8x32xf32, #tpu.memory_space<vmem>>, vector<8x32xf32>,
    %c1_i32 = arith.constant 1 : i32
    %12 = arith.cmpi eq, %arg2, %c1_i32 : i32
    %13 = arith.extui %12 : i1 to i32
    %c0_i32_11 = arith.constant 0 : i32
    %14 = arith.cmpi ne, %13, %c0_i32_11 : i32
    scf.if %14 {
      %c0_12 = arith.constant 0 : index
      %c0_13 = arith.constant 0 : index
      %15 = vector.load %arg10[%c0_12, %c0_13] : memref<8x32xf32, #tpu.memory_space<vmem>>, vector<8x32xf32>
      %c0_14 = arith.constant 0 : index
      %c0_15 = arith.constant 0 : index
      %16 = vector.load %arg5[%c0_14, %c0_15] : memref<1x32xf32, #tpu.memory_space<vmem>>, vector<1x32xf32>
      %17 = vector.broadcast %16 : vector<1x32xf32> to vector<8x32xf32>
      %18 = arith.addf %15, %17 : vector<8x32xf32>
      %c0_16 = arith.constant 0 : index
      %c0_17 = arith.constant 0 : index
      %c0_18 = arith.constant 0 : index
      %19 = vector.load %arg6[%c0_16, %c0_17, %c0_18] : memref<1x8x32xf32, #tpu.memory_space<vmem>>, vector<1x8x32xf32>
      %20 = vector.shape_cast %19 : vector<1x8x32xf32> to vector<8x32xf32>
      %21 = arith.addf %18, %20 : vector<8x32xf32>
      %cst_19 = arith.constant dense<0.000000e+00> : vector<8xf32>
      %22 = vector.multi_reduction <add>, %21, %cst_19 [1] : vector<8x32xf32> to vector<8xf32>
      %23 = vector.shape_cast %22 : vector<8xf32> to vector<8x1xf32>
      %cst_20 = arith.constant 3.200000e+01 : f32
      %24 = vector.broadcast %cst_20 : f32 to vector<8x1xf32>
      %25 = arith.divf %23, %24 : vector<8x1xf32>
      %26 = vector.broadcast %25 : vector<8x1xf32> to vector<8x32xf32>
      %27 = arith.subf %21, %26 : vector<8x32xf32>
      %28 = arith.mulf %27, %27 : vector<8x32xf32>
      %cst_21 = arith.constant dense<0.000000e+00> : vector<8xf32>
      %29 = vector.multi_reduction <add>, %28, %cst_21 [1] : vector<8x32xf32> to vector<8xf32>
      %30 = vector.shape_cast %29 : vector<8xf32> to vector<8x1xf32>
      %cst_22 = arith.constant 3.200000e+01 : f32
      %31 = vector.broadcast %cst_22 : f32 to vector<8x1xf32>
      %32 = arith.divf %30, %31 : vector<8x1xf32>
      %33 = vector.broadcast %25 : vector<8x1xf32> to vector<8x32xf32>
      %34 = arith.subf %21, %33 : vector<8x32xf32>
      %cst_23 = arith.constant 9.99999996E-13 : f32
      %35 = vector.broadcast %cst_23 : f32 to vector<8x1xf32>
      %36 = arith.addf %32, %35 : vector<8x1xf32>
      %37 = math.rsqrt %36 : vector<8x1xf32>
      %38 = vector.broadcast %37 : vector<8x1xf32> to vector<8x32xf32>
      %39 = arith.mulf %34, %38 : vector<8x32xf32>
      %c0_24 = arith.constant 0 : index
      %c0_25 = arith.constant 0 : index
      %40 = vector.load %arg7[%c0_24, %c0_25] : memref<1x32xf32, #tpu.memory_space<vmem>>, vector<1x32xf32>
      %41 = vector.broadcast %40 : vector<1x32xf32> to vector<8x32xf32>
      %42 = arith.mulf %39, %41 : vector<8x32xf32>
      %c0_26 = arith.constant 0 : index
      %c0_27 = arith.constant 0 : index
      %43 = vector.load %arg8[%c0_26, %c0_27] : memref<1x32xf32, #tpu.memory_space<vmem>>, vector<1x32xf32>
      %44 = vector.broadcast %43 : vector<1x32xf32> to vector<8x32xf32>
      %45 = arith.addf %42, %44 : vector<8x32xf32>
      %c0_28 = arith.constant 0 : index
      %c0_29 = arith.constant 0 : index
      %c0_30 = arith.constant 0 : index
      %46 = vector.load %arg9[%c0_28, %c0_29, %c0_30] : memref<1x8x32xf32, #tpu.memory_space<vmem>>, vector<1x8x32xf32>
      %47 = vector.shape_cast %46 : vector<1x8x32xf32> to vector<8x32xf32>
      %48 = vector.shape_cast %45 : vector<8x32xf32> to vector<1x8x32xf32>
      tpu.vector_store %arg9[%c0_28, %c0_29, %c0_30], %48 {strides = array<i32>} : memref<1x8x32xf32, #tpu.memory_space<vmem>>, vector<1x8x32xf32>,
    } else {
    }
    return
  }
  func.func @transform_0(%arg0: i32, %arg1: i32, %arg2: i32) -> (i32, i32, i32, i32) {
    %c0_i32 = arith.constant 0 : i32
    %c0_i32_0 = arith.constant 0 : i32
    return %arg0, %arg2, %arg1, %c0_i32 : i32, i32, i32, i32
  }
  func.func @transform_1(%arg0: i32, %arg1: i32, %arg2: i32) -> (i32, i32, i32) {
    %c0_i32 = arith.constant 0 : i32
    %c0_i32_0 = arith.constant 0 : i32
    %c0_i32_1 = arith.constant 0 : i32
    return %arg2, %c0_i32, %c0_i32_0 : i32, i32, i32
  }
  func.func @transform_2(%arg0: i32, %arg1: i32, %arg2: i32) -> (i32, i32) {
    %c0_i32 = arith.constant 0 : i32
    %c0_i32_0 = arith.constant 0 : i32
    %c0_i32_1 = arith.constant 0 : i32
    return %c0_i32, %c0_i32_0 : i32, i32
  }
  func.func @transform_3(%arg0: i32, %arg1: i32, %arg2: i32) -> (i32, i32, i32) {
    %c0_i32 = arith.constant 0 : i32
    %c0_i32_0 = arith.constant 0 : i32
    return %arg0, %arg1, %c0_i32 : i32, i32, i32
  }
  func.func @transform_4(%arg0: i32, %arg1: i32, %arg2: i32) -> (i32, i32) {
    %c0_i32 = arith.constant 0 : i32
    %c0_i32_0 = arith.constant 0 : i32
    %c0_i32_1 = arith.constant 0 : i32
    return %c0_i32, %c0_i32_0 : i32, i32
  }
  func.func @transform_5(%arg0: i32, %arg1: i32, %arg2: i32) -> (i32, i32) {
    %c0_i32 = arith.constant 0 : i32
    %c0_i32_0 = arith.constant 0 : i32
    %c0_i32_1 = arith.constant 0 : i32
    return %c0_i32, %c0_i32_0 : i32, i32
  }
  func.func @transform_6(%arg0: i32, %arg1: i32, %arg2: i32) -> (i32, i32, i32) {
    %c0_i32 = arith.constant 0 : i32
    %c0_i32_0 = arith.constant 0 : i32
    return %arg0, %arg1, %c0_i32 : i32, i32, i32
  }
}

module attributes {stable_mosaic.version = 11 : i64} {
  func.func @_flash_attn_kernel(%arg0: i32, %arg1: i32, %arg2: i32, %arg3: i32, %arg4: memref<1x1x1x8x16xf32, #tpu.memory_space<vmem>>, %arg5: memref<1x1x1x8x16xf32, #tpu.memory_space<vmem>>, %arg6: memref<1x1x1x8x16xf32, #tpu.memory_space<vmem>>, %arg7: memref<1x1x8xf32, #tpu.memory_space<vmem>>, %arg8: memref<1x1x8x16xf32, #tpu.memory_space<vmem>>, %arg9: memref<8x1xf32, #tpu.memory_space<vmem>>, %arg10: memref<8x1xf32, #tpu.memory_space<vmem>>, %arg11: memref<8x16xf32, #tpu.memory_space<vmem>>) attributes {dimension_semantics = [#tpu.dimension_semantics<parallel>, #tpu.dimension_semantics<parallel>, #tpu.dimension_semantics<parallel>, #tpu.dimension_semantics<arbitrary>], iteration_bounds = array<i64: 2, 2, 1, 1>, scalar_prefetch = 0 : i64, scratch_operands = 3 : i64, tpu.core_type = #tpu.core_type<tc>, window_params = [{transform_indices = @transform_0, window_bounds = array<i64: 1, 1, 1, 8, 16>}, {transform_indices = @transform_1, window_bounds = array<i64: 1, 1, 1, 8, 16>}, {transform_indices = @transform_2, window_bounds = array<i64: 1, 1, 1, 8, 16>}, {transform_indices = @transform_3, window_bounds = array<i64: 1, 1, 8>}, {transform_indices = @transform_4, window_bounds = array<i64: 1, 1, 8, 16>}]} {
    %c0_i32 = arith.constant 0 : i32
    %0 = arith.cmpi eq, %arg3, %c0_i32 : i32
    %1 = arith.extui %0 : i1 to i32
    %c0_i32_0 = arith.constant 0 : i32
    %2 = arith.cmpi ne, %1, %c0_i32_0 : i32
    scf.if %2 {
      %cst_36 = arith.constant -1.000000e+30 : f32
      %45 = vector.broadcast %cst_36 : f32 to vector<8x1xf32>
      %c0_37 = arith.constant 0 : index
      %c0_38 = arith.constant 0 : index
      %46 = vector.load %arg9[%c0_37, %c0_38] : memref<8x1xf32, #tpu.memory_space<vmem>>, vector<8x1xf32>
      tpu.vector_store %arg9[%c0_37, %c0_38], %45 {strides = array<i32>} : memref<8x1xf32, #tpu.memory_space<vmem>>, vector<8x1xf32>,
      %cst_39 = arith.constant 0.000000e+00 : f32
      %47 = vector.broadcast %cst_39 : f32 to vector<8x1xf32>
      %c0_40 = arith.constant 0 : index
      %c0_41 = arith.constant 0 : index
      %48 = vector.load %arg10[%c0_40, %c0_41] : memref<8x1xf32, #tpu.memory_space<vmem>>, vector<8x1xf32>
      tpu.vector_store %arg10[%c0_40, %c0_41], %47 {strides = array<i32>} : memref<8x1xf32, #tpu.memory_space<vmem>>, vector<8x1xf32>,
      %cst_42 = arith.constant 0.000000e+00 : f32
      %49 = vector.broadcast %cst_42 : f32 to vector<8x16xf32>
      %c0_43 = arith.constant 0 : index
      %c0_44 = arith.constant 0 : index
      %50 = vector.load %arg11[%c0_43, %c0_44] : memref<8x16xf32, #tpu.memory_space<vmem>>, vector<8x16xf32>
      tpu.vector_store %arg11[%c0_43, %c0_44], %49 {strides = array<i32>} : memref<8x16xf32, #tpu.memory_space<vmem>>, vector<8x16xf32>,
    } else {
    }
    %c0 = arith.constant 0 : index
    %c0_1 = arith.constant 0 : index
    %c0_2 = arith.constant 0 : index
    %c0_3 = arith.constant 0 : index
    %c0_4 = arith.constant 0 : index
    %3 = vector.load %arg4[%c0, %c0_1, %c0_2, %c0_3, %c0_4] : memref<1x1x1x8x16xf32, #tpu.memory_space<vmem>>, vector<1x1x1x8x16xf32>
    %4 = vector.shape_cast %3 : vector<1x1x1x8x16xf32> to vector<8x16xf32>
    %cst = arith.constant 2.500000e-01 : f32
    %5 = vector.broadcast %cst : f32 to vector<8x16xf32>
    %6 = arith.mulf %4, %5 : vector<8x16xf32>
    %7 = arith.truncf %6 : vector<8x16xf32> to vector<8x16xbf16>
    %c0_5 = arith.constant 0 : index
    %c0_6 = arith.constant 0 : index
    %c0_7 = arith.constant 0 : index
    %c0_8 = arith.constant 0 : index
    %c0_9 = arith.constant 0 : index
    %8 = vector.load %arg5[%c0_5, %c0_6, %c0_7, %c0_8, %c0_9] : memref<1x1x1x8x16xf32, #tpu.memory_space<vmem>>, vector<1x1x1x8x16xf32>
    %9 = vector.shape_cast %8 : vector<1x1x1x8x16xf32> to vector<8x16xf32>
    %10 = arith.truncf %9 : vector<8x16xf32> to vector<8x16xbf16>
    %c0_10 = arith.constant 0 : index
    %c0_11 = arith.constant 0 : index
    %c0_12 = arith.constant 0 : index
    %c0_13 = arith.constant 0 : index
    %c0_14 = arith.constant 0 : index
    %11 = vector.load %arg6[%c0_10, %c0_11, %c0_12, %c0_13, %c0_14] : memref<1x1x1x8x16xf32, #tpu.memory_space<vmem>>, vector<1x1x1x8x16xf32>
    %12 = vector.shape_cast %11 : vector<1x1x1x8x16xf32> to vector<8x16xf32>
    %13 = arith.truncf %12 : vector<8x16xf32> to vector<8x16xbf16>
    %cst_15 = arith.constant dense<0.000000e+00> : vector<8x8xf32>
    %14 = tpu.matmul %7, %10, %cst_15 {dimension_numbers = #tpu.dot_dimension_numbers<[1], [1], [0], [0], [0, 0, 1, 0], [], []>} : vector<8x16xbf16>, vector<8x16xbf16>, vector<8x8xf32> -> vector<8x8xf32>
    %c0_16 = arith.constant 0 : index
    %c0_17 = arith.constant 0 : index
    %c0_18 = arith.constant 0 : index
    %15 = vector.load %arg7[%c0_16, %c0_17, %c0_18] : memref<1x1x8xf32, #tpu.memory_space<vmem>>, vector<1x1x8xf32>
    %16 = vector.shape_cast %15 : vector<1x1x8xf32> to vector<1x8xf32>
    %17 = vector.broadcast %16 : vector<1x8xf32> to vector<8x8xf32>
    %18 = arith.addf %14, %17 : vector<8x8xf32>
    %c0_19 = arith.constant 0 : index
    %c0_20 = arith.constant 0 : index
    %19 = vector.load %arg9[%c0_19, %c0_20] : memref<8x1xf32, #tpu.memory_space<vmem>>, vector<8x1xf32>
    %cst_21 = arith.constant dense<0xFF800000> : vector<8xf32>
    %20 = vector.multi_reduction <maximumf>, %18, %cst_21 [1] : vector<8x8xf32> to vector<8xf32>
    %21 = vector.shape_cast %20 : vector<8xf32> to vector<8x1xf32>
    %22 = arith.maximumf %19, %21 : vector<8x1xf32>
    %23 = arith.subf %19, %22 : vector<8x1xf32>
    %24 = math.exp %23 : vector<8x1xf32>
    %25 = vector.broadcast %22 : vector<8x1xf32> to vector<8x8xf32>
    %26 = arith.subf %18, %25 : vector<8x8xf32>
    %27 = math.exp %26 : vector<8x8xf32>
    %c0_22 = arith.constant 0 : index
    %c0_23 = arith.constant 0 : index
    %28 = vector.load %arg10[%c0_22, %c0_23] : memref<8x1xf32, #tpu.memory_space<vmem>>, vector<8x1xf32>
    %29 = arith.mulf %24, %28 : vector<8x1xf32>
    %cst_24 = arith.constant dense<0.000000e+00> : vector<8xf32>
    %30 = vector.multi_reduction <add>, %27, %cst_24 [1] : vector<8x8xf32> to vector<8xf32>
    %31 = vector.shape_cast %30 : vector<8xf32> to vector<8x1xf32>
    %32 = arith.addf %29, %31 : vector<8x1xf32>
    %c0_25 = arith.constant 0 : index
    %c0_26 = arith.constant 0 : index
    %33 = vector.load %arg10[%c0_25, %c0_26] : memref<8x1xf32, #tpu.memory_space<vmem>>, vector<8x1xf32>
    tpu.vector_store %arg10[%c0_25, %c0_26], %32 {strides = array<i32>} : memref<8x1xf32, #tpu.memory_space<vmem>>, vector<8x1xf32>,
    %c0_27 = arith.constant 0 : index
    %c0_28 = arith.constant 0 : index
    %34 = vector.load %arg11[%c0_27, %c0_28] : memref<8x16xf32, #tpu.memory_space<vmem>>, vector<8x16xf32>
    %35 = vector.broadcast %24 : vector<8x1xf32> to vector<8x16xf32>
    %36 = arith.mulf %35, %34 : vector<8x16xf32>
    %37 = arith.truncf %27 : vector<8x8xf32> to vector<8x8xbf16>
    %cst_29 = arith.constant dense<0.000000e+00> : vector<8x16xf32>
    %38 = tpu.matmul %37, %13, %cst_29 {dimension_numbers = #tpu.dot_dimension_numbers<[1], [0], [0], [1], [0, 0, 1, 1], [], []>} : vector<8x8xbf16>, vector<8x16xbf16>, vector<8x16xf32> -> vector<8x16xf32>
    %39 = arith.addf %36, %38 : vector<8x16xf32>
    %c0_30 = arith.constant 0 : index
    %c0_31 = arith.constant 0 : index
    %40 = vector.load %arg11[%c0_30, %c0_31] : memref<8x16xf32, #tpu.memory_space<vmem>>, vector<8x16xf32>
    tpu.vector_store %arg11[%c0_30, %c0_31], %39 {strides = array<i32>} : memref<8x16xf32, #tpu.memory_space<vmem>>, vector<8x16xf32>,
    %c0_32 = arith.constant 0 : index
    %c0_33 = arith.constant 0 : index
    %41 = vector.load %arg9[%c0_32, %c0_33] : memref<8x1xf32, #tpu.memory_space<vmem>>, vector<8x1xf32>
    tpu.vector_store %arg9[%c0_32, %c0_33], %22 {strides = array<i32>} : memref<8x1xf32, #tpu.memory_space<vmem>>, vector<8x1xf32>,
    %c0_i32_34 = arith.constant 0 : i32
    %42 = arith.cmpi eq, %arg3, %c0_i32_34 : i32
    %43 = arith.extui %42 : i1 to i32
    %c0_i32_35 = arith.constant 0 : i32
    %44 = arith.cmpi ne, %43, %c0_i32_35 : i32
    scf.if %44 {
      %c0_36 = arith.constant 0 : index
      %c0_37 = arith.constant 0 : index
      %45 = vector.load %arg10[%c0_36, %c0_37] : memref<8x1xf32, #tpu.memory_space<vmem>>, vector<8x1xf32>
      %46 = tpu.reciprocal %45 {approx = true} : vector<8x1xf32> -> vector<8x1xf32>
      %c0_38 = arith.constant 0 : index
      %c0_39 = arith.constant 0 : index
      %47 = vector.load %arg11[%c0_38, %c0_39] : memref<8x16xf32, #tpu.memory_space<vmem>>, vector<8x16xf32>
      %48 = vector.broadcast %46 : vector<8x1xf32> to vector<8x16xf32>
      %49 = arith.mulf %47, %48 : vector<8x16xf32>
      %c0_40 = arith.constant 0 : index
      %c0_41 = arith.constant 0 : index
      %c0_42 = arith.constant 0 : index
      %c0_43 = arith.constant 0 : index
      %50 = vector.load %arg8[%c0_40, %c0_41, %c0_42, %c0_43] : memref<1x1x8x16xf32, #tpu.memory_space<vmem>>, vector<1x1x8x16xf32>
      %51 = vector.shape_cast %50 : vector<1x1x8x16xf32> to vector<8x16xf32>
      %52 = vector.shape_cast %49 : vector<8x16xf32> to vector<1x1x8x16xf32>
      tpu.vector_store %arg8[%c0_40, %c0_41, %c0_42, %c0_43], %52 {strides = array<i32>} : memref<1x1x8x16xf32, #tpu.memory_space<vmem>>, vector<1x1x8x16xf32>,
    } else {
    }
    return
  }
  func.func @transform_0(%arg0: i32, %arg1: i32, %arg2: i32, %arg3: i32) -> (i32, i32, i32, i32, i32) {
    %c0_i32 = arith.constant 0 : i32
    %c0_i32_0 = arith.constant 0 : i32
    %c0_i32_1 = arith.constant 0 : i32
    return %c0_i32, %arg0, %arg1, %arg2, %c0_i32_0 : i32, i32, i32, i32, i32
  }
  func.func @transform_1(%arg0: i32, %arg1: i32, %arg2: i32, %arg3: i32) -> (i32, i32, i32, i32, i32) {
    %c1_i32 = arith.constant 1 : i32
    %c0_i32 = arith.constant 0 : i32
    %c0_i32_0 = arith.constant 0 : i32
    return %c1_i32, %arg0, %arg1, %arg3, %c0_i32 : i32, i32, i32, i32, i32
  }
  func.func @transform_2(%arg0: i32, %arg1: i32, %arg2: i32, %arg3: i32) -> (i32, i32, i32, i32, i32) {
    %c2_i32 = arith.constant 2 : i32
    %c0_i32 = arith.constant 0 : i32
    %c0_i32_0 = arith.constant 0 : i32
    return %c2_i32, %arg0, %arg1, %arg3, %c0_i32 : i32, i32, i32, i32, i32
  }
  func.func @transform_3(%arg0: i32, %arg1: i32, %arg2: i32, %arg3: i32) -> (i32, i32, i32) {
    %c0_i32 = arith.constant 0 : i32
    %c0_i32_0 = arith.constant 0 : i32
    return %arg0, %c0_i32, %arg3 : i32, i32, i32
  }
  func.func @transform_4(%arg0: i32, %arg1: i32, %arg2: i32, %arg3: i32) -> (i32, i32, i32, i32) {
    %c0_i32 = arith.constant 0 : i32
    %c0_i32_0 = arith.constant 0 : i32
    return %arg0, %arg1, %arg2, %c0_i32 : i32, i32, i32, i32
  }
}

module attributes {stable_mosaic.version = 11 : i64} {
  func.func @_matmul_res_ln_kernel(%arg0: i32, %arg1: i32, %arg2: i32, %arg3: memref<1x8x64xf32, #tpu.memory_space<vmem>>, %arg4: memref<64x32xbf16, #tpu.memory_space<vmem>>, %arg5: memref<1x32xf32, #tpu.memory_space<vmem>>, %arg6: memref<1x8x32xf32, #tpu.memory_space<vmem>>, %arg7: memref<1x32xf32, #tpu.memory_space<vmem>>, %arg8: memref<1x32xf32, #tpu.memory_space<vmem>>, %arg9: memref<1x8x32xf32, #tpu.memory_space<vmem>>, %arg10: memref<8x32xf32, #tpu.memory_space<vmem>>) attributes {dimension_semantics = [#tpu.dimension_semantics<parallel>, #tpu.dimension_semantics<parallel>, #tpu.dimension_semantics<arbitrary>], iteration_bounds = array<i64: 2, 1, 1>, scalar_prefetch = 0 : i64, scratch_operands = 1 : i64, tpu.core_type = #tpu.core_type<tc>, window_params = [{transform_indices = @transform_0, window_bounds = array<i64: 1, 8, 64>}, {transform_indices = @transform_1, window_bounds = array<i64: 64, 32>}, {pipeline_mode = #tpu.pipeline_mode<synchronous>, transform_indices = @transform_2, window_bounds = array<i64: 1, 32>}, {transform_indices = @transform_3, window_bounds = array<i64: 1, 8, 32>}, {pipeline_mode = #tpu.pipeline_mode<synchronous>, transform_indices = @transform_4, window_bounds = array<i64: 1, 32>}, {pipeline_mode = #tpu.pipeline_mode<synchronous>, transform_indices = @transform_5, window_bounds = array<i64: 1, 32>}, {transform_indices = @transform_6, window_bounds = array<i64: 1, 8, 32>}]} {
    %c0_i32 = arith.constant 0 : i32
    %0 = arith.cmpi eq, %arg2, %c0_i32 : i32
    %1 = arith.extui %0 : i1 to i32
    %c0_i32_0 = arith.constant 0 : i32
    %2 = arith.cmpi ne, %1, %c0_i32_0 : i32
    scf.if %2 {
      %cst_11 = arith.constant 0.000000e+00 : f32
      %14 = vector.broadcast %cst_11 : f32 to vector<8x32xf32>
      %c0_12 = arith.constant 0 : index
      %c0_13 = arith.constant 0 : index
      %15 = vector.load %arg10[%c0_12, %c0_13] : memref<8x32xf32, #tpu.memory_space<vmem>>, vector<8x32xf32>
      tpu.vector_store %arg10[%c0_12, %c0_13], %14 {strides = array<i32>} : memref<8x32xf32, #tpu.memory_space<vmem>>, vector<8x32xf32>,
    } else {
    }
    %c0 = arith.constant 0 : index
    %c0_1 = arith.constant 0 : index
    %3 = vector.load %arg10[%c0, %c0_1] : memref<8x32xf32, #tpu.memory_space<vmem>>, vector<8x32xf32>
    %c0_2 = arith.constant 0 : index
    %c0_3 = arith.constant 0 : index
    %c0_4 = arith.constant 0 : index
    %4 = vector.load %arg3[%c0_2, %c0_3, %c0_4] : memref<1x8x64xf32, #tpu.memory_space<vmem>>, vector<1x8x64xf32>
    %5 = vector.shape_cast %4 : vector<1x8x64xf32> to vector<8x64xf32>
    %6 = arith.truncf %5 : vector<8x64xf32> to vector<8x64xbf16>
    %c0_5 = arith.constant 0 : index
    %c0_6 = arith.constant 0 : index
    %7 = vector.load %arg4[%c0_5, %c0_6] : memref<64x32xbf16, #tpu.memory_space<vmem>>, vector<64x32xbf16>
    %cst = arith.constant dense<0.000000e+00> : vector<8x32xf32>
    %8 = tpu.matmul %6, %7, %cst {dimension_numbers = #tpu.dot_dimension_numbers<[1], [0], [0], [1], [0, 0, 1, 1], [], []>} : vector<8x64xbf16>, vector<64x32xbf16>, vector<8x32xf32> -> vector<8x32xf32>
    %9 = arith.addf %3, %8 : vector<8x32xf32>
    %c0_7 = arith.constant 0 : index
    %c0_8 = arith.constant 0 : index
    %10 = vector.load %arg10[%c0_7, %c0_8] : memref<8x32xf32, #tpu.memory_space<vmem>>, vector<8x32xf32>
    tpu.vector_store %arg10[%c0_7, %c0_8], %9 {strides = array<i32>} : memref<8x32xf32, #tpu.memory_space<vmem>>, vector<8x32xf32>,
    %c0_i32_9 = arith.constant 0 : i32
    %11 = arith.cmpi eq, %arg2, %c0_i32_9 : i32
    %12 = arith.extui %11 : i1 to i32
    %c0_i32_10 = arith.constant 0 : i32
    %13 = arith.cmpi ne, %12, %c0_i32_10 : i32
    scf.if %13 {
      %c0_11 = arith.constant 0 : index
      %c0_12 = arith.constant 0 : index
      %14 = vector.load %arg10[%c0_11, %c0_12] : memref<8x32xf32, #tpu.memory_space<vmem>>, vector<8x32xf32>
      %c0_13 = arith.constant 0 : index
      %c0_14 = arith.constant 0 : index
      %15 = vector.load %arg5[%c0_13, %c0_14] : memref<1x32xf32, #tpu.memory_space<vmem>>, vector<1x32xf32>
      %16 = vector.broadcast %15 : vector<1x32xf32> to vector<8x32xf32>
      %17 = arith.addf %14, %16 : vector<8x32xf32>
      %c0_15 = arith.constant 0 : index
      %c0_16 = arith.constant 0 : index
      %c0_17 = arith.constant 0 : index
      %18 = vector.load %arg6[%c0_15, %c0_16, %c0_17] : memref<1x8x32xf32, #tpu.memory_space<vmem>>, vector<1x8x32xf32>
      %19 = vector.shape_cast %18 : vector<1x8x32xf32> to vector<8x32xf32>
      %20 = arith.addf %17, %19 : vector<8x32xf32>
      %cst_18 = arith.constant dense<0.000000e+00> : vector<8xf32>
      %21 = vector.multi_reduction <add>, %20, %cst_18 [1] : vector<8x32xf32> to vector<8xf32>
      %22 = vector.shape_cast %21 : vector<8xf32> to vector<8x1xf32>
      %cst_19 = arith.constant 3.200000e+01 : f32
      %23 = vector.broadcast %cst_19 : f32 to vector<8x1xf32>
      %24 = arith.divf %22, %23 : vector<8x1xf32>
      %25 = vector.broadcast %24 : vector<8x1xf32> to vector<8x32xf32>
      %26 = arith.subf %20, %25 : vector<8x32xf32>
      %27 = arith.mulf %26, %26 : vector<8x32xf32>
      %cst_20 = arith.constant dense<0.000000e+00> : vector<8xf32>
      %28 = vector.multi_reduction <add>, %27, %cst_20 [1] : vector<8x32xf32> to vector<8xf32>
      %29 = vector.shape_cast %28 : vector<8xf32> to vector<8x1xf32>
      %cst_21 = arith.constant 3.200000e+01 : f32
      %30 = vector.broadcast %cst_21 : f32 to vector<8x1xf32>
      %31 = arith.divf %29, %30 : vector<8x1xf32>
      %32 = vector.broadcast %24 : vector<8x1xf32> to vector<8x32xf32>
      %33 = arith.subf %20, %32 : vector<8x32xf32>
      %cst_22 = arith.constant 9.99999996E-13 : f32
      %34 = vector.broadcast %cst_22 : f32 to vector<8x1xf32>
      %35 = arith.addf %31, %34 : vector<8x1xf32>
      %36 = math.rsqrt %35 : vector<8x1xf32>
      %37 = vector.broadcast %36 : vector<8x1xf32> to vector<8x32xf32>
      %38 = arith.mulf %33, %37 : vector<8x32xf32>
      %c0_23 = arith.constant 0 : index
      %c0_24 = arith.constant 0 : index
      %39 = vector.load %arg7[%c0_23, %c0_24] : memref<1x32xf32, #tpu.memory_space<vmem>>, vector<1x32xf32>
      %40 = vector.broadcast %39 : vector<1x32xf32> to vector<8x32xf32>
      %41 = arith.mulf %38, %40 : vector<8x32xf32>
      %c0_25 = arith.constant 0 : index
      %c0_26 = arith.constant 0 : index
      %42 = vector.load %arg8[%c0_25, %c0_26] : memref<1x32xf32, #tpu.memory_space<vmem>>, vector<1x32xf32>
      %43 = vector.broadcast %42 : vector<1x32xf32> to vector<8x32xf32>
      %44 = arith.addf %41, %43 : vector<8x32xf32>
      %c0_27 = arith.constant 0 : index
      %c0_28 = arith.constant 0 : index
      %c0_29 = arith.constant 0 : index
      %45 = vector.load %arg9[%c0_27, %c0_28, %c0_29] : memref<1x8x32xf32, #tpu.memory_space<vmem>>, vector<1x8x32xf32>
      %46 = vector.shape_cast %45 : vector<1x8x32xf32> to vector<8x32xf32>
      %47 = vector.shape_cast %44 : vector<8x32xf32> to vector<1x8x32xf32>
      tpu.vector_store %arg9[%c0_27, %c0_28, %c0_29], %47 {strides = array<i32>} : memref<1x8x32xf32, #tpu.memory_space<vmem>>, vector<1x8x32xf32>,
    } else {
    }
    return
  }
  func.func @transform_0(%arg0: i32, %arg1: i32, %arg2: i32) -> (i32, i32, i32) {
    %c0_i32 = arith.constant 0 : i32
    return %arg0, %arg1, %arg2 : i32, i32, i32
  }
  func.func @transform_1(%arg0: i32, %arg1: i32, %arg2: i32) -> (i32, i32) {
    %c0_i32 = arith.constant 0 : i32
    %c0_i32_0 = arith.constant 0 : i32
    return %arg2, %c0_i32 : i32, i32
  }
  func.func @transform_2(%arg0: i32, %arg1: i32, %arg2: i32) -> (i32, i32) {
    %c0_i32 = arith.constant 0 : i32
    %c0_i32_0 = arith.constant 0 : i32
    %c0_i32_1 = arith.constant 0 : i32
    return %c0_i32, %c0_i32_0 : i32, i32
  }
  func.func @transform_3(%arg0: i32, %arg1: i32, %arg2: i32) -> (i32, i32, i32) {
    %c0_i32 = arith.constant 0 : i32
    %c0_i32_0 = arith.constant 0 : i32
    return %arg0, %arg1, %c0_i32 : i32, i32, i32
  }
  func.func @transform_4(%arg0: i32, %arg1: i32, %arg2: i32) -> (i32, i32) {
    %c0_i32 = arith.constant 0 : i32
    %c0_i32_0 = arith.constant 0 : i32
    %c0_i32_1 = arith.constant 0 : i32
    return %c0_i32, %c0_i32_0 : i32, i32
  }
  func.func @transform_5(%arg0: i32, %arg1: i32, %arg2: i32) -> (i32, i32) {
    %c0_i32 = arith.constant 0 : i32
    %c0_i32_0 = arith.constant 0 : i32
    %c0_i32_1 = arith.constant 0 : i32
    return %c0_i32, %c0_i32_0 : i32, i32
  }
  func.func @transform_6(%arg0: i32, %arg1: i32, %arg2: i32) -> (i32, i32, i32) {
    %c0_i32 = arith.constant 0 : i32
    %c0_i32_0 = arith.constant 0 : i32
    return %arg0, %arg1, %c0_i32 : i32, i32, i32
  }
}

module attributes {stable_mosaic.version = 11 : i64} {
  func.func @_head_kernel(%arg0: memref<2x32xf32, #tpu.memory_space<vmem>>, %arg1: memref<32x32xbf16, #tpu.memory_space<vmem>>, %arg2: memref<1x32xf32, #tpu.memory_space<vmem>>, %arg3: memref<32x128xbf16, #tpu.memory_space<vmem>>, %arg4: memref<1x128xf32, #tpu.memory_space<vmem>>, %arg5: memref<2x128xf32, #tpu.memory_space<vmem>>, %arg6: memref<1x128xf32, #tpu.memory_space<vmem>>, %arg7: memref<2x128xf32, #tpu.memory_space<vmem>>, %arg8: memref<1x1xf32, #tpu.memory_space<vmem>>) attributes {dimension_semantics = [], scalar_prefetch = 0 : i64, scratch_operands = 0 : i64, tpu.core_type = #tpu.core_type<tc>} {
    %c0 = arith.constant 0 : index
    %c0_0 = arith.constant 0 : index
    %0 = vector.load %arg0[%c0, %c0_0] : memref<2x32xf32, #tpu.memory_space<vmem>>, vector<2x32xf32>
    %1 = arith.truncf %0 : vector<2x32xf32> to vector<2x32xbf16>
    %c0_1 = arith.constant 0 : index
    %c0_2 = arith.constant 0 : index
    %2 = vector.load %arg1[%c0_1, %c0_2] : memref<32x32xbf16, #tpu.memory_space<vmem>>, vector<32x32xbf16>
    %cst = arith.constant dense<0.000000e+00> : vector<2x32xf32>
    %3 = tpu.matmul %1, %2, %cst {dimension_numbers = #tpu.dot_dimension_numbers<[1], [0], [0], [1], [0, 0, 1, 1], [], []>} : vector<2x32xbf16>, vector<32x32xbf16>, vector<2x32xf32> -> vector<2x32xf32>
    %c0_3 = arith.constant 0 : index
    %c0_4 = arith.constant 0 : index
    %4 = vector.load %arg2[%c0_3, %c0_4] : memref<1x32xf32, #tpu.memory_space<vmem>>, vector<1x32xf32>
    %5 = vector.broadcast %4 : vector<1x32xf32> to vector<2x32xf32>
    %6 = arith.addf %3, %5 : vector<2x32xf32>
    %7 = math.tanh %6 : vector<2x32xf32>
    %8 = arith.truncf %7 : vector<2x32xf32> to vector<2x32xbf16>
    %c0_5 = arith.constant 0 : index
    %c0_6 = arith.constant 0 : index
    %9 = vector.load %arg3[%c0_5, %c0_6] : memref<32x128xbf16, #tpu.memory_space<vmem>>, vector<32x128xbf16>
    %cst_7 = arith.constant dense<0.000000e+00> : vector<2x128xf32>
    %10 = tpu.matmul %8, %9, %cst_7 {dimension_numbers = #tpu.dot_dimension_numbers<[1], [0], [0], [1], [0, 0, 1, 1], [], []>} : vector<2x32xbf16>, vector<32x128xbf16>, vector<2x128xf32> -> vector<2x128xf32>
    %c0_8 = arith.constant 0 : index
    %c0_9 = arith.constant 0 : index
    %11 = vector.load %arg4[%c0_8, %c0_9] : memref<1x128xf32, #tpu.memory_space<vmem>>, vector<1x128xf32>
    %12 = vector.broadcast %11 : vector<1x128xf32> to vector<2x128xf32>
    %13 = arith.addf %10, %12 : vector<2x128xf32>
    %c0_10 = arith.constant 0 : index
    %c0_11 = arith.constant 0 : index
    %14 = vector.load %arg7[%c0_10, %c0_11] : memref<2x128xf32, #tpu.memory_space<vmem>>, vector<2x128xf32>
    tpu.vector_store %arg7[%c0_10, %c0_11], %13 {strides = array<i32>} : memref<2x128xf32, #tpu.memory_space<vmem>>, vector<2x128xf32>,
    %c0_12 = arith.constant 0 : index
    %c0_13 = arith.constant 0 : index
    %15 = vector.load %arg6[%c0_12, %c0_13] : memref<1x128xf32, #tpu.memory_space<vmem>>, vector<1x128xf32>
    %16 = vector.broadcast %15 : vector<1x128xf32> to vector<2x128xf32>
    %17 = arith.addf %13, %16 : vector<2x128xf32>
    %cst_14 = arith.constant dense<0xFF800000> : vector<2xf32>
    %18 = vector.multi_reduction <maximumf>, %17, %cst_14 [1] : vector<2x128xf32> to vector<2xf32>
    %19 = vector.shape_cast %18 : vector<2xf32> to vector<2x1xf32>
    %20 = vector.broadcast %19 : vector<2x1xf32> to vector<2x128xf32>
    %21 = arith.subf %17, %20 : vector<2x128xf32>
    %22 = math.exp %21 : vector<2x128xf32>
    %cst_15 = arith.constant dense<0.000000e+00> : vector<2xf32>
    %23 = vector.multi_reduction <add>, %22, %cst_15 [1] : vector<2x128xf32> to vector<2xf32>
    %24 = vector.shape_cast %23 : vector<2xf32> to vector<2x1xf32>
    %25 = math.log %24 : vector<2x1xf32>
    %26 = arith.addf %25, %19 : vector<2x1xf32>
    %c0_16 = arith.constant 0 : index
    %c0_17 = arith.constant 0 : index
    %27 = vector.load %arg5[%c0_16, %c0_17] : memref<2x128xf32, #tpu.memory_space<vmem>>, vector<2x128xf32>
    %28 = arith.mulf %27, %17 : vector<2x128xf32>
    %cst_18 = arith.constant dense<0.000000e+00> : vector<2xf32>
    %29 = vector.multi_reduction <add>, %28, %cst_18 [1] : vector<2x128xf32> to vector<2xf32>
    %30 = vector.shape_cast %29 : vector<2xf32> to vector<2x1xf32>
    %31 = arith.subf %26, %30 : vector<2x1xf32>
    %32 = vector.shape_cast %31 : vector<2x1xf32> to vector<1x2x1xf32>
    %cst_19 = arith.constant dense<0.000000e+00> : vector<1xf32>
    %33 = vector.multi_reduction <add>, %32, %cst_19 [1, 2] : vector<1x2x1xf32> to vector<1xf32>
    %34 = vector.shape_cast %33 : vector<1xf32> to vector<1x1x1xf32>
    %35 = vector.extract %34[0, 0, 0] : f32 from vector<1x1x1xf32>
    %cst_20 = arith.constant 2.000000e+00 : f32
    %36 = arith.divf %35, %cst_20 : f32
    %37 = vector.broadcast %36 : f32 to vector<1x1xf32>
    %c0_21 = arith.constant 0 : index
    %c0_22 = arith.constant 0 : index
    %38 = vector.load %arg8[%c0_21, %c0_22] : memref<1x1xf32, #tpu.memory_space<vmem>>, vector<1x1xf32>
    tpu.vector_store %arg8[%c0_21, %c0_22], %37 {strides = array<i32>} : memref<1x1xf32, #tpu.memory_space<vmem>>, vector<1x1xf32>,
    return
  }
}

module attributes {stable_mosaic.version = 11 : i64} {
  func.func @_linear_act_kernel(%arg0: i32, %arg1: i32, %arg2: i32, %arg3: i32, %arg4: memref<1x8x32xf32, #tpu.memory_space<vmem>>, %arg5: memref<32x64xbf16, #tpu.memory_space<vmem>>, %arg6: memref<1x64xf32, #tpu.memory_space<vmem>>, %arg7: memref<1x8x64xf32, #tpu.memory_space<vmem>>, %arg8: memref<8x64xf32, #tpu.memory_space<vmem>>) attributes {dimension_semantics = [#tpu.dimension_semantics<parallel>, #tpu.dimension_semantics<parallel>, #tpu.dimension_semantics<parallel>, #tpu.dimension_semantics<arbitrary>], iteration_bounds = array<i64: 2, 1, 1, 1>, scalar_prefetch = 0 : i64, scratch_operands = 1 : i64, tpu.core_type = #tpu.core_type<tc>, window_params = [{transform_indices = @transform_0, window_bounds = array<i64: 1, 8, 32>}, {transform_indices = @transform_1, window_bounds = array<i64: 32, 64>}, {transform_indices = @transform_2, window_bounds = array<i64: 1, 64>}, {transform_indices = @transform_3, window_bounds = array<i64: 1, 8, 64>}]} {
    %c0_i32 = arith.constant 0 : i32
    %0 = arith.cmpi eq, %arg3, %c0_i32 : i32
    %1 = arith.extui %0 : i1 to i32
    %c0_i32_0 = arith.constant 0 : i32
    %2 = arith.cmpi ne, %1, %c0_i32_0 : i32
    scf.if %2 {
      %cst_11 = arith.constant 0.000000e+00 : f32
      %14 = vector.broadcast %cst_11 : f32 to vector<8x64xf32>
      %c0_12 = arith.constant 0 : index
      %c0_13 = arith.constant 0 : index
      %15 = vector.load %arg8[%c0_12, %c0_13] : memref<8x64xf32, #tpu.memory_space<vmem>>, vector<8x64xf32>
      tpu.vector_store %arg8[%c0_12, %c0_13], %14 {strides = array<i32>} : memref<8x64xf32, #tpu.memory_space<vmem>>, vector<8x64xf32>,
    } else {
    }
    %c0 = arith.constant 0 : index
    %c0_1 = arith.constant 0 : index
    %3 = vector.load %arg8[%c0, %c0_1] : memref<8x64xf32, #tpu.memory_space<vmem>>, vector<8x64xf32>
    %c0_2 = arith.constant 0 : index
    %c0_3 = arith.constant 0 : index
    %c0_4 = arith.constant 0 : index
    %4 = vector.load %arg4[%c0_2, %c0_3, %c0_4] : memref<1x8x32xf32, #tpu.memory_space<vmem>>, vector<1x8x32xf32>
    %5 = vector.shape_cast %4 : vector<1x8x32xf32> to vector<8x32xf32>
    %6 = arith.truncf %5 : vector<8x32xf32> to vector<8x32xbf16>
    %c0_5 = arith.constant 0 : index
    %c0_6 = arith.constant 0 : index
    %7 = vector.load %arg5[%c0_5, %c0_6] : memref<32x64xbf16, #tpu.memory_space<vmem>>, vector<32x64xbf16>
    %cst = arith.constant dense<0.000000e+00> : vector<8x64xf32>
    %8 = tpu.matmul %6, %7, %cst {dimension_numbers = #tpu.dot_dimension_numbers<[1], [0], [0], [1], [0, 0, 1, 1], [], []>} : vector<8x32xbf16>, vector<32x64xbf16>, vector<8x64xf32> -> vector<8x64xf32>
    %9 = arith.addf %3, %8 : vector<8x64xf32>
    %c0_7 = arith.constant 0 : index
    %c0_8 = arith.constant 0 : index
    %10 = vector.load %arg8[%c0_7, %c0_8] : memref<8x64xf32, #tpu.memory_space<vmem>>, vector<8x64xf32>
    tpu.vector_store %arg8[%c0_7, %c0_8], %9 {strides = array<i32>} : memref<8x64xf32, #tpu.memory_space<vmem>>, vector<8x64xf32>,
    %c0_i32_9 = arith.constant 0 : i32
    %11 = arith.cmpi eq, %arg3, %c0_i32_9 : i32
    %12 = arith.extui %11 : i1 to i32
    %c0_i32_10 = arith.constant 0 : i32
    %13 = arith.cmpi ne, %12, %c0_i32_10 : i32
    scf.if %13 {
      %c0_11 = arith.constant 0 : index
      %c0_12 = arith.constant 0 : index
      %14 = vector.load %arg8[%c0_11, %c0_12] : memref<8x64xf32, #tpu.memory_space<vmem>>, vector<8x64xf32>
      %c0_13 = arith.constant 0 : index
      %c0_14 = arith.constant 0 : index
      %15 = vector.load %arg6[%c0_13, %c0_14] : memref<1x64xf32, #tpu.memory_space<vmem>>, vector<1x64xf32>
      %16 = vector.broadcast %15 : vector<1x64xf32> to vector<8x64xf32>
      %17 = arith.addf %14, %16 : vector<8x64xf32>
      %18 = arith.mulf %17, %17 : vector<8x64xf32>
      %19 = arith.mulf %17, %18 : vector<8x64xf32>
      %cst_15 = arith.constant 4.471500e-02 : f32
      %20 = vector.broadcast %cst_15 : f32 to vector<8x64xf32>
      %21 = arith.mulf %20, %19 : vector<8x64xf32>
      %22 = arith.addf %17, %21 : vector<8x64xf32>
      %cst_16 = arith.constant 0.797884583 : f32
      %23 = vector.broadcast %cst_16 : f32 to vector<8x64xf32>
      %24 = arith.mulf %23, %22 : vector<8x64xf32>
      %25 = math.tanh %24 : vector<8x64xf32>
      %cst_17 = arith.constant 1.000000e+00 : f32
      %26 = vector.broadcast %cst_17 : f32 to vector<8x64xf32>
      %27 = arith.addf %26, %25 : vector<8x64xf32>
      %cst_18 = arith.constant 5.000000e-01 : f32
      %28 = vector.broadcast %cst_18 : f32 to vector<8x64xf32>
      %29 = arith.mulf %28, %27 : vector<8x64xf32>
      %30 = arith.mulf %17, %29 : vector<8x64xf32>
      %c0_19 = arith.constant 0 : index
      %c0_20 = arith.constant 0 : index
      %c0_21 = arith.constant 0 : index
      %31 = vector.load %arg7[%c0_19, %c0_20, %c0_21] : memref<1x8x64xf32, #tpu.memory_space<vmem>>, vector<1x8x64xf32>
      %32 = vector.shape_cast %31 : vector<1x8x64xf32> to vector<8x64xf32>
      %33 = vector.shape_cast %30 : vector<8x64xf32> to vector<1x8x64xf32>
      tpu.vector_store %arg7[%c0_19, %c0_20, %c0_21], %33 {strides = array<i32>} : memref<1x8x64xf32, #tpu.memory_space<vmem>>, vector<1x8x64xf32>,
    } else {
    }
    return
  }
  func.func @transform_0(%arg0: i32, %arg1: i32, %arg2: i32, %arg3: i32) -> (i32, i32, i32) {
    %c0_i32 = arith.constant 0 : i32
    return %arg0, %arg1, %arg3 : i32, i32, i32
  }
  func.func @transform_1(%arg0: i32, %arg1: i32, %arg2: i32, %arg3: i32) -> (i32, i32) {
    %c0_i32 = arith.constant 0 : i32
    return %arg3, %arg2 : i32, i32
  }
  func.func @transform_2(%arg0: i32, %arg1: i32, %arg2: i32, %arg3: i32) -> (i32, i32) {
    %c0_i32 = arith.constant 0 : i32
    %c0_i32_0 = arith.constant 0 : i32
    return %c0_i32, %arg2 : i32, i32
  }
  func.func @transform_3(%arg0: i32, %arg1: i32, %arg2: i32, %arg3: i32) -> (i32, i32, i32) {
    %c0_i32 = arith.constant 0 : i32
    return %arg0, %arg1, %arg2 : i32, i32, i32
  }
}

</mosaic_0001>

<llo_original>
// kernel: text_classification_forward.13
$region0: #{text_classification_forward.13}
  #allocation0 [shape = 'u32[]', space=smem, size = 0x4, offset = 0x4, fixed_abs, tag = 'smem constant byte address 0x4 - core index']
  #allocation1 [shape = 'u32[144,128]{1,0:T(1,128)}', space=vmem, size = 0x12000, scoped, tag = 'internal scratch']
  %s0 = inlined_call_operand.vmem [shape: f32[2,8,32], index: 0, kind: input, shape index: {}]
  %s1 = inlined_call_operand.vmem [shape: bf16[3,2,32,16], index: 1, kind: input, shape index: {}]
  %s2 = inlined_call_operand.vmem [shape: f32[3,2,1,16], index: 2, kind: input, shape index: {}]
  %s3 = inlined_call_operand.vmem [shape: f32[3,2,2,8,16], index: 3, kind: output, shape index: {}]
  %s4 = sld [smem:[#allocation0]]
  $region45: #{text_classification_forward.13} parent=0
    _
  %s6 = ssub.s32 1, %s4
  %s7 = scalar_select 0, %s6, %s4
  loop: start=0, step=1, limit=14
  $region2: #{text_classification_forward.13} parent=0 // loop_pre_header
    _
  $region3: #{text_classification_forward.13} parent=0 // loop_header
    %s9 = sphi 0, %s13
    %p10 = scmp.ge.s32.totalorder %s9, 14
    %s16 = sphi 0, %s42
    %s17 = sphi 0, %s38
    %s18 = sphi 0, %s34
    %s19 = sphi 0, %s30
    %s20 = sphi 0, %s16
    %s21 = sphi 0, %s17
    %s22 = sphi 0, %s18
    %s23 = sphi 0, %s19
    %s24 = sphi 0, %s20
    %s25 = sphi 0, %s21
    %s26 = sphi 0, %s22
    %s27 = sphi 0, %s23
    %s47 = sphi 0, %s49
    %s50 = sphi 0, %s47
    %s51 = sphi 0, %s50
    %s67 = sphi 0, %s51
    %s75 = sphi 0, %s77
    %s78 = sphi 0, %s75
    %s79 = sphi 0, %s78
    %s95 = sphi 0, %s79
    %s103 = sphi 0, %s105
    %s106 = sphi 0, %s103
    %s107 = sphi 0, %s106
    %s123 = sphi 0, %s107
    %s135 = sphi 0, %s137
    %s138 = sphi 0, %s135
    %s139 = sphi 0, %s138
    %s155 = sphi 0, %s139
  $region4: #{text_classification_forward.13} parent=0 // loop_header_branch
    %12 = sbr.rel (%p10) target = $region8
  $region5: #{text_classification_forward.13} parent=0 // loop_body
    %s14 = ssub.s32 %s9, 1
    %s15 = ssub.s32 %s9, 2
    %s28 = sadd.s32 1, %s19
    %p29 = scmp.ge.s32.totalorder %s28, 2
    %s30 = scalar_select %p29, 0, %s28
    %s31 = sadd.s32 1, %s18
    %s32 = scalar_select %p29, %s31, %s18
    %p33 = scmp.ge.s32.totalorder %s32, 3
    %s34 = scalar_select %p33, 0, %s32
    %s35 = sadd.s32 1, %s17
    %s36 = scalar_select %p33, %s35, %s17
    %p37 = scmp.ge.s32.totalorder %s36, 1
    %s38 = scalar_select %p37, 0, %s36
    %s39 = sadd.s32 1, %s16
    %s40 = scalar_select %p37, %s39, %s16
    %p41 = scmp.ge.s32.totalorder %s40, 2
    %s42 = scalar_select %p41, 0, %s40
    %s43 = ssub.s32 %s16, %s42
    %s44 = ssub.s32 %s17, %s38
    %s45 = sor.u32 %s43, %s44
    %p46 = scmp.eq.s32.totalorder %s45, 0
    %s48 = sadd.s32 %s47, 1
    %s49 = scalar_select %p46, %s47, %s48
    %p52 = pneg %p46
    %p53 = scmp.eq.s32.totalorder %s9, 11
    %p54 = por %p52, %p53
    %p55 = scmp.ne.s32.totalorder %s47, %s50
    %p56 = scmp.eq.s32.totalorder %s9, 0
    %p57 = por %p55, %p56
    %p58 = scmp.ne.s32.totalorder %s47, %s50
    %p59 = scmp.eq.s32.totalorder %s14, 11
    %p60 = por %p58, %p59
    %p61 = scmp.ne.s32.totalorder %s50, %s51
    %p62 = scmp.eq.s32.totalorder %s14, 0
    %p63 = por %p61, %p62
    %p64 = scmp.ne.s32.totalorder %s50, %s51
    %p65 = scmp.eq.s32.totalorder %s15, 11
    %p66 = por %p64, %p65
    %p68 = scmp.ne.s32.totalorder %s51, %s67
    %p69 = scmp.eq.s32.totalorder %s15, 0
    %p70 = por %p68, %p69
    %s71 = ssub.s32 %s18, %s34
    %s72 = ssub.s32 %s19, %s30
    %s73 = sor.u32 %s71, %s72
    %p74 = scmp.eq.s32.totalorder %s73, 0
    %s76 = sadd.s32 %s75, 1
    %s77 = scalar_select %p74, %s75, %s76
    %p80 = pneg %p74
    %p81 = scmp.eq.s32.totalorder %s9, 11
    %p82 = por %p80, %p81
    %p83 = scmp.ne.s32.totalorder %s75, %s78
    %p84 = scmp.eq.s32.totalorder %s9, 0
    %p85 = por %p83, %p84
    %p86 = scmp.ne.s32.totalorder %s75, %s78
    %p87 = scmp.eq.s32.totalorder %s14, 11
    %p88 = por %p86, %p87
    %p89 = scmp.ne.s32.totalorder %s78, %s79
    %p90 = scmp.eq.s32.totalorder %s14, 0
    %p91 = por %p89, %p90
    %p92 = scmp.ne.s32.totalorder %s78, %s79
    %p93 = scmp.eq.s32.totalorder %s15, 11
    %p94 = por %p92, %p93
    %p96 = scmp.ne.s32.totalorder %s79, %s95
    %p97 = scmp.eq.s32.totalorder %s15, 0
    %p98 = por %p96, %p97
    %s99 = ssub.s32 %s18, %s34
    %s100 = ssub.s32 %s19, %s30
    %s101 = sor.u32 %s99, %s100
    %p102 = scmp.eq.s32.totalorder %s101, 0
    %s104 = sadd.s32 %s103, 1
    %s105 = scalar_select %p102, %s103, %s104
    %p108 = pneg %p102
    %p109 = scmp.eq.s32.totalorder %s9, 11
    %p110 = por %p108, %p109
    %p111 = scmp.ne.s32.totalorder %s103, %s106
    %p112 = scmp.eq.s32.totalorder %s9, 0
    %p113 = por %p111, %p112
    %p114 = scmp.ne.s32.totalorder %s103, %s106
    %p115 = scmp.eq.s32.totalorder %s14, 11
    %p116 = por %p114, %p115
    %p117 = scmp.ne.s32.totalorder %s106, %s107
    %p118 = scmp.eq.s32.totalorder %s14, 0
    %p119 = por %p117, %p118
    %p120 = scmp.ne.s32.totalorder %s106, %s107
    %p121 = scmp.eq.s32.totalorder %s15, 11
    %p122 = por %p120, %p121
    %p124 = scmp.ne.s32.totalorder %s107, %s123
    %p125 = scmp.eq.s32.totalorder %s15, 0
    %p126 = por %p124, %p125
    %s127 = ssub.s32 %s18, %s34
    %s128 = ssub.s32 %s16, %s42
    %s129 = sor.u32 %s127, %s128
    %s130 = ssub.s32 %s19, %s30
    %s131 = sor.u32 %s129, %s130
    %s132 = ssub.s32 %s17, %s38
    %s133 = sor.u32 %s131, %s132
    %p134 = scmp.eq.s32.totalorder %s133, 0
    %s136 = sadd.s32 %s135, 1
    %s137 = scalar_select %p134, %s135, %s136
    %p140 = pneg %p134
    %p141 = scmp.eq.s32.totalorder %s9, 11
    %p142 = por %p140, %p141
    %p143 = scmp.ne.s32.totalorder %s135, %s138
    %p144 = scmp.eq.s32.totalorder %s9, 0
    %p145 = por %p143, %p144
    %p146 = scmp.ne.s32.totalorder %s135, %s138
    %p147 = scmp.eq.s32.totalorder %s14, 11
    %p148 = por %p146, %p147
    %p149 = scmp.ne.s32.totalorder %s138, %s139
    %p150 = scmp.eq.s32.totalorder %s14, 0
    %p151 = por %p149, %p150
    %p152 = scmp.ne.s32.totalorder %s138, %s139
    %p153 = scmp.eq.s32.totalorder %s15, 11
    %p154 = por %p152, %p153
    %p156 = scmp.ne.s32.totalorder %s139, %s155
    %p157 = scmp.eq.s32.totalorder %s15, 0
    %p158 = por %p156, %p157
    %p159 = scmp.le.s32.totalorder 1, %s9
    %p160 = scmp.lt.s32.totalorder %s9, 13
    %p161 = pnand %p159, %p160
    %p162 = pneg %p161
    // Predicated region
    $region9: #{text_classification_forward.13} parent=5 // pred_check
      _
    $region10: #{text_classification_forward.13} parent=5 // pred_check_branch
      %164 = sbr.rel (%p161) target = $region12
    $region11: #{text_classification_forward.13} parent=5 // pred_region
      %s165 = ssub.s32 %s9, 1
    $region12: #{text_classification_forward.13} parent=5 // pred_fallthru
      _
    %p166 = scmp.lt.s32.totalorder %s9, 12
    // Predicated region
    $region13: #{text_classification_forward.13} parent=5 // pred_check
      %p167 = pneg %p166
    $region14: #{text_classification_forward.13} parent=5 // pred_check_branch
      %169 = sbr.rel (%p167) target = $region16
    $region15: #{text_classification_forward.13} parent=5 // pred_region
      // Predicated region
      $region17: #{text_classification_forward.13} parent=15 // pred_check
        %p170 = pneg %p57
      $region18: #{text_classification_forward.13} parent=15 // pred_check_branch
        %172 = sbr.rel (%p170) target = $region20
      $region19: #{text_classification_forward.13} parent=15 // pred_region
        %p173 = scmp.lt.s32.totalorder %s16, 1
        %s174 = scalar_select %p173, %s16, 1
        %p175 = scmp.lt.s32.totalorder %s17, 0
        %s176 = scalar_select %p175, %s17, 0
        %s177 = sadd.s32 %s176, %s174
        %s178 = smul.addr %s177, 8
        %s179 = scalar_lea.vmem %s0, %s178
      $region20: #{text_classification_forward.13} parent=15 // pred_fallthru
        _
      // Predicated region
      $region21: #{text_classification_forward.13} parent=15 // pred_check
        %p180 = pneg %p85
      $region22: #{text_classification_forward.13} parent=15 // pred_check_branch
        %182 = sbr.rel (%p180) target = $region24
      $region23: #{text_classification_forward.13} parent=15 // pred_region
        %p183 = scmp.lt.s32.totalorder %s18, 2
        %s184 = scalar_select %p183, %s18, 2
        %p185 = scmp.lt.s32.totalorder %s19, 1
        %s186 = scalar_select %p185, %s19, 1
        %s187 = smul.addr %s186, 4
        %s188 = smul.addr %s184, 8
        %s189 = sadd.s32 %s187, %s188
        %s190 = smul.addr %s189, 4
        %s191 = scalar_lea.vmem %s1, %s190
      $region24: #{text_classification_forward.13} parent=15 // pred_fallthru
        _
      // Predicated region
      $region25: #{text_classification_forward.13} parent=15 // pred_check
        %p192 = pneg %p113
      $region26: #{text_classification_forward.13} parent=15 // pred_check_branch
        %194 = sbr.rel (%p192) target = $region28
      $region27: #{text_classification_forward.13} parent=15 // pred_region
        %p195 = scmp.lt.s32.totalorder %s18, 2
        %s196 = scalar_select %p195, %s18, 2
        %p197 = scmp.lt.s32.totalorder %s19, 1
        %s198 = scalar_select %p197, %s19, 1
        %s199 = smul.addr %s196, 2
        %s200 = sadd.s32 %s198, %s199
        %s201 = scalar_lea.vmem %s2, %s200
      $region28: #{text_classification_forward.13} parent=15 // pred_fallthru
        _
    $region16: #{text_classification_forward.13} parent=5 // pred_fallthru
      _
    %p202 = scmp.le.s32.totalorder 1, %s9
    %p203 = scmp.lt.s32.totalorder %s9, 13
    %p204 = pnand %p202, %p203
    %p205 = pneg %p204
    // Predicated region
    $region29: #{text_classification_forward.13} parent=5 // pred_check
      _
    $region30: #{text_classification_forward.13} parent=5 // pred_check_branch
      %207 = sbr.rel (%p204) target = $region32
    $region31: #{text_classification_forward.13} parent=5 // pred_region
      %s208 = ssub.s32 %s9, 1
      %p209 = scmp.lt.s32.totalorder %s20, 1
      %s210 = scalar_select %p209, %s20, 1
      %p211 = scmp.lt.s32.totalorder %s21, 0
      %s212 = scalar_select %p211, %s21, 0
      %s213 = sadd.s32 %s212, %s210
      %s214 = smul.addr %s213, 8
      %s215 = scalar_lea.vmem %s0, %s214
      %p216 = pneg %p63
      %p217 = pneg %p60
      %p218 = scmp.lt.s32.totalorder %s22, 2
      %s219 = scalar_select %p218, %s22, 2
      %p220 = scmp.lt.s32.totalorder %s23, 1
      %s221 = scalar_select %p220, %s23, 1
      %s222 = smul.addr %s221, 4
      %s223 = smul.addr %s219, 8
      %s224 = sadd.s32 %s222, %s223
      %s225 = smul.addr %s224, 4
      %s226 = scalar_lea.vmem %s1, %s225
      %p227 = pneg %p91
      %p228 = pneg %p88
      %p229 = scmp.lt.s32.totalorder %s22, 2
      %s230 = scalar_select %p229, %s22, 2
      %p231 = scmp.lt.s32.totalorder %s23, 1
      %s232 = scalar_select %p231, %s23, 1
      %s233 = smul.addr %s230, 2
      %s234 = sadd.s32 %s232, %s233
      %s235 = scalar_lea.vmem %s2, %s234
      %p236 = pneg %p119
      %p237 = pneg %p116
      %p238 = pneg %p151
      %p239 = pneg %p148
      %p240 = scmp.lt.s32.totalorder %s22, 2
      %s241 = scalar_select %p240, %s22, 2
      %p242 = scmp.lt.s32.totalorder %s20, 1
      %s243 = scalar_select %p242, %s20, 1
      %p244 = scmp.lt.s32.totalorder %s23, 1
      %s245 = scalar_select %p244, %s23, 1
      %p246 = scmp.lt.s32.totalorder %s21, 0
      %s247 = scalar_select %p246, %s21, 0
      %s248 = sadd.s32 %s247, %s245
      %s249 = smul.addr %s243, 2
      %s250 = sadd.s32 %s248, %s249
      %s251 = smul.addr %s241, 4
      %s252 = sadd.s32 %s250, %s251
      %s253 = smul.addr %s252, 8
      %s254 = scalar_lea.vmem %s3, %s253
      %p255 = scmp.lt.s32.totalorder %s20, 1
      %s256 = scalar_select %p255, %s20, 1
      %p257 = scmp.lt.s32.totalorder %s21, 0
      %s258 = scalar_select %p257, %s21, 0
      %s259 = sadd.s32 %s258, %s256
      %s260 = smul.addr %s259, 8
      %s261 = scalar_lea.vmem %s0, %s260
      %p262 = scmp.lt.s32.totalorder %s22, 2
      %s263 = scalar_select %p262, %s22, 2
      %p264 = scmp.lt.s32.totalorder %s23, 1
      %s265 = scalar_select %p264, %s23, 1
      %s266 = smul.addr %s265, 4
      %s267 = smul.addr %s263, 8
      %s268 = sadd.s32 %s266, %s267
      %s269 = smul.addr %s268, 4
      %s270 = scalar_lea.vmem %s1, %s269
      %p271 = scmp.lt.s32.totalorder %s22, 2
      %s272 = scalar_select %p271, %s22, 2
      %p273 = scmp.lt.s32.totalorder %s23, 1
      %s274 = scalar_select %p273, %s23, 1
      %s275 = smul.addr %s272, 2
      %s276 = sadd.s32 %s274, %s275
      %s277 = scalar_lea.vmem %s2, %s276
      %p278 = scmp.lt.s32.totalorder %s22, 2
      %s279 = scalar_select %p278, %s22, 2
      %p280 = scmp.lt.s32.totalorder %s20, 1
      %s281 = scalar_select %p280, %s20, 1
      %p282 = scmp.lt.s32.totalorder %s23, 1
      %s283 = scalar_select %p282, %s23, 1
      %p284 = scmp.lt.s32.totalorder %s21, 0
      %s285 = scalar_select %p284, %s21, 0
      %s286 = sadd.s32 %s285, %s283
      %s287 = smul.addr %s281, 2
      %s288 = sadd.s32 %s286, %s287
      %s289 = smul.addr %s279, 4
      %s290 = sadd.s32 %s288, %s289
      %s291 = smul.addr %s290, 8
      %s292 = scalar_lea.vmem %s3, %s291
      %v294 = vld [vmem:[%s261] sm:$0xff]
      %v295 = vpack.c.bf16 %v294, %v294
      %v296 = vld [vmem:[%s270] sm:$0xf]
      %v297 = vld [vmem:[%s270 + $0x4] sm:$0xf]
      %v298 = vld [vmem:[%s270 + $0x8] sm:$0xf]
      %v299 = vld [vmem:[%s270 + $0xc] sm:$0xf]
      %v300 = vld [vmem:[%s277] sm:$0x1]
      %v302 = vlaneseq
      %v303 = vshrl.u32 %v302, 7
      %v304 = vsub.s32 0, %v303
      %v305 = vrot.slane %v300, %v304
      %v311 = vunpack.c.l.b16 %v296
      %v312 = vunpack.c.l.b16 %v297
      %v313 = vunpack.c.l.b16 %v298
      %v314 = vunpack.c.l.b16 %v299
      %v315 = vpack.c.b16 %v312, %v311
      %v316 = vpack.c.b16 %v314, %v313
      %vm319 = vcmask 261120
      %v321 = vsel %vm319, %v295, 0
      %323 = vmatprep.subr.bf16.mxu0 0
      %324 = vmatpush1.bf16.msra.mxu0 0
      %325 = vmatprep.subr.bf16.mxu0 0
      %326 = vmatpush1.bf16.msra.mxu0 0
      %327 = vmatprep.subr.bf16.mxu0 0
      %328 = vmatpush1.bf16.msra.mxu0 0
      %329 = vmatprep.subr.bf16.mxu0 0
      %330 = vmatpush1.bf16.msra.mxu0 0
      %331 = vmatprep.subr.bf16.mxu0 0
      %332 = vmatpush1.bf16.msra.mxu0 0
      %333 = vmatprep.subr.bf16.mxu0 0
      %334 = vmatpush1.bf16.msra.mxu0 0
      %335 = vmatprep.subr.bf16.mxu0 0
      %336 = vmatpush1.bf16.msra.mxu0 %v316
      %337 = vmatprep.subr.bf16.mxu0 0
      %338 = vmatpush1.bf16.msra.mxu0 %v315
      %339 = vmatprep.subr.bf16.mxu0 0
      %340 = vmatpush2.bf16.msra.mxu0 0
      %341 = vmatprep.subr.bf16.mxu0 0
      %342 = vmatpush2.bf16.msra.mxu0 0
      %343 = vmatprep.subr.bf16.mxu0 0
      %344 = vmatpush2.bf16.msra.mxu0 0
      %345 = vmatprep.subr.bf16.mxu0 0
      %346 = vmatpush2.bf16.msra.mxu0 0
      %347 = vmatprep.subr.bf16.mxu0 0
      %348 = vmatpush2.bf16.msra.mxu0 0
      %349 = vmatprep.subr.bf16.mxu0 0
      %350 = vmatpush2.bf16.msra.mxu0 0
      %351 = vmatprep.subr.bf16.mxu0 0
      %352 = vmatpush2.bf16.msra.mxu0 0
      %353 = vmatprep.subr.bf16.mxu0 0
      %354 = vmatpush2.bf16.msra.mxu0 0
      %355 = vmatprep.mubr.bf16.mxu0 0
      %356 = vmatmul.mubr.bf16.gmra.mxu0 %v321
      %v357 = vpop.f32.mrf.mxu0
      %v358 = vadd.f32 %v305, %v357
      %v359 = vpop.f32.mrf.mxu0
      %v360 = vpop.f32.mrf.mxu0
      %v361 = vpop.f32.mrf.mxu0
      %362 = vdwg.mxu0
      %vm363 = vcmask 130048
      %364 = vst.msk [vmem:[%s292] sm:$0xff] %vm363, %v358
      %p365 = scmp.lt.s32.totalorder %s22, 2
      %s366 = scalar_select %p365, %s22, 2
      %p367 = scmp.lt.s32.totalorder %s20, 1
      %s368 = scalar_select %p367, %s20, 1
      %p369 = scmp.lt.s32.totalorder %s23, 1
      %s370 = scalar_select %p369, %s23, 1
      %p371 = scmp.lt.s32.totalorder %s21, 0
      %s372 = scalar_select %p371, %s21, 0
      %s373 = sadd.s32 %s372, %s370
      %s374 = smul.addr %s368, 2
      %s375 = sadd.s32 %s373, %s374
      %s376 = smul.addr %s366, 4
      %s377 = sadd.s32 %s375, %s376
      %s378 = smul.addr %s377, 8
      %s379 = scalar_lea.vmem %s3, %s378
      // Predicated region
      $region33: #{text_classification_forward.13} parent=31 // pred_check
        %p380 = pneg %p148
      $region34: #{text_classification_forward.13} parent=31 // pred_check_branch
        %382 = sbr.rel (%p380) target = $region36
      $region35: #{text_classification_forward.13} parent=31 // pred_region
        _
      $region36: #{text_classification_forward.13} parent=31 // pred_fallthru
        _
    $region32: #{text_classification_forward.13} parent=5 // pred_fallthru
      _
    %p383 = scmp.le.s32.totalorder 2, %s9
    // Predicated region
    $region37: #{text_classification_forward.13} parent=5 // pred_check
      %p384 = pneg %p383
    $region38: #{text_classification_forward.13} parent=5 // pred_check_branch
      %386 = sbr.rel (%p384) target = $region40
    $region39: #{text_classification_forward.13} parent=5 // pred_region
      %s387 = ssub.s32 %s9, 2
      // Predicated region
      $region41: #{text_classification_forward.13} parent=39 // pred_check
        %p388 = pneg %p154
      $region42: #{text_classification_forward.13} parent=39 // pred_check_branch
        %390 = sbr.rel (%p388) target = $region44
      $region43: #{text_classification_forward.13} parent=39 // pred_region
        %p391 = scmp.lt.s32.totalorder %s26, 2
        %s392 = scalar_select %p391, %s26, 2
        %p393 = scmp.lt.s32.totalorder %s24, 1
        %s394 = scalar_select %p393, %s24, 1
        %p395 = scmp.lt.s32.totalorder %s27, 1
        %s396 = scalar_select %p395, %s27, 1
        %p397 = scmp.lt.s32.totalorder %s25, 0
        %s398 = scalar_select %p397, %s25, 0
        %s399 = sadd.s32 %s398, %s396
        %s400 = smul.addr %s394, 2
        %s401 = sadd.s32 %s399, %s400
        %s402 = smul.addr %s392, 4
        %s403 = sadd.s32 %s401, %s402
        %s404 = smul.addr %s403, 8
        %s405 = scalar_lea.vmem %s3, %s404
      $region44: #{text_classification_forward.13} parent=39 // pred_fallthru
        _
    $region40: #{text_classification_forward.13} parent=5 // pred_fallthru
      _
  $region6: #{text_classification_forward.13} parent=0 // loop_footer
    %s13 = sadd.s32 1, %s9
  $region7: #{text_classification_forward.13} parent=0 // loop_footer_branch
    %8 = sbr.rel target = $region3
  $region8: #{text_classification_forward.13} parent=0 // loop_exit
    _

// kernel: text_classification_forward.15
$region0: #{text_classification_forward.15}
  #allocation0 [shape = 'u32[]', space=smem, size = 0x4, offset = 0x4, fixed_abs, tag = 'smem constant byte address 0x4 - core index']
  #allocation1 [shape = 'u32[144,128]{1,0:T(1,128)}', space=vmem, size = 0x12000, scoped, tag = 'internal scratch']
  #allocation2 [shape = 'f32[8,32]{1,0:T(8,128)}', space=vmem, size = 0x1000, scoped, tag = 'scratch operand']
  %s0 = inlined_call_operand.vmem [shape: f32[2,2,8,16], index: 0, kind: input, shape index: {}]
  %s1 = inlined_call_operand.vmem [shape: bf16[2,16,32], index: 1, kind: input, shape index: {}]
  %s2 = inlined_call_operand.vmem [shape: f32[1,32], index: 2, kind: input, shape index: {}, may-alias: {2,5}]
  %s3 = inlined_call_operand.vmem [shape: f32[2,8,32], index: 3, kind: input, shape index: {}]
  %s4 = inlined_call_operand.vmem [shape: f32[1,32], index: 4, kind: input, shape index: {}]
  %s5 = inlined_call_operand.vmem [shape: f32[1,32], index: 5, kind: input, shape index: {}, may-alias: {2,5}]
  %s6 = inlined_call_operand.vmem [shape: f32[2,8,32], index: 6, kind: output, shape index: {}]
  %s7 = sld [smem:[#allocation0]]
  $region65: #{text_classification_forward.15} parent=0
    _
  %s9 = ssub.s32 1, %s7
  %s10 = scalar_select 0, %s9, %s7
  loop: start=0, step=1, limit=6
  $region2: #{text_classification_forward.15} parent=0 // loop_pre_header
    _
  $region3: #{text_classification_forward.15} parent=0 // loop_header
    %s12 = sphi 0, %s16
    %p13 = scmp.ge.s32.totalorder %s12, 6
    %s19 = sphi 0, %s38
    %s20 = sphi 0, %s34
    %s21 = sphi 0, %s30
    %s22 = sphi 0, %s19
    %s23 = sphi 0, %s20
    %s24 = sphi 0, %s21
    %s25 = sphi 0, %s22
    %s26 = sphi 0, %s23
    %s27 = sphi 0, %s24
    %s45 = sphi 0, %s47
    %s48 = sphi 0, %s45
    %s49 = sphi 0, %s48
    %s65 = sphi 0, %s49
    %s71 = sphi 0, %s73
    %s74 = sphi 0, %s71
    %s75 = sphi 0, %s74
    %s91 = sphi 0, %s75
    %s95 = sphi 0, %s95
    %s97 = sphi 0, %s95
    %s98 = sphi 0, %s97
    %s112 = sphi 0, %s98
    %s120 = sphi 0, %s122
    %s123 = sphi 0, %s120
    %s124 = sphi 0, %s123
    %s140 = sphi 0, %s124
    %s144 = sphi 0, %s144
    %s146 = sphi 0, %s144
    %s147 = sphi 0, %s146
    %s161 = sphi 0, %s147
    %s165 = sphi 0, %s165
    %s167 = sphi 0, %s165
    %s168 = sphi 0, %s167
    %s182 = sphi 0, %s168
    %s190 = sphi 0, %s192
    %s193 = sphi 0, %s190
    %s194 = sphi 0, %s193
    %s210 = sphi 0, %s194
  $region4: #{text_classification_forward.15} parent=0 // loop_header_branch
    %15 = sbr.rel (%p13) target = $region8
  $region5: #{text_classification_forward.15} parent=0 // loop_body
    %s17 = ssub.s32 %s12, 1
    %s18 = ssub.s32 %s12, 2
    %s28 = sadd.s32 1, %s21
    %p29 = scmp.ge.s32.totalorder %s28, 2
    %s30 = scalar_select %p29, 0, %s28
    %s31 = sadd.s32 1, %s20
    %s32 = scalar_select %p29, %s31, %s20
    %p33 = scmp.ge.s32.totalorder %s32, 1
    %s34 = scalar_select %p33, 0, %s32
    %s35 = sadd.s32 1, %s19
    %s36 = scalar_select %p33, %s35, %s19
    %p37 = scmp.ge.s32.totalorder %s36, 2
    %s38 = scalar_select %p37, 0, %s36
    %s39 = ssub.s32 %s19, %s38
    %s40 = ssub.s32 %s21, %s30
    %s41 = sor.u32 %s39, %s40
    %s42 = ssub.s32 %s20, %s34
    %s43 = sor.u32 %s41, %s42
    %p44 = scmp.eq.s32.totalorder %s43, 0
    %s46 = sadd.s32 %s45, 1
    %s47 = scalar_select %p44, %s45, %s46
    %p50 = pneg %p44
    %p51 = scmp.eq.s32.totalorder %s12, 3
    %p52 = por %p50, %p51
    %p53 = scmp.ne.s32.totalorder %s45, %s48
    %p54 = scmp.eq.s32.totalorder %s12, 0
    %p55 = por %p53, %p54
    %p56 = scmp.ne.s32.totalorder %s45, %s48
    %p57 = scmp.eq.s32.totalorder %s17, 3
    %p58 = por %p56, %p57
    %p59 = scmp.ne.s32.totalorder %s48, %s49
    %p60 = scmp.eq.s32.totalorder %s17, 0
    %p61 = por %p59, %p60
    %p62 = scmp.ne.s32.totalorder %s48, %s49
    %p63 = scmp.eq.s32.totalorder %s18, 3
    %p64 = por %p62, %p63
    %p66 = scmp.ne.s32.totalorder %s49, %s65
    %p67 = scmp.eq.s32.totalorder %s18, 0
    %p68 = por %p66, %p67
    %s69 = ssub.s32 %s21, %s30
    %p70 = scmp.eq.s32.totalorder %s69, 0
    %s72 = sadd.s32 %s71, 1
    %s73 = scalar_select %p70, %s71, %s72
    %p76 = pneg %p70
    %p77 = scmp.eq.s32.totalorder %s12, 3
    %p78 = por %p76, %p77
    %p79 = scmp.ne.s32.totalorder %s71, %s74
    %p80 = scmp.eq.s32.totalorder %s12, 0
    %p81 = por %p79, %p80
    %p82 = scmp.ne.s32.totalorder %s71, %s74
    %p83 = scmp.eq.s32.totalorder %s17, 3
    %p84 = por %p82, %p83
    %p85 = scmp.ne.s32.totalorder %s74, %s75
    %p86 = scmp.eq.s32.totalorder %s17, 0
    %p87 = por %p85, %p86
    %p88 = scmp.ne.s32.totalorder %s74, %s75
    %p89 = scmp.eq.s32.totalorder %s18, 3
    %p90 = por %p88, %p89
    %p92 = scmp.ne.s32.totalorder %s75, %s91
    %p93 = scmp.eq.s32.totalorder %s18, 0
    %p94 = por %p92, %p93
    %s96 = sadd.s32 %s95, 1
    %p99 = scmp.eq.s32.totalorder %s12, 3
    %p100 = scmp.ne.s32.totalorder %s95, %s97
    %p101 = scmp.eq.s32.totalorder %s12, 0
    %p102 = por %p100, %p101
    %p103 = scmp.ne.s32.totalorder %s95, %s97
    %p104 = scmp.eq.s32.totalorder %s17, 3
    %p105 = por %p103, %p104
    %p106 = scmp.ne.s32.totalorder %s97, %s98
    %p107 = scmp.eq.s32.totalorder %s17, 0
    %p108 = por %p106, %p107
    %p109 = scmp.ne.s32.totalorder %s97, %s98
    %p110 = scmp.eq.s32.totalorder %s18, 3
    %p111 = por %p109, %p110
    %p113 = scmp.ne.s32.totalorder %s98, %s112
    %p114 = scmp.eq.s32.totalorder %s18, 0
    %p115 = por %p113, %p114
    %s116 = ssub.s32 %s19, %s38
    %s117 = ssub.s32 %s20, %s34
    %s118 = sor.u32 %s116, %s117
    %p119 = scmp.eq.s32.totalorder %s118, 0
    %s121 = sadd.s32 %s120, 1
    %s122 = scalar_select %p119, %s120, %s121
    %p125 = pneg %p119
    %p126 = scmp.eq.s32.totalorder %s12, 3
    %p127 = por %p125, %p126
    %p128 = scmp.ne.s32.totalorder %s120, %s123
    %p129 = scmp.eq.s32.totalorder %s12, 0
    %p130 = por %p128, %p129
    %p131 = scmp.ne.s32.totalorder %s120, %s123
    %p132 = scmp.eq.s32.totalorder %s17, 3
    %p133 = por %p131, %p132
    %p134 = scmp.ne.s32.totalorder %s123, %s124
    %p135 = scmp.eq.s32.totalorder %s17, 0
    %p136 = por %p134, %p135
    %p137 = scmp.ne.s32.totalorder %s123, %s124
    %p138 = scmp.eq.s32.totalorder %s18, 3
    %p139 = por %p137, %p138
    %p141 = scmp.ne.s32.totalorder %s124, %s140
    %p142 = scmp.eq.s32.totalorder %s18, 0
    %p143 = por %p141, %p142
    %s145 = sadd.s32 %s144, 1
    %p148 = scmp.eq.s32.totalorder %s12, 3
    %p149 = scmp.ne.s32.totalorder %s144, %s146
    %p150 = scmp.eq.s32.totalorder %s12, 0
    %p151 = por %p149, %p150
    %p152 = scmp.ne.s32.totalorder %s144, %s146
    %p153 = scmp.eq.s32.totalorder %s17, 3
    %p154 = por %p152, %p153
    %p155 = scmp.ne.s32.totalorder %s146, %s147
    %p156 = scmp.eq.s32.totalorder %s17, 0
    %p157 = por %p155, %p156
    %p158 = scmp.ne.s32.totalorder %s146, %s147
    %p159 = scmp.eq.s32.totalorder %s18, 3
    %p160 = por %p158, %p159
    %p162 = scmp.ne.s32.totalorder %s147, %s161
    %p163 = scmp.eq.s32.totalorder %s18, 0
    %p164 = por %p162, %p163
    %s166 = sadd.s32 %s165, 1
    %p169 = scmp.eq.s32.totalorder %s12, 3
    %p170 = scmp.ne.s32.totalorder %s165, %s167
    %p171 = scmp.eq.s32.totalorder %s12, 0
    %p172 = por %p170, %p171
    %p173 = scmp.ne.s32.totalorder %s165, %s167
    %p174 = scmp.eq.s32.totalorder %s17, 3
    %p175 = por %p173, %p174
    %p176 = scmp.ne.s32.totalorder %s167, %s168
    %p177 = scmp.eq.s32.totalorder %s17, 0
    %p178 = por %p176, %p177
    %p179 = scmp.ne.s32.totalorder %s167, %s168
    %p180 = scmp.eq.s32.totalorder %s18, 3
    %p181 = por %p179, %p180
    %p183 = scmp.ne.s32.totalorder %s168, %s182
    %p184 = scmp.eq.s32.totalorder %s18, 0
    %p185 = por %p183, %p184
    %s186 = ssub.s32 %s19, %s38
    %s187 = ssub.s32 %s20, %s34
    %s188 = sor.u32 %s186, %s187
    %p189 = scmp.eq.s32.totalorder %s188, 0
    %s191 = sadd.s32 %s190, 1
    %s192 = scalar_select %p189, %s190, %s191
    %p195 = pneg %p189
    %p196 = scmp.eq.s32.totalorder %s12, 3
    %p197 = por %p195, %p196
    %p198 = scmp.ne.s32.totalorder %s190, %s193
    %p199 = scmp.eq.s32.totalorder %s12, 0
    %p200 = por %p198, %p199
    %p201 = scmp.ne.s32.totalorder %s190, %s193
    %p202 = scmp.eq.s32.totalorder %s17, 3
    %p203 = por %p201, %p202
    %p204 = scmp.ne.s32.totalorder %s193, %s194
    %p205 = scmp.eq.s32.totalorder %s17, 0
    %p206 = por %p204, %p205
    %p207 = scmp.ne.s32.totalorder %s193, %s194
    %p208 = scmp.eq.s32.totalorder %s18, 3
    %p209 = por %p207, %p208
    %p211 = scmp.ne.s32.totalorder %s194, %s210
    %p212 = scmp.eq.s32.totalorder %s18, 0
    %p213 = por %p211, %p212
    %p214 = scmp.le.s32.totalorder 1, %s12
    %p215 = scmp.lt.s32.totalorder %s12, 5
    %p216 = pnand %p214, %p215
    %p217 = pneg %p216
    // Predicated region
    $region9: #{text_classification_forward.15} parent=5 // pred_check
      _
    $region10: #{text_classification_forward.15} parent=5 // pred_check_branch
      %219 = sbr.rel (%p216) target = $region12
    $region11: #{text_classification_forward.15} parent=5 // pred_region
      %s220 = ssub.s32 %s12, 1
      // Predicated region
      $region13: #{text_classification_forward.15} parent=11 // pred_check
        %p221 = pneg %p108
      $region14: #{text_classification_forward.15} parent=11 // pred_check_branch
        %223 = sbr.rel (%p221) target = $region16
      $region15: #{text_classification_forward.15} parent=11 // pred_region
        _
      $region16: #{text_classification_forward.15} parent=11 // pred_fallthru
        _
      // Predicated region
      $region17: #{text_classification_forward.15} parent=11 // pred_check
        %p224 = pneg %p157
      $region18: #{text_classification_forward.15} parent=11 // pred_check_branch
        %226 = sbr.rel (%p224) target = $region20
      $region19: #{text_classification_forward.15} parent=11 // pred_region
        _
      $region20: #{text_classification_forward.15} parent=11 // pred_fallthru
        _
      // Predicated region
      $region21: #{text_classification_forward.15} parent=11 // pred_check
        %p227 = pneg %p178
      $region22: #{text_classification_forward.15} parent=11 // pred_check_branch
        %229 = sbr.rel (%p227) target = $region24
      $region23: #{text_classification_forward.15} parent=11 // pred_region
        _
      $region24: #{text_classification_forward.15} parent=11 // pred_fallthru
        _
    $region12: #{text_classification_forward.15} parent=5 // pred_fallthru
      _
    %p230 = scmp.lt.s32.totalorder %s12, 4
    // Predicated region
    $region25: #{text_classification_forward.15} parent=5 // pred_check
      %p231 = pneg %p230
    $region26: #{text_classification_forward.15} parent=5 // pred_check_branch
      %233 = sbr.rel (%p231) target = $region28
    $region27: #{text_classification_forward.15} parent=5 // pred_region
      // Predicated region
      $region29: #{text_classification_forward.15} parent=27 // pred_check
        %p234 = pneg %p55
      $region30: #{text_classification_forward.15} parent=27 // pred_check_branch
        %236 = sbr.rel (%p234) target = $region32
      $region31: #{text_classification_forward.15} parent=27 // pred_region
        %p237 = scmp.lt.s32.totalorder %s19, 1
        %s238 = scalar_select %p237, %s19, 1
        %p239 = scmp.lt.s32.totalorder %s21, 1
        %s240 = scalar_select %p239, %s21, 1
        %p241 = scmp.lt.s32.totalorder %s20, 0
        %s242 = scalar_select %p241, %s20, 0
        %s243 = sadd.s32 %s242, %s240
        %s244 = smul.addr %s238, 2
        %s245 = sadd.s32 %s243, %s244
        %s246 = smul.addr %s245, 8
        %s247 = scalar_lea.vmem %s0, %s246
      $region32: #{text_classification_forward.15} parent=27 // pred_fallthru
        _
      // Predicated region
      $region33: #{text_classification_forward.15} parent=27 // pred_check
        %p248 = pneg %p81
      $region34: #{text_classification_forward.15} parent=27 // pred_check_branch
        %250 = sbr.rel (%p248) target = $region36
      $region35: #{text_classification_forward.15} parent=27 // pred_region
        %p251 = scmp.lt.s32.totalorder %s21, 1
        %s252 = scalar_select %p251, %s21, 1
        %s253 = smul.addr %s252, 2
        %s254 = smul.addr %s253, 4
        %s255 = scalar_lea.vmem %s1, %s254
      $region36: #{text_classification_forward.15} parent=27 // pred_fallthru
        _
      // Predicated region
      $region37: #{text_classification_forward.15} parent=27 // pred_check
        %p256 = pneg %p130
      $region38: #{text_classification_forward.15} parent=27 // pred_check_branch
        %258 = sbr.rel (%p256) target = $region40
      $region39: #{text_classification_forward.15} parent=27 // pred_region
        %p259 = scmp.lt.s32.totalorder %s19, 1
        %s260 = scalar_select %p259, %s19, 1
        %p261 = scmp.lt.s32.totalorder %s20, 0
        %s262 = scalar_select %p261, %s20, 0
        %s263 = sadd.s32 %s262, %s260
        %s264 = smul.addr %s263, 8
        %s265 = scalar_lea.vmem %s3, %s264
      $region40: #{text_classification_forward.15} parent=27 // pred_fallthru
        _
    $region28: #{text_classification_forward.15} parent=5 // pred_fallthru
      _
    %p266 = scmp.le.s32.totalorder 1, %s12
    %p267 = scmp.lt.s32.totalorder %s12, 5
    %p268 = pnand %p266, %p267
    %p269 = pneg %p268
    // Predicated region
    $region41: #{text_classification_forward.15} parent=5 // pred_check
      _
    $region42: #{text_classification_forward.15} parent=5 // pred_check_branch
      %271 = sbr.rel (%p268) target = $region44
    $region43: #{text_classification_forward.15} parent=5 // pred_region
      %s272 = ssub.s32 %s12, 1
      %p273 = scmp.lt.s32.totalorder %s22, 1
      %s274 = scalar_select %p273, %s22, 1
      %p275 = scmp.lt.s32.totalorder %s24, 1
      %s276 = scalar_select %p275, %s24, 1
      %p277 = scmp.lt.s32.totalorder %s23, 0
      %s278 = scalar_select %p277, %s23, 0
      %s279 = sadd.s32 %s278, %s276
      %s280 = smul.addr %s274, 2
      %s281 = sadd.s32 %s279, %s280
      %s282 = smul.addr %s281, 8
      %s283 = scalar_lea.vmem %s0, %s282
      %p284 = pneg %p61
      %p285 = pneg %p58
      %p286 = scmp.lt.s32.totalorder %s24, 1
      %s287 = scalar_select %p286, %s24, 1
      %s288 = smul.addr %s287, 2
      %s289 = smul.addr %s288, 4
      %s290 = scalar_lea.vmem %s1, %s289
      %p291 = pneg %p87
      %p292 = pneg %p84
      %p293 = pneg %p108
      %p294 = pneg %p105
      %p295 = scmp.lt.s32.totalorder %s22, 1
      %s296 = scalar_select %p295, %s22, 1
      %p297 = scmp.lt.s32.totalorder %s23, 0
      %s298 = scalar_select %p297, %s23, 0
      %s299 = sadd.s32 %s298, %s296
      %s300 = smul.addr %s299, 8
      %s301 = scalar_lea.vmem %s3, %s300
      %p302 = pneg %p136
      %p303 = pneg %p133
      %p304 = pneg %p157
      %p305 = pneg %p154
      %p306 = pneg %p178
      %p307 = pneg %p175
      %p308 = pneg %p206
      %p309 = pneg %p203
      %p310 = scmp.lt.s32.totalorder %s22, 1
      %s311 = scalar_select %p310, %s22, 1
      %p312 = scmp.lt.s32.totalorder %s23, 0
      %s313 = scalar_select %p312, %s23, 0
      %s314 = sadd.s32 %s313, %s311
      %s315 = smul.addr %s314, 8
      %s316 = scalar_lea.vmem %s6, %s315
      %p317 = scmp.lt.s32.totalorder %s22, 1
      %s318 = scalar_select %p317, %s22, 1
      %p319 = scmp.lt.s32.totalorder %s24, 1
      %s320 = scalar_select %p319, %s24, 1
      %p321 = scmp.lt.s32.totalorder %s23, 0
      %s322 = scalar_select %p321, %s23, 0
      %s323 = sadd.s32 %s322, %s320
      %s324 = smul.addr %s318, 2
      %s325 = sadd.s32 %s323, %s324
      %s326 = smul.addr %s325, 8
      %s327 = scalar_lea.vmem %s0, %s326
      %p328 = scmp.lt.s32.totalorder %s24, 1
      %s329 = scalar_select %p328, %s24, 1
      %s330 = smul.addr %s329, 2
      %s331 = smul.addr %s330, 4
      %s332 = scalar_lea.vmem %s1, %s331
      %p333 = scmp.lt.s32.totalorder %s22, 1
      %s334 = scalar_select %p333, %s22, 1
      %p335 = scmp.lt.s32.totalorder %s23, 0
      %s336 = scalar_select %p335, %s23, 0
      %s337 = sadd.s32 %s336, %s334
      %s338 = smul.addr %s337, 8
      %s339 = scalar_lea.vmem %s3, %s338
      %p340 = scmp.lt.s32.totalorder %s22, 1
      %s341 = scalar_select %p340, %s22, 1
      %p342 = scmp.lt.s32.totalorder %s23, 0
      %s343 = scalar_select %p342, %s23, 0
      %s344 = sadd.s32 %s343, %s341
      %s345 = smul.addr %s344, 8
      %s346 = scalar_lea.vmem %s6, %s345
      %p348 = scmp.eq.s32.totalorder %s24, 0
      // Predicated region
      $region45: #{text_classification_forward.15} parent=43 // pred_check
        %p349 = pneg %p348
      $region46: #{text_classification_forward.15} parent=43 // pred_check_branch
        %351 = sbr.rel (%p349) target = $region48
      $region47: #{text_classification_forward.15} parent=43 // pred_region
        %vm352 = vcmask 261120
        %353 = vst.msk [vmem:[#allocation2] sm:$0xff] %vm352, 0.0
      $region48: #{text_classification_forward.15} parent=43 // pred_fallthru
        _
      %v354 = vld [vmem:[#allocation2] sm:$0xff]
      %v355 = vld [vmem:[%s327] sm:$0xff]
      %v356 = vpack.c.bf16 %v355, %v355
      %v357 = vld [vmem:[%s332] sm:$0xf]
      %v358 = vld [vmem:[%s332 + $0x4] sm:$0xf]
      %v361 = vunpack.c.l.b16 %v357
      %v362 = vunpack.c.l.b16 %v358
      %v363 = vpack.c.b16 %v362, %v361
      %vm365 = vcmask 130048
      %v367 = vsel %vm365, %v356, 0
      %369 = vmatprep.subr.bf16.mxu0 0
      %370 = vmatpush1.bf16.msra.mxu0 0
      %371 = vmatprep.subr.bf16.mxu0 0
      %372 = vmatpush1.bf16.msra.mxu0 0
      %373 = vmatprep.subr.bf16.mxu0 0
      %374 = vmatpush1.bf16.msra.mxu0 0
      %375 = vmatprep.subr.bf16.mxu0 0
      %376 = vmatpush1.bf16.msra.mxu0 0
      %377 = vmatprep.subr.bf16.mxu0 0
      %378 = vmatpush1.bf16.msra.mxu0 0
      %379 = vmatprep.subr.bf16.mxu0 0
      %380 = vmatpush1.bf16.msra.mxu0 0
      %381 = vmatprep.subr.bf16.mxu0 0
      %382 = vmatpush1.bf16.msra.mxu0 0
      %383 = vmatprep.subr.bf16.mxu0 0
      %384 = vmatpush1.bf16.msra.mxu0 %v363
      %385 = vmatprep.subr.bf16.mxu0 0
      %386 = vmatpush2.bf16.msra.mxu0 0
      %387 = vmatprep.subr.bf16.mxu0 0
      %388 = vmatpush2.bf16.msra.mxu0 0
      %389 = vmatprep.subr.bf16.mxu0 0
      %390 = vmatpush2.bf16.msra.mxu0 0
      %391 = vmatprep.subr.bf16.mxu0 0
      %392 = vmatpush2.bf16.msra.mxu0 0
      %393 = vmatprep.subr.bf16.mxu0 0
      %394 = vmatpush2.bf16.msra.mxu0 0
      %395 = vmatprep.subr.bf16.mxu0 0
      %396 = vmatpush2.bf16.msra.mxu0 0
      %397 = vmatprep.subr.bf16.mxu0 0
      %398 = vmatpush2.bf16.msra.mxu0 0
      %399 = vmatprep.subr.bf16.mxu0 0
      %400 = vmatpush2.bf16.msra.mxu0 0
      %401 = vmatprep.mubr.bf16.mxu0 0
      %402 = vmatmul.mubr.bf16.gmra.mxu0 %v367
      %v403 = vpop.f32.mrf.mxu0
      %v404 = vadd.f32 0.0, %v403
      %v405 = vpop.f32.mrf.mxu0
      %v406 = vpop.f32.mrf.mxu0
      %v407 = vpop.f32.mrf.mxu0
      %408 = vdwg.mxu0
      %v409 = vadd.f32 %v354, %v404
      %vm410 = vcmask 261120
      %411 = vst.msk [vmem:[#allocation2] sm:$0xff] %vm410, %v409
      %p412 = scmp.eq.s32.totalorder %s24, 1
      // Predicated region
      $region49: #{text_classification_forward.15} parent=43 // pred_check
        %p413 = pneg %p412
      $region50: #{text_classification_forward.15} parent=43 // pred_check_branch
        %415 = sbr.rel (%p413) target = $region52
      $region51: #{text_classification_forward.15} parent=43 // pred_region
        %v416 = vld [vmem:[#allocation2] sm:$0xff]
        %v417 = vld [vmem:[%s2] sm:$0x1]
        %v419 = vlaneseq
        %v420 = vshrl.u32 %v419, 7
        %v421 = vsub.s32 0, %v420
        %v422 = vrot.slane %v417, %v421
        %v424 = vadd.f32 %v416, %v422
        %v425 = vld [vmem:[%s339] sm:$0xff]
        %v426 = vadd.f32 %v424, %v425
        %v427 = vsel %vm410, %v426, 0.0
        %428 = vadd.xlane.f32.xlu0 %v427
        %v429 = vpop.xlane.xlu0 %428
        %v430 = vrcp.pop 32.0
        %v431 = vmul.f32 %v429, %v430
        %v432 = vsub.f32 %v426, %v431
        %v433 = vmul.f32 %v432, %v432
        %v434 = vsel %vm410, %v433, 0.0
        %435 = vadd.xlane.f32.xlu0 %v434
        %v436 = vpop.xlane.xlu0 %435
        %v437 = vmul.f32 %v436, %v430
        %v438 = vadd.f32 %v437, 1e-12
        %v439 = vrsqrt.pop %v438
        %v440 = vmul.f32 %v432, %v439
        %v441 = vld [vmem:[%s4] sm:$0x1]
        %v443 = vlaneseq
        %v444 = vshrl.u32 %v443, 7
        %v445 = vsub.s32 0, %v444
        %v446 = vrot.slane %v441, %v445
        %v448 = vmul.f32 %v440, %v446
        %v449 = vld [vmem:[%s5] sm:$0x1]
        %v451 = vlaneseq
        %v452 = vshrl.u32 %v451, 7
        %v453 = vsub.s32 0, %v452
        %v454 = vrot.slane %v449, %v453
        %v456 = vadd.f32 %v448, %v454
        %457 = vst.msk [vmem:[%s346] sm:$0xff] %vm410, %v456
      $region52: #{text_classification_forward.15} parent=43 // pred_fallthru
        _
      %p458 = scmp.lt.s32.totalorder %s22, 1
      %s459 = scalar_select %p458, %s22, 1
      %p460 = scmp.lt.s32.totalorder %s23, 0
      %s461 = scalar_select %p460, %s23, 0
      %s462 = sadd.s32 %s461, %s459
      %s463 = smul.addr %s462, 8
      %s464 = scalar_lea.vmem %s6, %s463
      // Predicated region
      $region53: #{text_classification_forward.15} parent=43 // pred_check
        %p465 = pneg %p203
      $region54: #{text_classification_forward.15} parent=43 // pred_check_branch
        %467 = sbr.rel (%p465) target = $region56
      $region55: #{text_classification_forward.15} parent=43 // pred_region
        _
      $region56: #{text_classification_forward.15} parent=43 // pred_fallthru
        _
    $region44: #{text_classification_forward.15} parent=5 // pred_fallthru
      _
    %p468 = scmp.le.s32.totalorder 2, %s12
    // Predicated region
    $region57: #{text_classification_forward.15} parent=5 // pred_check
      %p469 = pneg %p468
    $region58: #{text_classification_forward.15} parent=5 // pred_check_branch
      %471 = sbr.rel (%p469) target = $region60
    $region59: #{text_classification_forward.15} parent=5 // pred_region
      %s472 = ssub.s32 %s12, 2
      // Predicated region
      $region61: #{text_classification_forward.15} parent=59 // pred_check
        %p473 = pneg %p209
      $region62: #{text_classification_forward.15} parent=59 // pred_check_branch
        %475 = sbr.rel (%p473) target = $region64
      $region63: #{text_classification_forward.15} parent=59 // pred_region
        %p476 = scmp.lt.s32.totalorder %s25, 1
        %s477 = scalar_select %p476, %s25, 1
        %p478 = scmp.lt.s32.totalorder %s26, 0
        %s479 = scalar_select %p478, %s26, 0
        %s480 = sadd.s32 %s479, %s477
        %s481 = smul.addr %s480, 8
        %s482 = scalar_lea.vmem %s6, %s481
      $region64: #{text_classification_forward.15} parent=59 // pred_fallthru
        _
    $region60: #{text_classification_forward.15} parent=5 // pred_fallthru
      _
  $region6: #{text_classification_forward.15} parent=0 // loop_footer
    %s16 = sadd.s32 1, %s12
  $region7: #{text_classification_forward.15} parent=0 // loop_footer_branch
    %11 = sbr.rel target = $region3
  $region8: #{text_classification_forward.15} parent=0 // loop_exit
    _

// kernel: text_classification_forward.12
$region0: #{text_classification_forward.12}
  #allocation0 [shape = 'u32[]', space=smem, size = 0x4, offset = 0x4, fixed_abs, tag = 'smem constant byte address 0x4 - core index']
  #allocation1 [shape = 'u32[144,128]{1,0:T(1,128)}', space=vmem, size = 0x12000, scoped, tag = 'internal scratch']
  %s0 = inlined_call_operand.vmem [shape: f32[2,8,32], index: 0, kind: input, shape index: {}]
  %s1 = inlined_call_operand.vmem [shape: f32[1,32], index: 1, kind: input, shape index: {}]
  %s2 = inlined_call_operand.vmem [shape: f32[1,32], index: 2, kind: input, shape index: {}]
  %s3 = inlined_call_operand.vmem [shape: f32[2,8,32], index: 3, kind: output, shape index: {}]
  %s4 = sld [smem:[#allocation0]]
  $region45: #{text_classification_forward.12} parent=0
    _
  %s6 = ssub.s32 1, %s4
  %s7 = scalar_select 0, %s6, %s4
  loop: start=0, step=1, limit=4
  $region2: #{text_classification_forward.12} parent=0 // loop_pre_header
    _
  $region3: #{text_classification_forward.12} parent=0 // loop_header
    %s9 = sphi 0, %s13
    %p10 = scmp.ge.s32.totalorder %s9, 4
    %s16 = sphi 0, %s28
    %s17 = sphi 0, %s24
    %s18 = sphi 0, %s16
    %s19 = sphi 0, %s17
    %s20 = sphi 0, %s18
    %s21 = sphi 0, %s19
    %s33 = sphi 0, %s35
    %s36 = sphi 0, %s33
    %s37 = sphi 0, %s36
    %s53 = sphi 0, %s37
    %s57 = sphi 0, %s57
    %s59 = sphi 0, %s57
    %s60 = sphi 0, %s59
    %s74 = sphi 0, %s60
    %s78 = sphi 0, %s78
    %s80 = sphi 0, %s78
    %s81 = sphi 0, %s80
    %s95 = sphi 0, %s81
    %s103 = sphi 0, %s105
    %s106 = sphi 0, %s103
    %s107 = sphi 0, %s106
    %s123 = sphi 0, %s107
  $region4: #{text_classification_forward.12} parent=0 // loop_header_branch
    %12 = sbr.rel (%p10) target = $region8
  $region5: #{text_classification_forward.12} parent=0 // loop_body
    %s14 = ssub.s32 %s9, 1
    %s15 = ssub.s32 %s9, 2
    %s22 = sadd.s32 1, %s17
    %p23 = scmp.ge.s32.totalorder %s22, 1
    %s24 = scalar_select %p23, 0, %s22
    %s25 = sadd.s32 1, %s16
    %s26 = scalar_select %p23, %s25, %s16
    %p27 = scmp.ge.s32.totalorder %s26, 2
    %s28 = scalar_select %p27, 0, %s26
    %s29 = ssub.s32 %s16, %s28
    %s30 = ssub.s32 %s17, %s24
    %s31 = sor.u32 %s29, %s30
    %p32 = scmp.eq.s32.totalorder %s31, 0
    %s34 = sadd.s32 %s33, 1
    %s35 = scalar_select %p32, %s33, %s34
    %p38 = pneg %p32
    %p39 = scmp.eq.s32.totalorder %s9, 1
    %p40 = por %p38, %p39
    %p41 = scmp.ne.s32.totalorder %s33, %s36
    %p42 = scmp.eq.s32.totalorder %s9, 0
    %p43 = por %p41, %p42
    %p44 = scmp.ne.s32.totalorder %s33, %s36
    %p45 = scmp.eq.s32.totalorder %s14, 1
    %p46 = por %p44, %p45
    %p47 = scmp.ne.s32.totalorder %s36, %s37
    %p48 = scmp.eq.s32.totalorder %s14, 0
    %p49 = por %p47, %p48
    %p50 = scmp.ne.s32.totalorder %s36, %s37
    %p51 = scmp.eq.s32.totalorder %s15, 1
    %p52 = por %p50, %p51
    %p54 = scmp.ne.s32.totalorder %s37, %s53
    %p55 = scmp.eq.s32.totalorder %s15, 0
    %p56 = por %p54, %p55
    %s58 = sadd.s32 %s57, 1
    %p61 = scmp.eq.s32.totalorder %s9, 1
    %p62 = scmp.ne.s32.totalorder %s57, %s59
    %p63 = scmp.eq.s32.totalorder %s9, 0
    %p64 = por %p62, %p63
    %p65 = scmp.ne.s32.totalorder %s57, %s59
    %p66 = scmp.eq.s32.totalorder %s14, 1
    %p67 = por %p65, %p66
    %p68 = scmp.ne.s32.totalorder %s59, %s60
    %p69 = scmp.eq.s32.totalorder %s14, 0
    %p70 = por %p68, %p69
    %p71 = scmp.ne.s32.totalorder %s59, %s60
    %p72 = scmp.eq.s32.totalorder %s15, 1
    %p73 = por %p71, %p72
    %p75 = scmp.ne.s32.totalorder %s60, %s74
    %p76 = scmp.eq.s32.totalorder %s15, 0
    %p77 = por %p75, %p76
    %s79 = sadd.s32 %s78, 1
    %p82 = scmp.eq.s32.totalorder %s9, 1
    %p83 = scmp.ne.s32.totalorder %s78, %s80
    %p84 = scmp.eq.s32.totalorder %s9, 0
    %p85 = por %p83, %p84
    %p86 = scmp.ne.s32.totalorder %s78, %s80
    %p87 = scmp.eq.s32.totalorder %s14, 1
    %p88 = por %p86, %p87
    %p89 = scmp.ne.s32.totalorder %s80, %s81
    %p90 = scmp.eq.s32.totalorder %s14, 0
    %p91 = por %p89, %p90
    %p92 = scmp.ne.s32.totalorder %s80, %s81
    %p93 = scmp.eq.s32.totalorder %s15, 1
    %p94 = por %p92, %p93
    %p96 = scmp.ne.s32.totalorder %s81, %s95
    %p97 = scmp.eq.s32.totalorder %s15, 0
    %p98 = por %p96, %p97
    %s99 = ssub.s32 %s16, %s28
    %s100 = ssub.s32 %s17, %s24
    %s101 = sor.u32 %s99, %s100
    %p102 = scmp.eq.s32.totalorder %s101, 0
    %s104 = sadd.s32 %s103, 1
    %s105 = scalar_select %p102, %s103, %s104
    %p108 = pneg %p102
    %p109 = scmp.eq.s32.totalorder %s9, 1
    %p110 = por %p108, %p109
    %p111 = scmp.ne.s32.totalorder %s103, %s106
    %p112 = scmp.eq.s32.totalorder %s9, 0
    %p113 = por %p111, %p112
    %p114 = scmp.ne.s32.totalorder %s103, %s106
    %p115 = scmp.eq.s32.totalorder %s14, 1
    %p116 = por %p114, %p115
    %p117 = scmp.ne.s32.totalorder %s106, %s107
    %p118 = scmp.eq.s32.totalorder %s14, 0
    %p119 = por %p117, %p118
    %p120 = scmp.ne.s32.totalorder %s106, %s107
    %p121 = scmp.eq.s32.totalorder %s15, 1
    %p122 = por %p120, %p121
    %p124 = scmp.ne.s32.totalorder %s107, %s123
    %p125 = scmp.eq.s32.totalorder %s15, 0
    %p126 = por %p124, %p125
    %p127 = scmp.le.s32.totalorder 1, %s9
    %p128 = scmp.lt.s32.totalorder %s9, 3
    %p129 = pnand %p127, %p128
    %p130 = pneg %p129
    // Predicated region
    $region9: #{text_classification_forward.12} parent=5 // pred_check
      _
    $region10: #{text_classification_forward.12} parent=5 // pred_check_branch
      %132 = sbr.rel (%p129) target = $region12
    $region11: #{text_classification_forward.12} parent=5 // pred_region
      %s133 = ssub.s32 %s9, 1
      // Predicated region
      $region13: #{text_classification_forward.12} parent=11 // pred_check
        %p134 = pneg %p70
      $region14: #{text_classification_forward.12} parent=11 // pred_check_branch
        %136 = sbr.rel (%p134) target = $region16
      $region15: #{text_classification_forward.12} parent=11 // pred_region
        _
      $region16: #{text_classification_forward.12} parent=11 // pred_fallthru
        _
      // Predicated region
      $region17: #{text_classification_forward.12} parent=11 // pred_check
        %p137 = pneg %p91
      $region18: #{text_classification_forward.12} parent=11 // pred_check_branch
        %139 = sbr.rel (%p137) target = $region20
      $region19: #{text_classification_forward.12} parent=11 // pred_region
        _
      $region20: #{text_classification_forward.12} parent=11 // pred_fallthru
        _
    $region12: #{text_classification_forward.12} parent=5 // pred_fallthru
      _
    %p140 = scmp.lt.s32.totalorder %s9, 2
    // Predicated region
    $region21: #{text_classification_forward.12} parent=5 // pred_check
      %p141 = pneg %p140
    $region22: #{text_classification_forward.12} parent=5 // pred_check_branch
      %143 = sbr.rel (%p141) target = $region24
    $region23: #{text_classification_forward.12} parent=5 // pred_region
      // Predicated region
      $region25: #{text_classification_forward.12} parent=23 // pred_check
        %p144 = pneg %p43
      $region26: #{text_classification_forward.12} parent=23 // pred_check_branch
        %146 = sbr.rel (%p144) target = $region28
      $region27: #{text_classification_forward.12} parent=23 // pred_region
        %p147 = scmp.lt.s32.totalorder %s16, 1
        %s148 = scalar_select %p147, %s16, 1
        %p149 = scmp.lt.s32.totalorder %s17, 0
        %s150 = scalar_select %p149, %s17, 0
        %s151 = sadd.s32 %s150, %s148
        %s152 = smul.addr %s151, 8
        %s153 = scalar_lea.vmem %s0, %s152
      $region28: #{text_classification_forward.12} parent=23 // pred_fallthru
        _
    $region24: #{text_classification_forward.12} parent=5 // pred_fallthru
      _
    %p154 = scmp.le.s32.totalorder 1, %s9
    %p155 = scmp.lt.s32.totalorder %s9, 3
    %p156 = pnand %p154, %p155
    %p157 = pneg %p156
    // Predicated region
    $region29: #{text_classification_forward.12} parent=5 // pred_check
      _
    $region30: #{text_classification_forward.12} parent=5 // pred_check_branch
      %159 = sbr.rel (%p156) target = $region32
    $region31: #{text_classification_forward.12} parent=5 // pred_region
      %s160 = ssub.s32 %s9, 1
      %p161 = scmp.lt.s32.totalorder %s18, 1
      %s162 = scalar_select %p161, %s18, 1
      %p163 = scmp.lt.s32.totalorder %s19, 0
      %s164 = scalar_select %p163, %s19, 0
      %s165 = sadd.s32 %s164, %s162
      %s166 = smul.addr %s165, 8
      %s167 = scalar_lea.vmem %s0, %s166
      %p168 = pneg %p49
      %p169 = pneg %p46
      %p170 = pneg %p70
      %p171 = pneg %p67
      %p172 = pneg %p91
      %p173 = pneg %p88
      %p174 = pneg %p119
      %p175 = pneg %p116
      %p176 = scmp.lt.s32.totalorder %s18, 1
      %s177 = scalar_select %p176, %s18, 1
      %p178 = scmp.lt.s32.totalorder %s19, 0
      %s179 = scalar_select %p178, %s19, 0
      %s180 = sadd.s32 %s179, %s177
      %s181 = smul.addr %s180, 8
      %s182 = scalar_lea.vmem %s3, %s181
      %p183 = scmp.lt.s32.totalorder %s18, 1
      %s184 = scalar_select %p183, %s18, 1
      %p185 = scmp.lt.s32.totalorder %s19, 0
      %s186 = scalar_select %p185, %s19, 0
      %s187 = sadd.s32 %s186, %s184
      %s188 = smul.addr %s187, 8
      %s189 = scalar_lea.vmem %s0, %s188
      %p190 = scmp.lt.s32.totalorder %s18, 1
      %s191 = scalar_select %p190, %s18, 1
      %p192 = scmp.lt.s32.totalorder %s19, 0
      %s193 = scalar_select %p192, %s19, 0
      %s194 = sadd.s32 %s193, %s191
      %s195 = smul.addr %s194, 8
      %s196 = scalar_lea.vmem %s3, %s195
      %v197 = vld [vmem:[%s189] sm:$0xff]
      %vm198 = vcmask 261120
      %v199 = vsel %vm198, %v197, 0.0
      %200 = vadd.xlane.f32.xlu0 %v199
      %v201 = vpop.xlane.xlu0 %200
      %v202 = vrcp.pop 32.0
      %v203 = vmul.f32 %v201, %v202
      %v204 = vsub.f32 %v197, %v203
      %v205 = vmul.f32 %v204, %v204
      %v206 = vsel %vm198, %v205, 0.0
      %207 = vadd.xlane.f32.xlu0 %v206
      %v208 = vpop.xlane.xlu0 %207
      %v209 = vmul.f32 %v208, %v202
      %v210 = vadd.f32 %v209, 1e-12
      %v211 = vrsqrt.pop %v210
      %v212 = vmul.f32 %v204, %v211
      %v213 = vld [vmem:[%s1] sm:$0x1]
      %v215 = vlaneseq
      %v216 = vshrl.u32 %v215, 7
      %v217 = vsub.s32 0, %v216
      %v218 = vrot.slane %v213, %v217
      %v220 = vmul.f32 %v212, %v218
      %v221 = vld [vmem:[%s2] sm:$0x1]
      %v223 = vlaneseq
      %v224 = vshrl.u32 %v223, 7
      %v225 = vsub.s32 0, %v224
      %v226 = vrot.slane %v221, %v225
      %v228 = vadd.f32 %v220, %v226
      %229 = vst.msk [vmem:[%s196] sm:$0xff] %vm198, %v228
      %p230 = scmp.lt.s32.totalorder %s18, 1
      %s231 = scalar_select %p230, %s18, 1
      %p232 = scmp.lt.s32.totalorder %s19, 0
      %s233 = scalar_select %p232, %s19, 0
      %s234 = sadd.s32 %s233, %s231
      %s235 = smul.addr %s234, 8
      %s236 = scalar_lea.vmem %s3, %s235
      // Predicated region
      $region33: #{text_classification_forward.12} parent=31 // pred_check
        %p237 = pneg %p116
      $region34: #{text_classification_forward.12} parent=31 // pred_check_branch
        %239 = sbr.rel (%p237) target = $region36
      $region35: #{text_classification_forward.12} parent=31 // pred_region
        _
      $region36: #{text_classification_forward.12} parent=31 // pred_fallthru
        _
    $region32: #{text_classification_forward.12} parent=5 // pred_fallthru
      _
    %p240 = scmp.le.s32.totalorder 2, %s9
    // Predicated region
    $region37: #{text_classification_forward.12} parent=5 // pred_check
      %p241 = pneg %p240
    $region38: #{text_classification_forward.12} parent=5 // pred_check_branch
      %243 = sbr.rel (%p241) target = $region40
    $region39: #{text_classification_forward.12} parent=5 // pred_region
      %s244 = ssub.s32 %s9, 2
      // Predicated region
      $region41: #{text_classification_forward.12} parent=39 // pred_check
        %p245 = pneg %p122
      $region42: #{text_classification_forward.12} parent=39 // pred_check_branch
        %247 = sbr.rel (%p245) target = $region44
      $region43: #{text_classification_forward.12} parent=39 // pred_region
        %p248 = scmp.lt.s32.totalorder %s20, 1
        %s249 = scalar_select %p248, %s20, 1
        %p250 = scmp.lt.s32.totalorder %s21, 0
        %s251 = scalar_select %p250, %s21, 0
        %s252 = sadd.s32 %s251, %s249
        %s253 = smul.addr %s252, 8
        %s254 = scalar_lea.vmem %s3, %s253
      $region44: #{text_classification_forward.12} parent=39 // pred_fallthru
        _
    $region40: #{text_classification_forward.12} parent=5 // pred_fallthru
      _
  $region6: #{text_classification_forward.12} parent=0 // loop_footer
    %s13 = sadd.s32 1, %s9
  $region7: #{text_classification_forward.12} parent=0 // loop_footer_branch
    %8 = sbr.rel target = $region3
  $region8: #{text_classification_forward.12} parent=0 // loop_exit
    _

// kernel: text_classification_forward.14
$region0: #{text_classification_forward.14}
  #allocation0 [shape = 'u32[]', space=smem, size = 0x4, offset = 0x4, fixed_abs, tag = 'smem constant byte address 0x4 - core index']
  #allocation1 [shape = 'u32[144,128]{1,0:T(1,128)}', space=vmem, size = 0x12000, scoped, tag = 'internal scratch']
  #allocation2 [shape = 'f32[8,1]{1,0:T(8,128)}', space=vmem, size = 0x1000, scoped, tag = 'scratch operand']
  #allocation3 [shape = 'f32[8,1]{1,0:T(8,128)}', space=vmem, size = 0x1000, scoped, tag = 'scratch operand']
  #allocation4 [shape = 'f32[8,16]{1,0:T(8,128)}', space=vmem, size = 0x1000, scoped, tag = 'scratch operand']
  %s0 = inlined_call_operand.vmem [shape: f32[3,2,2,8,16], index: 0, kind: input, shape index: {}, may-alias: {0,1,2}]
  %s1 = inlined_call_operand.vmem [shape: f32[3,2,2,8,16], index: 1, kind: input, shape index: {}, may-alias: {0,1,2}]
  %s2 = inlined_call_operand.vmem [shape: f32[3,2,2,8,16], index: 2, kind: input, shape index: {}, may-alias: {0,1,2}]
  %s3 = inlined_call_operand.vmem [shape: f32[2,1,8], index: 3, kind: input, shape index: {}]
  %s4 = inlined_call_operand.vmem [shape: f32[2,2,8,16], index: 4, kind: output, shape index: {}]
  %s5 = sld [smem:[#allocation0]]
  $region57: #{text_classification_forward.14} parent=0
    _
  %s7 = ssub.s32 1, %s5
  %s8 = scalar_select 0, %s7, %s5
  loop: start=0, step=1, limit=6
  $region2: #{text_classification_forward.14} parent=0 // loop_pre_header
    _
  $region3: #{text_classification_forward.14} parent=0 // loop_header
    %s10 = sphi 0, %s14
    %p11 = scmp.ge.s32.totalorder %s10, 6
    %s17 = sphi 0, %s43
    %s18 = sphi 0, %s39
    %s19 = sphi 0, %s35
    %s20 = sphi 0, %s31
    %s21 = sphi 0, %s17
    %s22 = sphi 0, %s18
    %s23 = sphi 0, %s19
    %s24 = sphi 0, %s20
    %s25 = sphi 0, %s21
    %s26 = sphi 0, %s22
    %s27 = sphi 0, %s23
    %s28 = sphi 0, %s24
    %s50 = sphi 0, %s52
    %s53 = sphi 0, %s50
    %s54 = sphi 0, %s53
    %s70 = sphi 0, %s54
    %s80 = sphi 0, %s82
    %s83 = sphi 0, %s80
    %s84 = sphi 0, %s83
    %s100 = sphi 0, %s84
    %s110 = sphi 0, %s112
    %s113 = sphi 0, %s110
    %s114 = sphi 0, %s113
    %s130 = sphi 0, %s114
    %s138 = sphi 0, %s140
    %s141 = sphi 0, %s138
    %s142 = sphi 0, %s141
    %s158 = sphi 0, %s142
    %s168 = sphi 0, %s170
    %s171 = sphi 0, %s168
    %s172 = sphi 0, %s171
    %s188 = sphi 0, %s172
  $region4: #{text_classification_forward.14} parent=0 // loop_header_branch
    %13 = sbr.rel (%p11) target = $region8
  $region5: #{text_classification_forward.14} parent=0 // loop_body
    %s15 = ssub.s32 %s10, 1
    %s16 = ssub.s32 %s10, 2
    %s29 = sadd.s32 1, %s20
    %p30 = scmp.ge.s32.totalorder %s29, 1
    %s31 = scalar_select %p30, 0, %s29
    %s32 = sadd.s32 1, %s19
    %s33 = scalar_select %p30, %s32, %s19
    %p34 = scmp.ge.s32.totalorder %s33, 1
    %s35 = scalar_select %p34, 0, %s33
    %s36 = sadd.s32 1, %s18
    %s37 = scalar_select %p34, %s36, %s18
    %p38 = scmp.ge.s32.totalorder %s37, 2
    %s39 = scalar_select %p38, 0, %s37
    %s40 = sadd.s32 1, %s17
    %s41 = scalar_select %p38, %s40, %s17
    %p42 = scmp.ge.s32.totalorder %s41, 2
    %s43 = scalar_select %p42, 0, %s41
    %s44 = ssub.s32 %s17, %s43
    %s45 = ssub.s32 %s18, %s39
    %s46 = sor.u32 %s44, %s45
    %s47 = ssub.s32 %s19, %s35
    %s48 = sor.u32 %s46, %s47
    %p49 = scmp.eq.s32.totalorder %s48, 0
    %s51 = sadd.s32 %s50, 1
    %s52 = scalar_select %p49, %s50, %s51
    %p55 = pneg %p49
    %p56 = scmp.eq.s32.totalorder %s10, 3
    %p57 = por %p55, %p56
    %p58 = scmp.ne.s32.totalorder %s50, %s53
    %p59 = scmp.eq.s32.totalorder %s10, 0
    %p60 = por %p58, %p59
    %p61 = scmp.ne.s32.totalorder %s50, %s53
    %p62 = scmp.eq.s32.totalorder %s15, 3
    %p63 = por %p61, %p62
    %p64 = scmp.ne.s32.totalorder %s53, %s54
    %p65 = scmp.eq.s32.totalorder %s15, 0
    %p66 = por %p64, %p65
    %p67 = scmp.ne.s32.totalorder %s53, %s54
    %p68 = scmp.eq.s32.totalorder %s16, 3
    %p69 = por %p67, %p68
    %p71 = scmp.ne.s32.totalorder %s54, %s70
    %p72 = scmp.eq.s32.totalorder %s16, 0
    %p73 = por %p71, %p72
    %s74 = ssub.s32 %s17, %s43
    %s75 = ssub.s32 %s18, %s39
    %s76 = sor.u32 %s74, %s75
    %s77 = ssub.s32 %s20, %s31
    %s78 = sor.u32 %s76, %s77
    %p79 = scmp.eq.s32.totalorder %s78, 0
    %s81 = sadd.s32 %s80, 1
    %s82 = scalar_select %p79, %s80, %s81
    %p85 = pneg %p79
    %p86 = scmp.eq.s32.totalorder %s10, 3
    %p87 = por %p85, %p86
    %p88 = scmp.ne.s32.totalorder %s80, %s83
    %p89 = scmp.eq.s32.totalorder %s10, 0
    %p90 = por %p88, %p89
    %p91 = scmp.ne.s32.totalorder %s80, %s83
    %p92 = scmp.eq.s32.totalorder %s15, 3
    %p93 = por %p91, %p92
    %p94 = scmp.ne.s32.totalorder %s83, %s84
    %p95 = scmp.eq.s32.totalorder %s15, 0
    %p96 = por %p94, %p95
    %p97 = scmp.ne.s32.totalorder %s83, %s84
    %p98 = scmp.eq.s32.totalorder %s16, 3
    %p99 = por %p97, %p98
    %p101 = scmp.ne.s32.totalorder %s84, %s100
    %p102 = scmp.eq.s32.totalorder %s16, 0
    %p103 = por %p101, %p102
    %s104 = ssub.s32 %s17, %s43
    %s105 = ssub.s32 %s18, %s39
    %s106 = sor.u32 %s104, %s105
    %s107 = ssub.s32 %s20, %s31
    %s108 = sor.u32 %s106, %s107
    %p109 = scmp.eq.s32.totalorder %s108, 0
    %s111 = sadd.s32 %s110, 1
    %s112 = scalar_select %p109, %s110, %s111
    %p115 = pneg %p109
    %p116 = scmp.eq.s32.totalorder %s10, 3
    %p117 = por %p115, %p116
    %p118 = scmp.ne.s32.totalorder %s110, %s113
    %p119 = scmp.eq.s32.totalorder %s10, 0
    %p120 = por %p118, %p119
    %p121 = scmp.ne.s32.totalorder %s110, %s113
    %p122 = scmp.eq.s32.totalorder %s15, 3
    %p123 = por %p121, %p122
    %p124 = scmp.ne.s32.totalorder %s113, %s114
    %p125 = scmp.eq.s32.totalorder %s15, 0
    %p126 = por %p124, %p125
    %p127 = scmp.ne.s32.totalorder %s113, %s114
    %p128 = scmp.eq.s32.totalorder %s16, 3
    %p129 = por %p127, %p128
    %p131 = scmp.ne.s32.totalorder %s114, %s130
    %p132 = scmp.eq.s32.totalorder %s16, 0
    %p133 = por %p131, %p132
    %s134 = ssub.s32 %s17, %s43
    %s135 = ssub.s32 %s20, %s31
    %s136 = sor.u32 %s134, %s135
    %p137 = scmp.eq.s32.totalorder %s136, 0
    %s139 = sadd.s32 %s138, 1
    %s140 = scalar_select %p137, %s138, %s139
    %p143 = pneg %p137
    %p144 = scmp.eq.s32.totalorder %s10, 3
    %p145 = por %p143, %p144
    %p146 = scmp.ne.s32.totalorder %s138, %s141
    %p147 = scmp.eq.s32.totalorder %s10, 0
    %p148 = por %p146, %p147
    %p149 = scmp.ne.s32.totalorder %s138, %s141
    %p150 = scmp.eq.s32.totalorder %s15, 3
    %p151 = por %p149, %p150
    %p152 = scmp.ne.s32.totalorder %s141, %s142
    %p153 = scmp.eq.s32.totalorder %s15, 0
    %p154 = por %p152, %p153
    %p155 = scmp.ne.s32.totalorder %s141, %s142
    %p156 = scmp.eq.s32.totalorder %s16, 3
    %p157 = por %p155, %p156
    %p159 = scmp.ne.s32.totalorder %s142, %s158
    %p160 = scmp.eq.s32.totalorder %s16, 0
    %p161 = por %p159, %p160
    %s162 = ssub.s32 %s17, %s43
    %s163 = ssub.s32 %s18, %s39
    %s164 = sor.u32 %s162, %s163
    %s165 = ssub.s32 %s19, %s35
    %s166 = sor.u32 %s164, %s165
    %p167 = scmp.eq.s32.totalorder %s166, 0
    %s169 = sadd.s32 %s168, 1
    %s170 = scalar_select %p167, %s168, %s169
    %p173 = pneg %p167
    %p174 = scmp.eq.s32.totalorder %s10, 3
    %p175 = por %p173, %p174
    %p176 = scmp.ne.s32.totalorder %s168, %s171
    %p177 = scmp.eq.s32.totalorder %s10, 0
    %p178 = por %p176, %p177
    %p179 = scmp.ne.s32.totalorder %s168, %s171
    %p180 = scmp.eq.s32.totalorder %s15, 3
    %p181 = por %p179, %p180
    %p182 = scmp.ne.s32.totalorder %s171, %s172
    %p183 = scmp.eq.s32.totalorder %s15, 0
    %p184 = por %p182, %p183
    %p185 = scmp.ne.s32.totalorder %s171, %s172
    %p186 = scmp.eq.s32.totalorder %s16, 3
    %p187 = por %p185, %p186
    %p189 = scmp.ne.s32.totalorder %s172, %s188
    %p190 = scmp.eq.s32.totalorder %s16, 0
    %p191 = por %p189, %p190
    %p192 = scmp.le.s32.totalorder 1, %s10
    %p193 = scmp.lt.s32.totalorder %s10, 5
    %p194 = pnand %p192, %p193
    %p195 = pneg %p194
    // Predicated region
    $region9: #{text_classification_forward.14} parent=5 // pred_check
      _
    $region10: #{text_classification_forward.14} parent=5 // pred_check_branch
      %197 = sbr.rel (%p194) target = $region12
    $region11: #{text_classification_forward.14} parent=5 // pred_region
      %s198 = ssub.s32 %s10, 1
    $region12: #{text_classification_forward.14} parent=5 // pred_fallthru
      _
    %p199 = scmp.lt.s32.totalorder %s10, 4
    // Predicated region
    $region13: #{text_classification_forward.14} parent=5 // pred_check
      %p200 = pneg %p199
    $region14: #{text_classification_forward.14} parent=5 // pred_check_branch
      %202 = sbr.rel (%p200) target = $region16
    $region15: #{text_classification_forward.14} parent=5 // pred_region
      // Predicated region
      $region17: #{text_classification_forward.14} parent=15 // pred_check
        %p203 = pneg %p60
      $region18: #{text_classification_forward.14} parent=15 // pred_check_branch
        %205 = sbr.rel (%p203) target = $region20
      $region19: #{text_classification_forward.14} parent=15 // pred_region
        %p206 = scmp.lt.s32.totalorder %s17, 1
        %s207 = scalar_select %p206, %s17, 1
        %p208 = scmp.lt.s32.totalorder %s18, 1
        %s209 = scalar_select %p208, %s18, 1
        %p210 = scmp.lt.s32.totalorder %s19, 0
        %s211 = scalar_select %p210, %s19, 0
        %s212 = sadd.s32 %s211, %s209
        %s213 = smul.addr %s207, 2
        %s214 = sadd.s32 %s212, %s213
        %s215 = smul.addr %s214, 8
        %s216 = scalar_lea.vmem %s0, %s215
      $region20: #{text_classification_forward.14} parent=15 // pred_fallthru
        _
      // Predicated region
      $region21: #{text_classification_forward.14} parent=15 // pred_check
        %p217 = pneg %p90
      $region22: #{text_classification_forward.14} parent=15 // pred_check_branch
        %219 = sbr.rel (%p217) target = $region24
      $region23: #{text_classification_forward.14} parent=15 // pred_region
        %p220 = scmp.lt.s32.totalorder %s17, 1
        %s221 = scalar_select %p220, %s17, 1
        %p222 = scmp.lt.s32.totalorder %s18, 1
        %s223 = scalar_select %p222, %s18, 1
        %p224 = scmp.lt.s32.totalorder %s20, 0
        %s225 = scalar_select %p224, %s20, 0
        %s226 = sadd.s32 %s225, %s223
        %s227 = smul.addr %s221, 2
        %s228 = sadd.s32 %s226, %s227
        %s229 = sadd.s32 %s228, 4
        %s230 = smul.addr %s229, 8
        %s231 = scalar_lea.vmem %s1, %s230
      $region24: #{text_classification_forward.14} parent=15 // pred_fallthru
        _
      // Predicated region
      $region25: #{text_classification_forward.14} parent=15 // pred_check
        %p232 = pneg %p120
      $region26: #{text_classification_forward.14} parent=15 // pred_check_branch
        %234 = sbr.rel (%p232) target = $region28
      $region27: #{text_classification_forward.14} parent=15 // pred_region
        %p235 = scmp.lt.s32.totalorder %s17, 1
        %s236 = scalar_select %p235, %s17, 1
        %p237 = scmp.lt.s32.totalorder %s18, 1
        %s238 = scalar_select %p237, %s18, 1
        %p239 = scmp.lt.s32.totalorder %s20, 0
        %s240 = scalar_select %p239, %s20, 0
        %s241 = sadd.s32 %s240, %s238
        %s242 = smul.addr %s236, 2
        %s243 = sadd.s32 %s241, %s242
        %s244 = sadd.s32 %s243, 8
        %s245 = smul.addr %s244, 8
        %s246 = scalar_lea.vmem %s2, %s245
      $region28: #{text_classification_forward.14} parent=15 // pred_fallthru
        _
      // Predicated region
      $region29: #{text_classification_forward.14} parent=15 // pred_check
        %p247 = pneg %p148
      $region30: #{text_classification_forward.14} parent=15 // pred_check_branch
        %249 = sbr.rel (%p247) target = $region32
      $region31: #{text_classification_forward.14} parent=15 // pred_region
        %p250 = scmp.lt.s32.totalorder %s17, 1
        %s251 = scalar_select %p250, %s17, 1
        %p252 = scmp.lt.s32.totalorder %s20, 0
        %s253 = scalar_select %p252, %s20, 0
        %s254 = sadd.s32 %s253, %s251
        %s255 = scalar_lea.vmem %s3, %s254
      $region32: #{text_classification_forward.14} parent=15 // pred_fallthru
        _
    $region16: #{text_classification_forward.14} parent=5 // pred_fallthru
      _
    %p256 = scmp.le.s32.totalorder 1, %s10
    %p257 = scmp.lt.s32.totalorder %s10, 5
    %p258 = pnand %p256, %p257
    %p259 = pneg %p258
    // Predicated region
    $region33: #{text_classification_forward.14} parent=5 // pred_check
      _
    $region34: #{text_classification_forward.14} parent=5 // pred_check_branch
      %261 = sbr.rel (%p258) target = $region36
    $region35: #{text_classification_forward.14} parent=5 // pred_region
      %s262 = ssub.s32 %s10, 1
      %p263 = scmp.lt.s32.totalorder %s21, 1
      %s264 = scalar_select %p263, %s21, 1
      %p265 = scmp.lt.s32.totalorder %s22, 1
      %s266 = scalar_select %p265, %s22, 1
      %p267 = scmp.lt.s32.totalorder %s23, 0
      %s268 = scalar_select %p267, %s23, 0
      %s269 = sadd.s32 %s268, %s266
      %s270 = smul.addr %s264, 2
      %s271 = sadd.s32 %s269, %s270
      %s272 = smul.addr %s271, 8
      %s273 = scalar_lea.vmem %s0, %s272
      %p274 = pneg %p66
      %p275 = pneg %p63
      %p276 = scmp.lt.s32.totalorder %s21, 1
      %s277 = scalar_select %p276, %s21, 1
      %p278 = scmp.lt.s32.totalorder %s22, 1
      %s279 = scalar_select %p278, %s22, 1
      %p280 = scmp.lt.s32.totalorder %s24, 0
      %s281 = scalar_select %p280, %s24, 0
      %s282 = sadd.s32 %s281, %s279
      %s283 = smul.addr %s277, 2
      %s284 = sadd.s32 %s282, %s283
      %s285 = sadd.s32 %s284, 4
      %s286 = smul.addr %s285, 8
      %s287 = scalar_lea.vmem %s1, %s286
      %p288 = pneg %p96
      %p289 = pneg %p93
      %p290 = scmp.lt.s32.totalorder %s21, 1
      %s291 = scalar_select %p290, %s21, 1
      %p292 = scmp.lt.s32.totalorder %s22, 1
      %s293 = scalar_select %p292, %s22, 1
      %p294 = scmp.lt.s32.totalorder %s24, 0
      %s295 = scalar_select %p294, %s24, 0
      %s296 = sadd.s32 %s295, %s293
      %s297 = smul.addr %s291, 2
      %s298 = sadd.s32 %s296, %s297
      %s299 = sadd.s32 %s298, 8
      %s300 = smul.addr %s299, 8
      %s301 = scalar_lea.vmem %s2, %s300
      %p302 = pneg %p126
      %p303 = pneg %p123
      %p304 = scmp.lt.s32.totalorder %s21, 1
      %s305 = scalar_select %p304, %s21, 1
      %p306 = scmp.lt.s32.totalorder %s24, 0
      %s307 = scalar_select %p306, %s24, 0
      %s308 = sadd.s32 %s307, %s305
      %s309 = scalar_lea.vmem %s3, %s308
      %p310 = pneg %p154
      %p311 = pneg %p151
      %p312 = pneg %p184
      %p313 = pneg %p181
      %p314 = scmp.lt.s32.totalorder %s21, 1
      %s315 = scalar_select %p314, %s21, 1
      %p316 = scmp.lt.s32.totalorder %s22, 1
      %s317 = scalar_select %p316, %s22, 1
      %p318 = scmp.lt.s32.totalorder %s23, 0
      %s319 = scalar_select %p318, %s23, 0
      %s320 = sadd.s32 %s319, %s317
      %s321 = smul.addr %s315, 2
      %s322 = sadd.s32 %s320, %s321
      %s323 = smul.addr %s322, 8
      %s324 = scalar_lea.vmem %s4, %s323
      %p325 = scmp.lt.s32.totalorder %s21, 1
      %s326 = scalar_select %p325, %s21, 1
      %p327 = scmp.lt.s32.totalorder %s22, 1
      %s328 = scalar_select %p327, %s22, 1
      %p329 = scmp.lt.s32.totalorder %s23, 0
      %s330 = scalar_select %p329, %s23, 0
      %s331 = sadd.s32 %s330, %s328
      %s332 = smul.addr %s326, 2
      %s333 = sadd.s32 %s331, %s332
      %s334 = smul.addr %s333, 8
      %s335 = scalar_lea.vmem %s0, %s334
      %p336 = scmp.lt.s32.totalorder %s21, 1
      %s337 = scalar_select %p336, %s21, 1
      %p338 = scmp.lt.s32.totalorder %s22, 1
      %s339 = scalar_select %p338, %s22, 1
      %p340 = scmp.lt.s32.totalorder %s24, 0
      %s341 = scalar_select %p340, %s24, 0
      %s342 = sadd.s32 %s341, %s339
      %s343 = smul.addr %s337, 2
      %s344 = sadd.s32 %s342, %s343
      %s345 = sadd.s32 %s344, 4
      %s346 = smul.addr %s345, 8
      %s347 = scalar_lea.vmem %s1, %s346
      %p348 = scmp.lt.s32.totalorder %s21, 1
      %s349 = scalar_select %p348, %s21, 1
      %p350 = scmp.lt.s32.totalorder %s22, 1
      %s351 = scalar_select %p350, %s22, 1
      %p352 = scmp.lt.s32.totalorder %s24, 0
      %s353 = scalar_select %p352, %s24, 0
      %s354 = sadd.s32 %s353, %s351
      %s355 = smul.addr %s349, 2
      %s356 = sadd.s32 %s354, %s355
      %s357 = sadd.s32 %s356, 8
      %s358 = smul.addr %s357, 8
      %s359 = scalar_lea.vmem %s2, %s358
      %p360 = scmp.lt.s32.totalorder %s21, 1
      %s361 = scalar_select %p360, %s21, 1
      %p362 = scmp.lt.s32.totalorder %s24, 0
      %s363 = scalar_select %p362, %s24, 0
      %s364 = sadd.s32 %s363, %s361
      %s365 = scalar_lea.vmem %s3, %s364
      %p366 = scmp.lt.s32.totalorder %s21, 1
      %s367 = scalar_select %p366, %s21, 1
      %p368 = scmp.lt.s32.totalorder %s22, 1
      %s369 = scalar_select %p368, %s22, 1
      %p370 = scmp.lt.s32.totalorder %s23, 0
      %s371 = scalar_select %p370, %s23, 0
      %s372 = sadd.s32 %s371, %s369
      %s373 = smul.addr %s367, 2
      %s374 = sadd.s32 %s372, %s373
      %s375 = smul.addr %s374, 8
      %s376 = scalar_lea.vmem %s4, %s375
      %p378 = scmp.eq.s32.totalorder %s24, 0
      // Predicated region
      $region37: #{text_classification_forward.14} parent=35 // pred_check
        %p379 = pneg %p378
      $region38: #{text_classification_forward.14} parent=35 // pred_check_branch
        %381 = sbr.rel (%p379) target = $region40
      $region39: #{text_classification_forward.14} parent=35 // pred_region
        %vm382 = vcmask 7168
        %383 = vst.msk [vmem:[#allocation2] sm:$0xff] %vm382, -1e+30
        %384 = vst.msk [vmem:[#allocation3] sm:$0xff] %vm382, 0.0
        %vm385 = vcmask 130048
        %386 = vst.msk [vmem:[#allocation4] sm:$0xff] %vm385, 0.0
      $region40: #{text_classification_forward.14} parent=35 // pred_fallthru
        _
      %v387 = vld [vmem:[%s335] sm:$0xff]
      %v388 = vmul.f32 %v387, 0.25
      %v389 = vpack.c.bf16 %v388, %v388
      %v390 = vld [vmem:[%s347] sm:$0xff]
      %v391 = vpack.c.bf16 %v390, %v390
      %v392 = vld [vmem:[%s359] sm:$0xff]
      %v393 = vpack.c.bf16 %v392, %v392
      %v394 = vld [vmem:[%s365] sm:$0x1]
      %v396 = vlaneseq
      %v397 = vshrl.u32 %v396, 7
      %v398 = vsub.s32 0, %v397
      %v399 = vrot.slane %v394, %v398
      %vm401 = vcmask 130048
      %v403 = vsel %vm401, %v389, 0
      %v406 = vsel %vm401, %v391, 0
      %408 = vmatprep.subr.bf16.mxu0 0
      %409 = vmatpush1.bf16.xpose.msra.mxu0 0
      %410 = vmatprep.subr.bf16.mxu0 0
      %411 = vmatpush1.bf16.xpose.msra.mxu0 0
      %412 = vmatprep.subr.bf16.mxu0 0
      %413 = vmatpush1.bf16.xpose.msra.mxu0 0
      %414 = vmatprep.subr.bf16.mxu0 0
      %415 = vmatpush1.bf16.xpose.msra.mxu0 0
      %416 = vmatprep.subr.bf16.mxu0 0
      %417 = vmatpush1.bf16.xpose.msra.mxu0 0
      %418 = vmatprep.subr.bf16.mxu0 0
      %419 = vmatpush1.bf16.xpose.msra.mxu0 0
      %420 = vmatprep.subr.bf16.mxu0 0
      %421 = vmatpush1.bf16.xpose.msra.mxu0 0
      %422 = vmatprep.subr.bf16.mxu0 0
      %423 = vmatpush1.bf16.xpose.msra.mxu0 %v406
      %424 = vmatprep.subr.bf16.mxu0 0
      %425 = vmatpush2.bf16.xpose.msra.mxu0 0
      %426 = vmatprep.subr.bf16.mxu0 0
      %427 = vmatpush2.bf16.xpose.msra.mxu0 0
      %428 = vmatprep.subr.bf16.mxu0 0
      %429 = vmatpush2.bf16.xpose.msra.mxu0 0
      %430 = vmatprep.subr.bf16.mxu0 0
      %431 = vmatpush2.bf16.xpose.msra.mxu0 0
      %432 = vmatprep.subr.bf16.mxu0 0
      %433 = vmatpush2.bf16.xpose.msra.mxu0 0
      %434 = vmatprep.subr.bf16.mxu0 0
      %435 = vmatpush2.bf16.xpose.msra.mxu0 0
      %436 = vmatprep.subr.bf16.mxu0 0
      %437 = vmatpush2.bf16.xpose.msra.mxu0 0
      %438 = vmatprep.subr.bf16.mxu0 0
      %439 = vmatpush2.bf16.xpose.msra.mxu0 0
      %440 = vmatprep.mubr.bf16.mxu0 0
      %441 = vmatmul.mubr.bf16.gmra.mxu0 %v403
      %v442 = vpop.f32.mrf.mxu0
      %v443 = vadd.f32 %v399, %v442
      %v444 = vpop.f32.mrf.mxu0
      %v445 = vpop.f32.mrf.mxu0
      %v446 = vpop.f32.mrf.mxu0
      %447 = vdwg.mxu0
      %v448 = vld [vmem:[#allocation2] sm:$0xff]
      %vm449 = vcmask 64512
      %v450 = vsel %vm449, %v443, -inf
      %451 = vmax.xlane.f32.xlu0 %v450
      %v452 = vpop.xlane.xlu0 %451
      %v453 = vmax.f32 %v448, %v452
      %v454 = vsub.f32 %v448, %v453
      %v455 = vmul.f32 %v454, 1.442695
      %v456 = vpow.pop %v455
      %458 = vset.pattern.permute.xlu0 0
      %459 = vperm.xlu0 %458, %v453
      %v460 = vpop.permute.xlu0 %459
      %v462 = vsub.f32 %v443, %v460
      %v463 = vmul.f32 %v462, 1.442695
      %v464 = vpow.pop %v463
      %v465 = vld [vmem:[#allocation3] sm:$0xff]
      %v466 = vmul.f32 %v456, %v465
      %v467 = vsel %vm449, %v464, 0.0
      %468 = vadd.xlane.f32.xlu0 %v467
      %v469 = vpop.xlane.xlu0 %468
      %v470 = vadd.f32 %v466, %v469
      %vm471 = vcmask 7168
      %472 = vst.msk [vmem:[#allocation3] sm:$0xff] %vm471, %v470
      %v473 = vld [vmem:[#allocation4] sm:$0xff]
      %475 = vset.pattern.permute.xlu0 0
      %476 = vperm.xlu0 %475, %v456
      %v477 = vpop.permute.xlu0 %476
      %v479 = vmul.f32 %v477, %v473
      %v480 = vpack.c.bf16 %v464, %v464
      %v482 = vsel %vm449, %v480, 0
      %vm484 = vcmask 1043456
      %v486 = vsel %vm484, %v393, 0
      %488 = vmatprep.subr.bf16.mxu0 0
      %489 = vmatpush1.bf16.msra.mxu0 0
      %490 = vmatprep.subr.bf16.mxu0 0
      %491 = vmatpush1.bf16.msra.mxu0 0
      %492 = vmatprep.subr.bf16.mxu0 0
      %493 = vmatpush1.bf16.msra.mxu0 0
      %494 = vmatprep.subr.bf16.mxu0 0
      %495 = vmatpush1.bf16.msra.mxu0 0
      %496 = vmatprep.subr.bf16.mxu0 0
      %497 = vmatpush1.bf16.msra.mxu0 0
      %498 = vmatprep.subr.bf16.mxu0 0
      %499 = vmatpush1.bf16.msra.mxu0 0
      %500 = vmatprep.subr.bf16.mxu0 0
      %501 = vmatpush1.bf16.msra.mxu0 0
      %502 = vmatprep.subr.bf16.mxu0 0
      %503 = vmatpush1.bf16.msra.mxu0 %v486
      %504 = vmatprep.subr.bf16.mxu0 0
      %505 = vmatpush2.bf16.msra.mxu0 0
      %506 = vmatprep.subr.bf16.mxu0 0
      %507 = vmatpush2.bf16.msra.mxu0 0
      %508 = vmatprep.subr.bf16.mxu0 0
      %509 = vmatpush2.bf16.msra.mxu0 0
      %510 = vmatprep.subr.bf16.mxu0 0
      %511 = vmatpush2.bf16.msra.mxu0 0
      %512 = vmatprep.subr.bf16.mxu0 0
      %513 = vmatpush2.bf16.msra.mxu0 0
      %514 = vmatprep.subr.bf16.mxu0 0
      %515 = vmatpush2.bf16.msra.mxu0 0
      %516 = vmatprep.subr.bf16.mxu0 0
      %517 = vmatpush2.bf16.msra.mxu0 0
      %518 = vmatprep.subr.bf16.mxu0 0
      %519 = vmatpush2.bf16.msra.mxu0 0
      %520 = vmatprep.mubr.bf16.mxu0 0
      %521 = vmatmul.mubr.bf16.gmra.mxu0 %v482
      %v522 = vpop.f32.mrf.mxu0
      %v523 = vadd.f32 0.0, %v522
      %v524 = vpop.f32.mrf.mxu0
      %v525 = vpop.f32.mrf.mxu0
      %v526 = vpop.f32.mrf.mxu0
      %527 = vdwg.mxu0
      %v528 = vadd.f32 %v479, %v523
      %529 = vst.msk [vmem:[#allocation4] sm:$0xff] %vm401, %v528
      %530 = vst.msk [vmem:[#allocation2] sm:$0xff] %vm471, %v453
      // Predicated region
      $region41: #{text_classification_forward.14} parent=35 // pred_check
        %p531 = pneg %p378
      $region42: #{text_classification_forward.14} parent=35 // pred_check_branch
        %533 = sbr.rel (%p531) target = $region44
      $region43: #{text_classification_forward.14} parent=35 // pred_region
        %v534 = vld [vmem:[#allocation3] sm:$0xff]
        %v535 = vrcp.pop %v534
        %v536 = vld [vmem:[#allocation4] sm:$0xff]
        %538 = vset.pattern.permute.xlu0 0
        %539 = vperm.xlu0 %538, %v535
        %v540 = vpop.permute.xlu0 %539
        %v542 = vmul.f32 %v536, %v540
        %543 = vst.msk [vmem:[%s376] sm:$0xff] %vm401, %v542
      $region44: #{text_classification_forward.14} parent=35 // pred_fallthru
        _
      %p544 = scmp.lt.s32.totalorder %s21, 1
      %s545 = scalar_select %p544, %s21, 1
      %p546 = scmp.lt.s32.totalorder %s22, 1
      %s547 = scalar_select %p546, %s22, 1
      %p548 = scmp.lt.s32.totalorder %s23, 0
      %s549 = scalar_select %p548, %s23, 0
      %s550 = sadd.s32 %s549, %s547
      %s551 = smul.addr %s545, 2
      %s552 = sadd.s32 %s550, %s551
      %s553 = smul.addr %s552, 8
      %s554 = scalar_lea.vmem %s4, %s553
      // Predicated region
      $region45: #{text_classification_forward.14} parent=35 // pred_check
        %p555 = pneg %p181
      $region46: #{text_classification_forward.14} parent=35 // pred_check_branch
        %557 = sbr.rel (%p555) target = $region48
      $region47: #{text_classification_forward.14} parent=35 // pred_region
        _
      $region48: #{text_classification_forward.14} parent=35 // pred_fallthru
        _
    $region36: #{text_classification_forward.14} parent=5 // pred_fallthru
      _
    %p558 = scmp.le.s32.totalorder 2, %s10
    // Predicated region
    $region49: #{text_classification_forward.14} parent=5 // pred_check
      %p559 = pneg %p558
    $region50: #{text_classification_forward.14} parent=5 // pred_check_branch
      %561 = sbr.rel (%p559) target = $region52
    $region51: #{text_classification_forward.14} parent=5 // pred_region
      %s562 = ssub.s32 %s10, 2
      // Predicated region
      $region53: #{text_classification_forward.14} parent=51 // pred_check
        %p563 = pneg %p187
      $region54: #{text_classification_forward.14} parent=51 // pred_check_branch
        %565 = sbr.rel (%p563) target = $region56
      $region55: #{text_classification_forward.14} parent=51 // pred_region
        %p566 = scmp.lt.s32.totalorder %s25, 1
        %s567 = scalar_select %p566, %s25, 1
        %p568 = scmp.lt.s32.totalorder %s26, 1
        %s569 = scalar_select %p568, %s26, 1
        %p570 = scmp.lt.s32.totalorder %s27, 0
        %s571 = scalar_select %p570, %s27, 0
        %s572 = sadd.s32 %s571, %s569
        %s573 = smul.addr %s567, 2
        %s574 = sadd.s32 %s572, %s573
        %s575 = smul.addr %s574, 8
        %s576 = scalar_lea.vmem %s4, %s575
      $region56: #{text_classification_forward.14} parent=51 // pred_fallthru
        _
    $region52: #{text_classification_forward.14} parent=5 // pred_fallthru
      _
  $region6: #{text_classification_forward.14} parent=0 // loop_footer
    %s14 = sadd.s32 1, %s10
  $region7: #{text_classification_forward.14} parent=0 // loop_footer_branch
    %9 = sbr.rel target = $region3
  $region8: #{text_classification_forward.14} parent=0 // loop_exit
    _

// kernel: text_classification_forward.17
$region0: #{text_classification_forward.17}
  #allocation0 [shape = 'u32[]', space=smem, size = 0x4, offset = 0x4, fixed_abs, tag = 'smem constant byte address 0x4 - core index']
  #allocation1 [shape = 'u32[144,128]{1,0:T(1,128)}', space=vmem, size = 0x12000, scoped, tag = 'internal scratch']
  #allocation2 [shape = 'f32[8,32]{1,0:T(8,128)}', space=vmem, size = 0x1000, scoped, tag = 'scratch operand']
  %s0 = inlined_call_operand.vmem [shape: f32[2,8,64], index: 0, kind: input, shape index: {}]
  %s1 = inlined_call_operand.vmem [shape: bf16[64,32], index: 1, kind: input, shape index: {}]
  %s2 = inlined_call_operand.vmem [shape: f32[1,32], index: 2, kind: input, shape index: {}, may-alias: {2,5}]
  %s3 = inlined_call_operand.vmem [shape: f32[2,8,32], index: 3, kind: input, shape index: {}]
  %s4 = inlined_call_operand.vmem [shape: f32[1,32], index: 4, kind: input, shape index: {}]
  %s5 = inlined_call_operand.vmem [shape: f32[1,32], index: 5, kind: input, shape index: {}, may-alias: {2,5}]
  %s6 = inlined_call_operand.vmem [shape: f32[2,8,32], index: 6, kind: output, shape index: {}]
  %s7 = sld [smem:[#allocation0]]
  $region65: #{text_classification_forward.17} parent=0
    _
  %s9 = ssub.s32 1, %s7
  %s10 = scalar_select 0, %s9, %s7
  loop: start=0, step=1, limit=4
  $region2: #{text_classification_forward.17} parent=0 // loop_pre_header
    _
  $region3: #{text_classification_forward.17} parent=0 // loop_header
    %s12 = sphi 0, %s16
    %p13 = scmp.ge.s32.totalorder %s12, 4
    %s19 = sphi 0, %s38
    %s20 = sphi 0, %s34
    %s21 = sphi 0, %s30
    %s22 = sphi 0, %s19
    %s23 = sphi 0, %s20
    %s24 = sphi 0, %s21
    %s25 = sphi 0, %s22
    %s26 = sphi 0, %s23
    %s27 = sphi 0, %s24
    %s45 = sphi 0, %s47
    %s48 = sphi 0, %s45
    %s49 = sphi 0, %s48
    %s65 = sphi 0, %s49
    %s71 = sphi 0, %s73
    %s74 = sphi 0, %s71
    %s75 = sphi 0, %s74
    %s91 = sphi 0, %s75
    %s95 = sphi 0, %s95
    %s97 = sphi 0, %s95
    %s98 = sphi 0, %s97
    %s112 = sphi 0, %s98
    %s120 = sphi 0, %s122
    %s123 = sphi 0, %s120
    %s124 = sphi 0, %s123
    %s140 = sphi 0, %s124
    %s144 = sphi 0, %s144
    %s146 = sphi 0, %s144
    %s147 = sphi 0, %s146
    %s161 = sphi 0, %s147
    %s165 = sphi 0, %s165
    %s167 = sphi 0, %s165
    %s168 = sphi 0, %s167
    %s182 = sphi 0, %s168
    %s190 = sphi 0, %s192
    %s193 = sphi 0, %s190
    %s194 = sphi 0, %s193
    %s210 = sphi 0, %s194
  $region4: #{text_classification_forward.17} parent=0 // loop_header_branch
    %15 = sbr.rel (%p13) target = $region8
  $region5: #{text_classification_forward.17} parent=0 // loop_body
    %s17 = ssub.s32 %s12, 1
    %s18 = ssub.s32 %s12, 2
    %s28 = sadd.s32 1, %s21
    %p29 = scmp.ge.s32.totalorder %s28, 1
    %s30 = scalar_select %p29, 0, %s28
    %s31 = sadd.s32 1, %s20
    %s32 = scalar_select %p29, %s31, %s20
    %p33 = scmp.ge.s32.totalorder %s32, 1
    %s34 = scalar_select %p33, 0, %s32
    %s35 = sadd.s32 1, %s19
    %s36 = scalar_select %p33, %s35, %s19
    %p37 = scmp.ge.s32.totalorder %s36, 2
    %s38 = scalar_select %p37, 0, %s36
    %s39 = ssub.s32 %s19, %s38
    %s40 = ssub.s32 %s20, %s34
    %s41 = sor.u32 %s39, %s40
    %s42 = ssub.s32 %s21, %s30
    %s43 = sor.u32 %s41, %s42
    %p44 = scmp.eq.s32.totalorder %s43, 0
    %s46 = sadd.s32 %s45, 1
    %s47 = scalar_select %p44, %s45, %s46
    %p50 = pneg %p44
    %p51 = scmp.eq.s32.totalorder %s12, 1
    %p52 = por %p50, %p51
    %p53 = scmp.ne.s32.totalorder %s45, %s48
    %p54 = scmp.eq.s32.totalorder %s12, 0
    %p55 = por %p53, %p54
    %p56 = scmp.ne.s32.totalorder %s45, %s48
    %p57 = scmp.eq.s32.totalorder %s17, 1
    %p58 = por %p56, %p57
    %p59 = scmp.ne.s32.totalorder %s48, %s49
    %p60 = scmp.eq.s32.totalorder %s17, 0
    %p61 = por %p59, %p60
    %p62 = scmp.ne.s32.totalorder %s48, %s49
    %p63 = scmp.eq.s32.totalorder %s18, 1
    %p64 = por %p62, %p63
    %p66 = scmp.ne.s32.totalorder %s49, %s65
    %p67 = scmp.eq.s32.totalorder %s18, 0
    %p68 = por %p66, %p67
    %s69 = ssub.s32 %s21, %s30
    %p70 = scmp.eq.s32.totalorder %s69, 0
    %s72 = sadd.s32 %s71, 1
    %s73 = scalar_select %p70, %s71, %s72
    %p76 = pneg %p70
    %p77 = scmp.eq.s32.totalorder %s12, 1
    %p78 = por %p76, %p77
    %p79 = scmp.ne.s32.totalorder %s71, %s74
    %p80 = scmp.eq.s32.totalorder %s12, 0
    %p81 = por %p79, %p80
    %p82 = scmp.ne.s32.totalorder %s71, %s74
    %p83 = scmp.eq.s32.totalorder %s17, 1
    %p84 = por %p82, %p83
    %p85 = scmp.ne.s32.totalorder %s74, %s75
    %p86 = scmp.eq.s32.totalorder %s17, 0
    %p87 = por %p85, %p86
    %p88 = scmp.ne.s32.totalorder %s74, %s75
    %p89 = scmp.eq.s32.totalorder %s18, 1
    %p90 = por %p88, %p89
    %p92 = scmp.ne.s32.totalorder %s75, %s91
    %p93 = scmp.eq.s32.totalorder %s18, 0
    %p94 = por %p92, %p93
    %s96 = sadd.s32 %s95, 1
    %p99 = scmp.eq.s32.totalorder %s12, 1
    %p100 = scmp.ne.s32.totalorder %s95, %s97
    %p101 = scmp.eq.s32.totalorder %s12, 0
    %p102 = por %p100, %p101
    %p103 = scmp.ne.s32.totalorder %s95, %s97
    %p104 = scmp.eq.s32.totalorder %s17, 1
    %p105 = por %p103, %p104
    %p106 = scmp.ne.s32.totalorder %s97, %s98
    %p107 = scmp.eq.s32.totalorder %s17, 0
    %p108 = por %p106, %p107
    %p109 = scmp.ne.s32.totalorder %s97, %s98
    %p110 = scmp.eq.s32.totalorder %s18, 1
    %p111 = por %p109, %p110
    %p113 = scmp.ne.s32.totalorder %s98, %s112
    %p114 = scmp.eq.s32.totalorder %s18, 0
    %p115 = por %p113, %p114
    %s116 = ssub.s32 %s19, %s38
    %s117 = ssub.s32 %s20, %s34
    %s118 = sor.u32 %s116, %s117
    %p119 = scmp.eq.s32.totalorder %s118, 0
    %s121 = sadd.s32 %s120, 1
    %s122 = scalar_select %p119, %s120, %s121
    %p125 = pneg %p119
    %p126 = scmp.eq.s32.totalorder %s12, 1
    %p127 = por %p125, %p126
    %p128 = scmp.ne.s32.totalorder %s120, %s123
    %p129 = scmp.eq.s32.totalorder %s12, 0
    %p130 = por %p128, %p129
    %p131 = scmp.ne.s32.totalorder %s120, %s123
    %p132 = scmp.eq.s32.totalorder %s17, 1
    %p133 = por %p131, %p132
    %p134 = scmp.ne.s32.totalorder %s123, %s124
    %p135 = scmp.eq.s32.totalorder %s17, 0
    %p136 = por %p134, %p135
    %p137 = scmp.ne.s32.totalorder %s123, %s124
    %p138 = scmp.eq.s32.totalorder %s18, 1
    %p139 = por %p137, %p138
    %p141 = scmp.ne.s32.totalorder %s124, %s140
    %p142 = scmp.eq.s32.totalorder %s18, 0
    %p143 = por %p141, %p142
    %s145 = sadd.s32 %s144, 1
    %p148 = scmp.eq.s32.totalorder %s12, 1
    %p149 = scmp.ne.s32.totalorder %s144, %s146
    %p150 = scmp.eq.s32.totalorder %s12, 0
    %p151 = por %p149, %p150
    %p152 = scmp.ne.s32.totalorder %s144, %s146
    %p153 = scmp.eq.s32.totalorder %s17, 1
    %p154 = por %p152, %p153
    %p155 = scmp.ne.s32.totalorder %s146, %s147
    %p156 = scmp.eq.s32.totalorder %s17, 0
    %p157 = por %p155, %p156
    %p158 = scmp.ne.s32.totalorder %s146, %s147
    %p159 = scmp.eq.s32.totalorder %s18, 1
    %p160 = por %p158, %p159
    %p162 = scmp.ne.s32.totalorder %s147, %s161
    %p163 = scmp.eq.s32.totalorder %s18, 0
    %p164 = por %p162, %p163
    %s166 = sadd.s32 %s165, 1
    %p169 = scmp.eq.s32.totalorder %s12, 1
    %p170 = scmp.ne.s32.totalorder %s165, %s167
    %p171 = scmp.eq.s32.totalorder %s12, 0
    %p172 = por %p170, %p171
    %p173 = scmp.ne.s32.totalorder %s165, %s167
    %p174 = scmp.eq.s32.totalorder %s17, 1
    %p175 = por %p173, %p174
    %p176 = scmp.ne.s32.totalorder %s167, %s168
    %p177 = scmp.eq.s32.totalorder %s17, 0
    %p178 = por %p176, %p177
    %p179 = scmp.ne.s32.totalorder %s167, %s168
    %p180 = scmp.eq.s32.totalorder %s18, 1
    %p181 = por %p179, %p180
    %p183 = scmp.ne.s32.totalorder %s168, %s182
    %p184 = scmp.eq.s32.totalorder %s18, 0
    %p185 = por %p183, %p184
    %s186 = ssub.s32 %s19, %s38
    %s187 = ssub.s32 %s20, %s34
    %s188 = sor.u32 %s186, %s187
    %p189 = scmp.eq.s32.totalorder %s188, 0
    %s191 = sadd.s32 %s190, 1
    %s192 = scalar_select %p189, %s190, %s191
    %p195 = pneg %p189
    %p196 = scmp.eq.s32.totalorder %s12, 1
    %p197 = por %p195, %p196
    %p198 = scmp.ne.s32.totalorder %s190, %s193
    %p199 = scmp.eq.s32.totalorder %s12, 0
    %p200 = por %p198, %p199
    %p201 = scmp.ne.s32.totalorder %s190, %s193
    %p202 = scmp.eq.s32.totalorder %s17, 1
    %p203 = por %p201, %p202
    %p204 = scmp.ne.s32.totalorder %s193, %s194
    %p205 = scmp.eq.s32.totalorder %s17, 0
    %p206 = por %p204, %p205
    %p207 = scmp.ne.s32.totalorder %s193, %s194
    %p208 = scmp.eq.s32.totalorder %s18, 1
    %p209 = por %p207, %p208
    %p211 = scmp.ne.s32.totalorder %s194, %s210
    %p212 = scmp.eq.s32.totalorder %s18, 0
    %p213 = por %p211, %p212
    %p214 = scmp.le.s32.totalorder 1, %s12
    %p215 = scmp.lt.s32.totalorder %s12, 3
    %p216 = pnand %p214, %p215
    %p217 = pneg %p216
    // Predicated region
    $region9: #{text_classification_forward.17} parent=5 // pred_check
      _
    $region10: #{text_classification_forward.17} parent=5 // pred_check_branch
      %219 = sbr.rel (%p216) target = $region12
    $region11: #{text_classification_forward.17} parent=5 // pred_region
      %s220 = ssub.s32 %s12, 1
      // Predicated region
      $region13: #{text_classification_forward.17} parent=11 // pred_check
        %p221 = pneg %p87
      $region14: #{text_classification_forward.17} parent=11 // pred_check_branch
        %223 = sbr.rel (%p221) target = $region16
      $region15: #{text_classification_forward.17} parent=11 // pred_region
        %s224 = smul.u32 8, %s24
        %p225 = scmp.lt.s32.totalorder %s224, 7
        %s226 = scalar_select %p225, %s224, 7
        %s227 = smul.addr %s226, 4
        %s228 = scalar_lea.vmem %s1, %s227
        %s229 = smul.u32 8, %s24
      $region16: #{text_classification_forward.17} parent=11 // pred_fallthru
        _
      // Predicated region
      $region17: #{text_classification_forward.17} parent=11 // pred_check
        %p230 = pneg %p108
      $region18: #{text_classification_forward.17} parent=11 // pred_check_branch
        %232 = sbr.rel (%p230) target = $region20
      $region19: #{text_classification_forward.17} parent=11 // pred_region
        _
      $region20: #{text_classification_forward.17} parent=11 // pred_fallthru
        _
      // Predicated region
      $region21: #{text_classification_forward.17} parent=11 // pred_check
        %p233 = pneg %p157
      $region22: #{text_classification_forward.17} parent=11 // pred_check_branch
        %235 = sbr.rel (%p233) target = $region24
      $region23: #{text_classification_forward.17} parent=11 // pred_region
        _
      $region24: #{text_classification_forward.17} parent=11 // pred_fallthru
        _
      // Predicated region
      $region25: #{text_classification_forward.17} parent=11 // pred_check
        %p236 = pneg %p178
      $region26: #{text_classification_forward.17} parent=11 // pred_check_branch
        %238 = sbr.rel (%p236) target = $region28
      $region27: #{text_classification_forward.17} parent=11 // pred_region
        _
      $region28: #{text_classification_forward.17} parent=11 // pred_fallthru
        _
    $region12: #{text_classification_forward.17} parent=5 // pred_fallthru
      _
    %p239 = scmp.lt.s32.totalorder %s12, 2
    // Predicated region
    $region29: #{text_classification_forward.17} parent=5 // pred_check
      %p240 = pneg %p239
    $region30: #{text_classification_forward.17} parent=5 // pred_check_branch
      %242 = sbr.rel (%p240) target = $region32
    $region31: #{text_classification_forward.17} parent=5 // pred_region
      // Predicated region
      $region33: #{text_classification_forward.17} parent=31 // pred_check
        %p243 = pneg %p55
      $region34: #{text_classification_forward.17} parent=31 // pred_check_branch
        %245 = sbr.rel (%p243) target = $region36
      $region35: #{text_classification_forward.17} parent=31 // pred_region
        %p246 = scmp.lt.s32.totalorder %s19, 1
        %s247 = scalar_select %p246, %s19, 1
        %p248 = scmp.lt.s32.totalorder %s20, 0
        %s249 = scalar_select %p248, %s20, 0
        %p250 = scmp.lt.s32.totalorder %s21, 0
        %s251 = scalar_select %p250, %s21, 0
        %s252 = sadd.s32 %s251, %s249
        %s253 = sadd.s32 %s252, %s247
        %s254 = smul.addr %s253, 8
        %s255 = scalar_lea.vmem %s0, %s254
      $region36: #{text_classification_forward.17} parent=31 // pred_fallthru
        _
      // Predicated region
      $region37: #{text_classification_forward.17} parent=31 // pred_check
        %p256 = pneg %p130
      $region38: #{text_classification_forward.17} parent=31 // pred_check_branch
        %258 = sbr.rel (%p256) target = $region40
      $region39: #{text_classification_forward.17} parent=31 // pred_region
        %p259 = scmp.lt.s32.totalorder %s19, 1
        %s260 = scalar_select %p259, %s19, 1
        %p261 = scmp.lt.s32.totalorder %s20, 0
        %s262 = scalar_select %p261, %s20, 0
        %s263 = sadd.s32 %s262, %s260
        %s264 = smul.addr %s263, 8
        %s265 = scalar_lea.vmem %s3, %s264
      $region40: #{text_classification_forward.17} parent=31 // pred_fallthru
        _
    $region32: #{text_classification_forward.17} parent=5 // pred_fallthru
      _
    %p266 = scmp.le.s32.totalorder 1, %s12
    %p267 = scmp.lt.s32.totalorder %s12, 3
    %p268 = pnand %p266, %p267
    %p269 = pneg %p268
    // Predicated region
    $region41: #{text_classification_forward.17} parent=5 // pred_check
      _
    $region42: #{text_classification_forward.17} parent=5 // pred_check_branch
      %271 = sbr.rel (%p268) target = $region44
    $region43: #{text_classification_forward.17} parent=5 // pred_region
      %s272 = ssub.s32 %s12, 1
      %p273 = scmp.lt.s32.totalorder %s22, 1
      %s274 = scalar_select %p273, %s22, 1
      %p275 = scmp.lt.s32.totalorder %s23, 0
      %s276 = scalar_select %p275, %s23, 0
      %p277 = scmp.lt.s32.totalorder %s24, 0
      %s278 = scalar_select %p277, %s24, 0
      %s279 = sadd.s32 %s278, %s276
      %s280 = sadd.s32 %s279, %s274
      %s281 = smul.addr %s280, 8
      %s282 = scalar_lea.vmem %s0, %s281
      %p283 = pneg %p61
      %p284 = pneg %p58
      %s285 = smul.u32 8, %s24
      %p286 = scmp.lt.s32.totalorder %s285, 7
      %s287 = scalar_select %p286, %s285, 7
      %s288 = smul.addr %s287, 4
      %s289 = scalar_lea.vmem %s1, %s288
      %p290 = pneg %p87
      %p291 = pneg %p84
      %p292 = pneg %p108
      %p293 = pneg %p105
      %p294 = scmp.lt.s32.totalorder %s22, 1
      %s295 = scalar_select %p294, %s22, 1
      %p296 = scmp.lt.s32.totalorder %s23, 0
      %s297 = scalar_select %p296, %s23, 0
      %s298 = sadd.s32 %s297, %s295
      %s299 = smul.addr %s298, 8
      %s300 = scalar_lea.vmem %s3, %s299
      %p301 = pneg %p136
      %p302 = pneg %p133
      %p303 = pneg %p157
      %p304 = pneg %p154
      %p305 = pneg %p178
      %p306 = pneg %p175
      %p307 = pneg %p206
      %p308 = pneg %p203
      %p309 = scmp.lt.s32.totalorder %s22, 1
      %s310 = scalar_select %p309, %s22, 1
      %p311 = scmp.lt.s32.totalorder %s23, 0
      %s312 = scalar_select %p311, %s23, 0
      %s313 = sadd.s32 %s312, %s310
      %s314 = smul.addr %s313, 8
      %s315 = scalar_lea.vmem %s6, %s314
      %p316 = scmp.lt.s32.totalorder %s22, 1
      %s317 = scalar_select %p316, %s22, 1
      %p318 = scmp.lt.s32.totalorder %s23, 0
      %s319 = scalar_select %p318, %s23, 0
      %p320 = scmp.lt.s32.totalorder %s24, 0
      %s321 = scalar_select %p320, %s24, 0
      %s322 = sadd.s32 %s321, %s319
      %s323 = sadd.s32 %s322, %s317
      %s324 = smul.addr %s323, 8
      %s325 = scalar_lea.vmem %s0, %s324
      %s326 = smul.u32 8, %s24
      %p327 = scmp.lt.s32.totalorder %s326, 7
      %s328 = scalar_select %p327, %s326, 7
      %s329 = smul.addr %s328, 4
      %s330 = scalar_lea.vmem %s1, %s329
      %s331 = smul.u32 8, %s24
      %p332 = scmp.lt.s32.totalorder %s22, 1
      %s333 = scalar_select %p332, %s22, 1
      %p334 = scmp.lt.s32.totalorder %s23, 0
      %s335 = scalar_select %p334, %s23, 0
      %s336 = sadd.s32 %s335, %s333
      %s337 = smul.addr %s336, 8
      %s338 = scalar_lea.vmem %s3, %s337
      %p339 = scmp.lt.s32.totalorder %s22, 1
      %s340 = scalar_select %p339, %s22, 1
      %p341 = scmp.lt.s32.totalorder %s23, 0
      %s342 = scalar_select %p341, %s23, 0
      %s343 = sadd.s32 %s342, %s340
      %s344 = smul.addr %s343, 8
      %s345 = scalar_lea.vmem %s6, %s344
      %p347 = scmp.eq.s32.totalorder %s24, 0
      // Predicated region
      $region45: #{text_classification_forward.17} parent=43 // pred_check
        %p348 = pneg %p347
      $region46: #{text_classification_forward.17} parent=43 // pred_check_branch
        %350 = sbr.rel (%p348) target = $region48
      $region47: #{text_classification_forward.17} parent=43 // pred_region
        %vm351 = vcmask 261120
        %352 = vst.msk [vmem:[#allocation2] sm:$0xff] %vm351, 0.0
      $region48: #{text_classification_forward.17} parent=43 // pred_fallthru
        _
      %v353 = vld [vmem:[#allocation2] sm:$0xff]
      %v354 = vld [vmem:[%s325] sm:$0xff]
      %v355 = vpack.c.bf16 %v354, %v354
      %v356 = vld [vmem:[%s330] sm:$0xf]
      %v357 = vld [vmem:[%s330 + $0x4] sm:$0xf]
      %v358 = vld [vmem:[%s330 + $0x8] sm:$0xf]
      %v359 = vld [vmem:[%s330 + $0xc] sm:$0xf]
      %v360 = vld [vmem:[%s330 + $0x10] sm:$0xf]
      %v361 = vld [vmem:[%s330 + $0x14] sm:$0xf]
      %v362 = vld [vmem:[%s330 + $0x18] sm:$0xf]
      %v363 = vld [vmem:[%s330 + $0x1c] sm:$0xf]
      %v372 = vunpack.c.l.b16 %v356
      %v373 = vunpack.c.l.b16 %v357
      %v374 = vunpack.c.l.b16 %v358
      %v375 = vunpack.c.l.b16 %v359
      %v376 = vunpack.c.l.b16 %v360
      %v377 = vunpack.c.l.b16 %v361
      %v378 = vunpack.c.l.b16 %v362
      %v379 = vunpack.c.l.b16 %v363
      %v380 = vpack.c.b16 %v373, %v372
      %v381 = vpack.c.b16 %v375, %v374
      %v382 = vpack.c.b16 %v377, %v376
      %v383 = vpack.c.b16 %v379, %v378
      %vm388 = vcmask 523264
      %v390 = vsel %vm388, %v355, 0
      %392 = vmatprep.subr.bf16.mxu0 0
      %393 = vmatpush1.bf16.msra.mxu0 0
      %394 = vmatprep.subr.bf16.mxu0 0
      %395 = vmatpush1.bf16.msra.mxu0 0
      %396 = vmatprep.subr.bf16.mxu0 0
      %397 = vmatpush1.bf16.msra.mxu0 0
      %398 = vmatprep.subr.bf16.mxu0 0
      %399 = vmatpush1.bf16.msra.mxu0 0
      %400 = vmatprep.subr.bf16.mxu0 0
      %401 = vmatpush1.bf16.msra.mxu0 %v383
      %402 = vmatprep.subr.bf16.mxu0 0
      %403 = vmatpush1.bf16.msra.mxu0 %v382
      %404 = vmatprep.subr.bf16.mxu0 0
      %405 = vmatpush1.bf16.msra.mxu0 %v381
      %406 = vmatprep.subr.bf16.mxu0 0
      %407 = vmatpush1.bf16.msra.mxu0 %v380
      %408 = vmatprep.subr.bf16.mxu0 0
      %409 = vmatpush2.bf16.msra.mxu0 0
      %410 = vmatprep.subr.bf16.mxu0 0
      %411 = vmatpush2.bf16.msra.mxu0 0
      %412 = vmatprep.subr.bf16.mxu0 0
      %413 = vmatpush2.bf16.msra.mxu0 0
      %414 = vmatprep.subr.bf16.mxu0 0
      %415 = vmatpush2.bf16.msra.mxu0 0
      %416 = vmatprep.subr.bf16.mxu0 0
      %417 = vmatpush2.bf16.msra.mxu0 0
      %418 = vmatprep.subr.bf16.mxu0 0
      %419 = vmatpush2.bf16.msra.mxu0 0
      %420 = vmatprep.subr.bf16.mxu0 0
      %421 = vmatpush2.bf16.msra.mxu0 0
      %422 = vmatprep.subr.bf16.mxu0 0
      %423 = vmatpush2.bf16.msra.mxu0 0
      %424 = vmatprep.mubr.bf16.mxu0 0
      %425 = vmatmul.mubr.bf16.gmra.mxu0 %v390
      %v426 = vpop.f32.mrf.mxu0
      %v427 = vadd.f32 0.0, %v426
      %v428 = vpop.f32.mrf.mxu0
      %v429 = vpop.f32.mrf.mxu0
      %v430 = vpop.f32.mrf.mxu0
      %431 = vdwg.mxu0
      %v432 = vadd.f32 %v353, %v427
      %vm433 = vcmask 261120
      %434 = vst.msk [vmem:[#allocation2] sm:$0xff] %vm433, %v432
      // Predicated region
      $region49: #{text_classification_forward.17} parent=43 // pred_check
        %p435 = pneg %p347
      $region50: #{text_classification_forward.17} parent=43 // pred_check_branch
        %437 = sbr.rel (%p435) target = $region52
      $region51: #{text_classification_forward.17} parent=43 // pred_region
        %v438 = vld [vmem:[#allocation2] sm:$0xff]
        %v439 = vld [vmem:[%s2] sm:$0x1]
        %v441 = vlaneseq
        %v442 = vshrl.u32 %v441, 7
        %v443 = vsub.s32 0, %v442
        %v444 = vrot.slane %v439, %v443
        %v446 = vadd.f32 %v438, %v444
        %v447 = vld [vmem:[%s338] sm:$0xff]
        %v448 = vadd.f32 %v446, %v447
        %v449 = vsel %vm433, %v448, 0.0
        %450 = vadd.xlane.f32.xlu0 %v449
        %v451 = vpop.xlane.xlu0 %450
        %v452 = vrcp.pop 32.0
        %v453 = vmul.f32 %v451, %v452
        %v454 = vsub.f32 %v448, %v453
        %v455 = vmul.f32 %v454, %v454
        %v456 = vsel %vm433, %v455, 0.0
        %457 = vadd.xlane.f32.xlu0 %v456
        %v458 = vpop.xlane.xlu0 %457
        %v459 = vmul.f32 %v458, %v452
        %v460 = vadd.f32 %v459, 1e-12
        %v461 = vrsqrt.pop %v460
        %v462 = vmul.f32 %v454, %v461
        %v463 = vld [vmem:[%s4] sm:$0x1]
        %v465 = vlaneseq
        %v466 = vshrl.u32 %v465, 7
        %v467 = vsub.s32 0, %v466
        %v468 = vrot.slane %v463, %v467
        %v470 = vmul.f32 %v462, %v468
        %v471 = vld [vmem:[%s5] sm:$0x1]
        %v473 = vlaneseq
        %v474 = vshrl.u32 %v473, 7
        %v475 = vsub.s32 0, %v474
        %v476 = vrot.slane %v471, %v475
        %v478 = vadd.f32 %v470, %v476
        %479 = vst.msk [vmem:[%s345] sm:$0xff] %vm433, %v478
      $region52: #{text_classification_forward.17} parent=43 // pred_fallthru
        _
      %p480 = scmp.lt.s32.totalorder %s22, 1
      %s481 = scalar_select %p480, %s22, 1
      %p482 = scmp.lt.s32.totalorder %s23, 0
      %s483 = scalar_select %p482, %s23, 0
      %s484 = sadd.s32 %s483, %s481
      %s485 = smul.addr %s484, 8
      %s486 = scalar_lea.vmem %s6, %s485
      // Predicated region
      $region53: #{text_classification_forward.17} parent=43 // pred_check
        %p487 = pneg %p203
      $region54: #{text_classification_forward.17} parent=43 // pred_check_branch
        %489 = sbr.rel (%p487) target = $region56
      $region55: #{text_classification_forward.17} parent=43 // pred_region
        _
      $region56: #{text_classification_forward.17} parent=43 // pred_fallthru
        _
    $region44: #{text_classification_forward.17} parent=5 // pred_fallthru
      _
    %p490 = scmp.le.s32.totalorder 2, %s12
    // Predicated region
    $region57: #{text_classification_forward.17} parent=5 // pred_check
      %p491 = pneg %p490
    $region58: #{text_classification_forward.17} parent=5 // pred_check_branch
      %493 = sbr.rel (%p491) target = $region60
    $region59: #{text_classification_forward.17} parent=5 // pred_region
      %s494 = ssub.s32 %s12, 2
      // Predicated region
      $region61: #{text_classification_forward.17} parent=59 // pred_check
        %p495 = pneg %p209
      $region62: #{text_classification_forward.17} parent=59 // pred_check_branch
        %497 = sbr.rel (%p495) target = $region64
      $region63: #{text_classification_forward.17} parent=59 // pred_region
        %p498 = scmp.lt.s32.totalorder %s25, 1
        %s499 = scalar_select %p498, %s25, 1
        %p500 = scmp.lt.s32.totalorder %s26, 0
        %s501 = scalar_select %p500, %s26, 0
        %s502 = sadd.s32 %s501, %s499
        %s503 = smul.addr %s502, 8
        %s504 = scalar_lea.vmem %s6, %s503
      $region64: #{text_classification_forward.17} parent=59 // pred_fallthru
        _
    $region60: #{text_classification_forward.17} parent=5 // pred_fallthru
      _
  $region6: #{text_classification_forward.17} parent=0 // loop_footer
    %s16 = sadd.s32 1, %s12
  $region7: #{text_classification_forward.17} parent=0 // loop_footer_branch
    %11 = sbr.rel target = $region3
  $region8: #{text_classification_forward.17} parent=0 // loop_exit
    _

// kernel: text_classification_forward.23
$region0: #{text_classification_forward.23}
  #allocation0 [shape = 'u32[]', space=smem, size = 0x4, offset = 0x4, fixed_abs, tag = 'smem constant byte address 0x4 - core index']
  #allocation1 [shape = 'u32[144,128]{1,0:T(1,128)}', space=vmem, size = 0x12000, scoped, tag = 'internal scratch']
  %s0 = inlined_call_operand.vmem [shape: f32[2,32], index: 0, kind: input, shape index: {}]
  %s1 = inlined_call_operand.vmem [shape: bf16[32,32], index: 1, kind: input, shape index: {}]
  %s2 = inlined_call_operand.vmem [shape: f32[1,32], index: 2, kind: input, shape index: {}]
  %s3 = inlined_call_operand.vmem [shape: bf16[32,128], index: 3, kind: input, shape index: {}]
  %s4 = inlined_call_operand.vmem [shape: f32[1,128], index: 4, kind: input, shape index: {}]
  %s5 = inlined_call_operand.vmem [shape: f32[2,128], index: 5, kind: input, shape index: {}]
  %s6 = inlined_call_operand.vmem [shape: f32[1,128], index: 6, kind: input, shape index: {}]
  %s7 = inlined_call_operand.hbm [shape: f32[2,128], index: 7, kind: output, shape index: {0}]
  %s8 = inlined_call_operand.hbm [shape: f32[1,1], index: 8, kind: output, shape index: {1}]
  %9 = xla_tuple %s7, %s8
  %s10 = sld [smem:[#allocation0]]
  $region46: #{text_classification_forward.23} parent=0
    _
  %s12 = ssub.s32 1, %s10
  %s13 = scalar_select 0, %s12, %s10
  $region1: #{text_classification_forward.23} parent=0
    #allocation2 [shape = 'u8[1024]{0}', space=vmem, size = 0x400, scoped, tag = 'output window, operand 0, single buffered']
    #allocation3 [shape = 's32[1]{0}', space=sflag, size = 0x4, scoped, tag = 'scoped memory for text_classification_forward.23']
    #allocation4 [shape = 'u8[512]{0}', space=vmem, size = 0x400, scoped, tag = 'output window, operand 1, single buffered']
    #allocation5 [shape = 's32[1]{0}', space=sflag, size = 0x4, scoped, tag = 'scoped memory for text_classification_forward.23']
    %14 = vsyncpa [#allocation3], 0
    %15 = vsyncpa [#allocation5], 0
    // Predicated region
    $region2: #{text_classification_forward.23} parent=1 // pred_check
      _
    $region3: #{text_classification_forward.23} parent=1 // pred_check_branch
      %17 = sbr.rel (0) target = $region5
    $region4: #{text_classification_forward.23} parent=1 // pred_region
      _
    $region5: #{text_classification_forward.23} parent=1 // pred_fallthru
      _
    // Predicated region
    $region6: #{text_classification_forward.23} parent=1 // pred_check
      _
    $region7: #{text_classification_forward.23} parent=1 // pred_check_branch
      %19 = sbr.rel (0) target = $region9
    $region8: #{text_classification_forward.23} parent=1 // pred_region
      _
    $region9: #{text_classification_forward.23} parent=1 // pred_fallthru
      _
    // Predicated region
    $region10: #{text_classification_forward.23} parent=1 // pred_check
      _
    $region11: #{text_classification_forward.23} parent=1 // pred_check_branch
      %21 = sbr.rel (0) target = $region13
    $region12: #{text_classification_forward.23} parent=1 // pred_region
      _
    $region13: #{text_classification_forward.23} parent=1 // pred_fallthru
      _
    // Predicated region
    $region14: #{text_classification_forward.23} parent=1 // pred_check
      _
    $region15: #{text_classification_forward.23} parent=1 // pred_check_branch
      %23 = sbr.rel (0) target = $region17
    $region16: #{text_classification_forward.23} parent=1 // pred_region
      _
    $region17: #{text_classification_forward.23} parent=1 // pred_fallthru
      _
    // Predicated region
    $region18: #{text_classification_forward.23} parent=1 // pred_check
      _
    $region19: #{text_classification_forward.23} parent=1 // pred_check_branch
      %25 = sbr.rel (0) target = $region21
    $region20: #{text_classification_forward.23} parent=1 // pred_region
      _
    $region21: #{text_classification_forward.23} parent=1 // pred_fallthru
      _
    // Predicated region
    $region22: #{text_classification_forward.23} parent=1 // pred_check
      _
    $region23: #{text_classification_forward.23} parent=1 // pred_check_branch
      %27 = sbr.rel (0) target = $region25
    $region24: #{text_classification_forward.23} parent=1 // pred_region
      _
    $region25: #{text_classification_forward.23} parent=1 // pred_fallthru
      _
    // Predicated region
    $region26: #{text_classification_forward.23} parent=1 // pred_check
      _
    $region27: #{text_classification_forward.23} parent=1 // pred_check_branch
      %29 = sbr.rel (0) target = $region29
    $region28: #{text_classification_forward.23} parent=1 // pred_region
      _
    $region29: #{text_classification_forward.23} parent=1 // pred_fallthru
      _
    %v31 = vld [vmem:[%s0] sm:$0x3]
    %v32 = vpack.c.bf16 %v31, %v31
    %v33 = vld [vmem:[%s1] sm:$0xf]
    %v34 = vld [vmem:[%s1 + $0x4] sm:$0xf]
    %v35 = vld [vmem:[%s1 + $0x8] sm:$0xf]
    %v36 = vld [vmem:[%s1 + $0xc] sm:$0xf]
    %v37 = vld [vmem:[%s2] sm:$0x1]
    %v39 = vlaneseq
    %v40 = vshrl.u32 %v39, 7
    %v41 = vsub.s32 0, %v40
    %v42 = vrot.slane %v37, %v41
    %v48 = vunpack.c.l.b16 %v33
    %v49 = vunpack.c.l.b16 %v34
    %v50 = vunpack.c.l.b16 %v35
    %v51 = vunpack.c.l.b16 %v36
    %v52 = vpack.c.b16 %v49, %v48
    %v53 = vpack.c.b16 %v51, %v50
    %vm56 = vcmask 261120
    %v58 = vsel %vm56, %v32, 0
    %60 = vmatprep.subr.bf16.mxu0 0
    %61 = vmatpush1.bf16.msra.mxu0 0
    %62 = vmatprep.subr.bf16.mxu0 0
    %63 = vmatpush1.bf16.msra.mxu0 0
    %64 = vmatprep.subr.bf16.mxu0 0
    %65 = vmatpush1.bf16.msra.mxu0 0
    %66 = vmatprep.subr.bf16.mxu0 0
    %67 = vmatpush1.bf16.msra.mxu0 0
    %68 = vmatprep.subr.bf16.mxu0 0
    %69 = vmatpush1.bf16.msra.mxu0 0
    %70 = vmatprep.subr.bf16.mxu0 0
    %71 = vmatpush1.bf16.msra.mxu0 0
    %72 = vmatprep.subr.bf16.mxu0 0
    %73 = vmatpush1.bf16.msra.mxu0 %v53
    %74 = vmatprep.subr.bf16.mxu0 0
    %75 = vmatpush1.bf16.msra.mxu0 %v52
    %76 = vmatprep.subr.bf16.mxu0 0
    %77 = vmatpush2.bf16.msra.mxu0 0
    %78 = vmatprep.subr.bf16.mxu0 0
    %79 = vmatpush2.bf16.msra.mxu0 0
    %80 = vmatprep.subr.bf16.mxu0 0
    %81 = vmatpush2.bf16.msra.mxu0 0
    %82 = vmatprep.subr.bf16.mxu0 0
    %83 = vmatpush2.bf16.msra.mxu0 0
    %84 = vmatprep.subr.bf16.mxu0 0
    %85 = vmatpush2.bf16.msra.mxu0 0
    %86 = vmatprep.subr.bf16.mxu0 0
    %87 = vmatpush2.bf16.msra.mxu0 0
    %88 = vmatprep.subr.bf16.mxu0 0
    %89 = vmatpush2.bf16.msra.mxu0 0
    %90 = vmatprep.subr.bf16.mxu0 0
    %91 = vmatpush2.bf16.msra.mxu0 0
    %92 = vmatprep.mubr.bf16.mxu0 0
    %93 = vmatmul.mubr.bf16.gmra.mxu0 %v58
    %v94 = vpop.f32.mrf.mxu0
    %v95 = vadd.f32 %v42, %v94
    %v96 = vpop.f32.mrf.mxu0
    %v97 = vpop.f32.mrf.mxu0
    %v98 = vpop.f32.mrf.mxu0
    %99 = vdwg.mxu0
    %v100 = vtanh.pop %v95
    %v101 = vpack.c.bf16 %v100, %v100
    %v102 = vld [vmem:[%s3] sm:$0xf]
    %v103 = vld [vmem:[%s3 + $0x4] sm:$0xf]
    %v104 = vld [vmem:[%s3 + $0x8] sm:$0xf]
    %v105 = vld [vmem:[%s3 + $0xc] sm:$0xf]
    %v106 = vld [vmem:[%s4] sm:$0x1]
    %v108 = vlaneseq
    %v109 = vshrl.u32 %v108, 7
    %v110 = vsub.s32 0, %v109
    %v111 = vrot.slane %v106, %v110
    %v117 = vunpack.c.l.b16 %v102
    %v118 = vunpack.c.l.b16 %v103
    %v119 = vunpack.c.l.b16 %v104
    %v120 = vunpack.c.l.b16 %v105
    %v121 = vpack.c.b16 %v118, %v117
    %v122 = vpack.c.b16 %v120, %v119
    %v126 = vsel %vm56, %v101, 0
    %128 = vmatprep.subr.bf16.mxu0 0
    %129 = vmatpush1.bf16.msra.mxu0 0
    %130 = vmatprep.subr.bf16.mxu0 0
    %131 = vmatpush1.bf16.msra.mxu0 0
    %132 = vmatprep.subr.bf16.mxu0 0
    %133 = vmatpush1.bf16.msra.mxu0 0
    %134 = vmatprep.subr.bf16.mxu0 0
    %135 = vmatpush1.bf16.msra.mxu0 0
    %136 = vmatprep.subr.bf16.mxu0 0
    %137 = vmatpush1.bf16.msra.mxu0 0
    %138 = vmatprep.subr.bf16.mxu0 0
    %139 = vmatpush1.bf16.msra.mxu0 0
    %140 = vmatprep.subr.bf16.mxu0 0
    %141 = vmatpush1.bf16.msra.mxu0 %v122
    %142 = vmatprep.subr.bf16.mxu0 0
    %143 = vmatpush1.bf16.msra.mxu0 %v121
    %144 = vmatprep.subr.bf16.mxu0 0
    %145 = vmatpush2.bf16.msra.mxu0 0
    %146 = vmatprep.subr.bf16.mxu0 0
    %147 = vmatpush2.bf16.msra.mxu0 0
    %148 = vmatprep.subr.bf16.mxu0 0
    %149 = vmatpush2.bf16.msra.mxu0 0
    %150 = vmatprep.subr.bf16.mxu0 0
    %151 = vmatpush2.bf16.msra.mxu0 0
    %152 = vmatprep.subr.bf16.mxu0 0
    %153 = vmatpush2.bf16.msra.mxu0 0
    %154 = vmatprep.subr.bf16.mxu0 0
    %155 = vmatpush2.bf16.msra.mxu0 0
    %156 = vmatprep.subr.bf16.mxu0 0
    %157 = vmatpush2.bf16.msra.mxu0 0
    %158 = vmatprep.subr.bf16.mxu0 0
    %159 = vmatpush2.bf16.msra.mxu0 0
    %160 = vmatprep.mubr.bf16.mxu0 0
    %161 = vmatmul.mubr.bf16.gmra.mxu0 %v126
    %v162 = vpop.f32.mrf.mxu0
    %v163 = vadd.f32 %v111, %v162
    %v164 = vpop.f32.mrf.mxu0
    %v165 = vpop.f32.mrf.mxu0
    %v166 = vpop.f32.mrf.mxu0
    %167 = vdwg.mxu0
    %168 = vst [vmem:[#allocation2] sm:$0x3] %v163
    %v169 = vld [vmem:[%s6] sm:$0x1]
    %v171 = vlaneseq
    %v172 = vshrl.u32 %v171, 7
    %v173 = vsub.s32 0, %v172
    %v174 = vrot.slane %v169, %v173
    %v176 = vadd.f32 %v163, %v174
    %vm177 = vcmask 1041408
    %v178 = vsel %vm177, %v176, -inf
    %179 = vmax.xlane.f32.xlu0 %v178
    %v180 = vpop.xlane.xlu0 %179
    %v181 = vsub.f32 %v176, %v180
    %v182 = vmul.f32 %v181, 1.442695
    %v183 = vpow.pop %v182
    %v184 = vsel %vm177, %v183, 0.0
    %185 = vadd.xlane.f32.xlu0 %v184
    %v186 = vpop.xlane.xlu0 %185
    %v187 = vlog2.pop %v186
    %v188 = vmul.f32 %v187, 0.6931472
    %v189 = vadd.f32 %v188, %v180
    %v190 = vld [vmem:[%s5] sm:$0x3]
    %v191 = vmul.f32 %v190, %v176
    %v192 = vsel %vm177, %v191, 0.0
    %193 = vadd.xlane.f32.xlu0 %v192
    %v194 = vpop.xlane.xlu0 %193
    %v195 = vsub.f32 %v189, %v194
    %vm196 = vcmask 1024
    %v197 = vsel %vm196, %v195, 0.0
    %198 = vadd.xlane.f32.xlu0 %v197
    %v199 = vpop.xlane.xlu0 %198
    %v200 = vrot.slane %v199, 4
    %v201 = vadd.f32 %v199, %v200
    %v202 = vrot.slane %v201, 2
    %v203 = vadd.f32 %v201, %v202
    %v204 = vrot.slane %v203, 1
    %v205 = vadd.f32 %v203, %v204
    %s206 = vtos %v205
    %v207 = vrcp.pop 2.0
    %s208 = vtos %v207
    %s209 = smul.f32 %s206, %s208
    %v210 = vstv %s209
    %vm211 = vcmask 0
    %212 = vst.msk [vmem:[#allocation4] sm:$0x1] %vm211, %v210
    // Predicated region
    $region30: #{text_classification_forward.23} parent=1 // pred_check
      _
    $region31: #{text_classification_forward.23} parent=1 // pred_check_branch
      %214 = sbr.rel (0) target = $region33
    $region32: #{text_classification_forward.23} parent=1 // pred_region
      %s216 = ssub.s32 32, 32
      %217 = vsyncadd [#allocation3], %s216
      %s219 = sshll.u32 [#allocation2], 4
      %s220 = int_to_ptr.vmem [resolvable:$true] %s219
      %222 = dma.vmem_to_hbm [thread:$0]  %s220, 32, %s7, [#allocation3]
    $region33: #{text_classification_forward.23} parent=1 // pred_fallthru
      _
    // Predicated region
    $region34: #{text_classification_forward.23} parent=1 // pred_check
      _
    $region35: #{text_classification_forward.23} parent=1 // pred_check_branch
      %224 = sbr.rel (0) target = $region37
    $region36: #{text_classification_forward.23} parent=1 // pred_region
      %s226 = ssub.s32 16, 16
      %227 = vsyncadd [#allocation5], %s226
      %s229 = sshll.u32 [#allocation4], 4
      %s230 = int_to_ptr.vmem [resolvable:$true] %s229
      %232 = dma.vmem_to_hbm [thread:$0]  %s230, 16, %s8, [#allocation5]
    $region37: #{text_classification_forward.23} parent=1 // pred_fallthru
      _
    // Predicated region
    $region38: #{text_classification_forward.23} parent=1 // pred_check
      _
    $region39: #{text_classification_forward.23} parent=1 // pred_check_branch
      %234 = sbr.rel (0) target = $region41
    $region40: #{text_classification_forward.23} parent=1 // pred_region
      %235 = dma.done [#allocation3], 32
    $region41: #{text_classification_forward.23} parent=1 // pred_fallthru
      _
    // Predicated region
    $region42: #{text_classification_forward.23} parent=1 // pred_check
      _
    $region43: #{text_classification_forward.23} parent=1 // pred_check_branch
      %237 = sbr.rel (0) target = $region45
    $region44: #{text_classification_forward.23} parent=1 // pred_region
      %238 = dma.done [#allocation5], 16
    $region45: #{text_classification_forward.23} parent=1 // pred_fallthru
      _
    %239 = vsyncpa [#allocation3], 1
    %240 = vsyncpa [#allocation5], 1

// kernel: text_classification_forward.16
$region0: #{text_classification_forward.16}
  #allocation0 [shape = 'u32[]', space=smem, size = 0x4, offset = 0x4, fixed_abs, tag = 'smem constant byte address 0x4 - core index']
  #allocation1 [shape = 'u32[144,128]{1,0:T(1,128)}', space=vmem, size = 0x12000, scoped, tag = 'internal scratch']
  #allocation2 [shape = 'f32[8,64]{1,0:T(8,128)}', space=vmem, size = 0x1000, scoped, tag = 'scratch operand']
  %s0 = inlined_call_operand.vmem [shape: f32[2,8,32], index: 0, kind: input, shape index: {}]
  %s1 = inlined_call_operand.vmem [shape: bf16[32,64], index: 1, kind: input, shape index: {}]
  %s2 = inlined_call_operand.vmem [shape: f32[1,64], index: 2, kind: input, shape index: {}]
  %s3 = inlined_call_operand.vmem [shape: f32[2,8,64], index: 3, kind: output, shape index: {}]
  %s4 = sld [smem:[#allocation0]]
  $region53: #{text_classification_forward.16} parent=0
    _
  %s6 = ssub.s32 1, %s4
  %s7 = scalar_select 0, %s6, %s4
  loop: start=0, step=1, limit=4
  $region2: #{text_classification_forward.16} parent=0 // loop_pre_header
    _
  $region3: #{text_classification_forward.16} parent=0 // loop_header
    %s9 = sphi 0, %s13
    %p10 = scmp.ge.s32.totalorder %s9, 4
    %s16 = sphi 0, %s42
    %s17 = sphi 0, %s38
    %s18 = sphi 0, %s34
    %s19 = sphi 0, %s30
    %s20 = sphi 0, %s16
    %s21 = sphi 0, %s17
    %s22 = sphi 0, %s18
    %s23 = sphi 0, %s19
    %s24 = sphi 0, %s20
    %s25 = sphi 0, %s21
    %s26 = sphi 0, %s22
    %s27 = sphi 0, %s23
    %s49 = sphi 0, %s51
    %s52 = sphi 0, %s49
    %s53 = sphi 0, %s52
    %s69 = sphi 0, %s53
    %s77 = sphi 0, %s79
    %s80 = sphi 0, %s77
    %s81 = sphi 0, %s80
    %s97 = sphi 0, %s81
    %s103 = sphi 0, %s105
    %s106 = sphi 0, %s103
    %s107 = sphi 0, %s106
    %s123 = sphi 0, %s107
    %s133 = sphi 0, %s135
    %s136 = sphi 0, %s133
    %s137 = sphi 0, %s136
    %s153 = sphi 0, %s137
  $region4: #{text_classification_forward.16} parent=0 // loop_header_branch
    %12 = sbr.rel (%p10) target = $region8
  $region5: #{text_classification_forward.16} parent=0 // loop_body
    %s14 = ssub.s32 %s9, 1
    %s15 = ssub.s32 %s9, 2
    %s28 = sadd.s32 1, %s19
    %p29 = scmp.ge.s32.totalorder %s28, 1
    %s30 = scalar_select %p29, 0, %s28
    %s31 = sadd.s32 1, %s18
    %s32 = scalar_select %p29, %s31, %s18
    %p33 = scmp.ge.s32.totalorder %s32, 1
    %s34 = scalar_select %p33, 0, %s32
    %s35 = sadd.s32 1, %s17
    %s36 = scalar_select %p33, %s35, %s17
    %p37 = scmp.ge.s32.totalorder %s36, 1
    %s38 = scalar_select %p37, 0, %s36
    %s39 = sadd.s32 1, %s16
    %s40 = scalar_select %p37, %s39, %s16
    %p41 = scmp.ge.s32.totalorder %s40, 2
    %s42 = scalar_select %p41, 0, %s40
    %s43 = ssub.s32 %s16, %s42
    %s44 = ssub.s32 %s17, %s38
    %s45 = sor.u32 %s43, %s44
    %s46 = ssub.s32 %s19, %s30
    %s47 = sor.u32 %s45, %s46
    %p48 = scmp.eq.s32.totalorder %s47, 0
    %s50 = sadd.s32 %s49, 1
    %s51 = scalar_select %p48, %s49, %s50
    %p54 = pneg %p48
    %p55 = scmp.eq.s32.totalorder %s9, 1
    %p56 = por %p54, %p55
    %p57 = scmp.ne.s32.totalorder %s49, %s52
    %p58 = scmp.eq.s32.totalorder %s9, 0
    %p59 = por %p57, %p58
    %p60 = scmp.ne.s32.totalorder %s49, %s52
    %p61 = scmp.eq.s32.totalorder %s14, 1
    %p62 = por %p60, %p61
    %p63 = scmp.ne.s32.totalorder %s52, %s53
    %p64 = scmp.eq.s32.totalorder %s14, 0
    %p65 = por %p63, %p64
    %p66 = scmp.ne.s32.totalorder %s52, %s53
    %p67 = scmp.eq.s32.totalorder %s15, 1
    %p68 = por %p66, %p67
    %p70 = scmp.ne.s32.totalorder %s53, %s69
    %p71 = scmp.eq.s32.totalorder %s15, 0
    %p72 = por %p70, %p71
    %s73 = ssub.s32 %s19, %s30
    %s74 = ssub.s32 %s18, %s34
    %s75 = sor.u32 %s73, %s74
    %p76 = scmp.eq.s32.totalorder %s75, 0
    %s78 = sadd.s32 %s77, 1
    %s79 = scalar_select %p76, %s77, %s78
    %p82 = pneg %p76
    %p83 = scmp.eq.s32.totalorder %s9, 1
    %p84 = por %p82, %p83
    %p85 = scmp.ne.s32.totalorder %s77, %s80
    %p86 = scmp.eq.s32.totalorder %s9, 0
    %p87 = por %p85, %p86
    %p88 = scmp.ne.s32.totalorder %s77, %s80
    %p89 = scmp.eq.s32.totalorder %s14, 1
    %p90 = por %p88, %p89
    %p91 = scmp.ne.s32.totalorder %s80, %s81
    %p92 = scmp.eq.s32.totalorder %s14, 0
    %p93 = por %p91, %p92
    %p94 = scmp.ne.s32.totalorder %s80, %s81
    %p95 = scmp.eq.s32.totalorder %s15, 1
    %p96 = por %p94, %p95
    %p98 = scmp.ne.s32.totalorder %s81, %s97
    %p99 = scmp.eq.s32.totalorder %s15, 0
    %p100 = por %p98, %p99
    %s101 = ssub.s32 %s18, %s34
    %p102 = scmp.eq.s32.totalorder %s101, 0
    %s104 = sadd.s32 %s103, 1
    %s105 = scalar_select %p102, %s103, %s104
    %p108 = pneg %p102
    %p109 = scmp.eq.s32.totalorder %s9, 1
    %p110 = por %p108, %p109
    %p111 = scmp.ne.s32.totalorder %s103, %s106
    %p112 = scmp.eq.s32.totalorder %s9, 0
    %p113 = por %p111, %p112
    %p114 = scmp.ne.s32.totalorder %s103, %s106
    %p115 = scmp.eq.s32.totalorder %s14, 1
    %p116 = por %p114, %p115
    %p117 = scmp.ne.s32.totalorder %s106, %s107
    %p118 = scmp.eq.s32.totalorder %s14, 0
    %p119 = por %p117, %p118
    %p120 = scmp.ne.s32.totalorder %s106, %s107
    %p121 = scmp.eq.s32.totalorder %s15, 1
    %p122 = por %p120, %p121
    %p124 = scmp.ne.s32.totalorder %s107, %s123
    %p125 = scmp.eq.s32.totalorder %s15, 0
    %p126 = por %p124, %p125
    %s127 = ssub.s32 %s16, %s42
    %s128 = ssub.s32 %s17, %s38
    %s129 = sor.u32 %s127, %s128
    %s130 = ssub.s32 %s18, %s34
    %s131 = sor.u32 %s129, %s130
    %p132 = scmp.eq.s32.totalorder %s131, 0
    %s134 = sadd.s32 %s133, 1
    %s135 = scalar_select %p132, %s133, %s134
    %p138 = pneg %p132
    %p139 = scmp.eq.s32.totalorder %s9, 1
    %p140 = por %p138, %p139
    %p141 = scmp.ne.s32.totalorder %s133, %s136
    %p142 = scmp.eq.s32.totalorder %s9, 0
    %p143 = por %p141, %p142
    %p144 = scmp.ne.s32.totalorder %s133, %s136
    %p145 = scmp.eq.s32.totalorder %s14, 1
    %p146 = por %p144, %p145
    %p147 = scmp.ne.s32.totalorder %s136, %s137
    %p148 = scmp.eq.s32.totalorder %s14, 0
    %p149 = por %p147, %p148
    %p150 = scmp.ne.s32.totalorder %s136, %s137
    %p151 = scmp.eq.s32.totalorder %s15, 1
    %p152 = por %p150, %p151
    %p154 = scmp.ne.s32.totalorder %s137, %s153
    %p155 = scmp.eq.s32.totalorder %s15, 0
    %p156 = por %p154, %p155
    %p157 = scmp.le.s32.totalorder 1, %s9
    %p158 = scmp.lt.s32.totalorder %s9, 3
    %p159 = pnand %p157, %p158
    %p160 = pneg %p159
    // Predicated region
    $region9: #{text_classification_forward.16} parent=5 // pred_check
      _
    $region10: #{text_classification_forward.16} parent=5 // pred_check_branch
      %162 = sbr.rel (%p159) target = $region12
    $region11: #{text_classification_forward.16} parent=5 // pred_region
      %s163 = ssub.s32 %s9, 1
      // Predicated region
      $region13: #{text_classification_forward.16} parent=11 // pred_check
        %p164 = pneg %p93
      $region14: #{text_classification_forward.16} parent=11 // pred_check_branch
        %166 = sbr.rel (%p164) target = $region16
      $region15: #{text_classification_forward.16} parent=11 // pred_region
        %s167 = smul.u32 4, %s23
        %p168 = scmp.lt.s32.totalorder %s167, 3
        %s169 = scalar_select %p168, %s167, 3
        %p170 = scmp.lt.s32.totalorder %s22, 0
        %s171 = scalar_select %p170, %s22, 0
        %s172 = sadd.s32 %s171, %s169
        %s173 = smul.addr %s172, 4
        %s174 = scalar_lea.vmem %s1, %s173
        %s175 = smul.u32 4, %s23
      $region16: #{text_classification_forward.16} parent=11 // pred_fallthru
        _
      // Predicated region
      $region17: #{text_classification_forward.16} parent=11 // pred_check
        %p176 = pneg %p119
      $region18: #{text_classification_forward.16} parent=11 // pred_check_branch
        %178 = sbr.rel (%p176) target = $region20
      $region19: #{text_classification_forward.16} parent=11 // pred_region
        %p179 = scmp.lt.s32.totalorder %s22, 0
        %s180 = scalar_select %p179, %s22, 0
        %s181 = scalar_lea.vmem %s2, %s180
      $region20: #{text_classification_forward.16} parent=11 // pred_fallthru
        _
    $region12: #{text_classification_forward.16} parent=5 // pred_fallthru
      _
    %p182 = scmp.lt.s32.totalorder %s9, 2
    // Predicated region
    $region21: #{text_classification_forward.16} parent=5 // pred_check
      %p183 = pneg %p182
    $region22: #{text_classification_forward.16} parent=5 // pred_check_branch
      %185 = sbr.rel (%p183) target = $region24
    $region23: #{text_classification_forward.16} parent=5 // pred_region
      // Predicated region
      $region25: #{text_classification_forward.16} parent=23 // pred_check
        %p186 = pneg %p59
      $region26: #{text_classification_forward.16} parent=23 // pred_check_branch
        %188 = sbr.rel (%p186) target = $region28
      $region27: #{text_classification_forward.16} parent=23 // pred_region
        %p189 = scmp.lt.s32.totalorder %s16, 1
        %s190 = scalar_select %p189, %s16, 1
        %p191 = scmp.lt.s32.totalorder %s17, 0
        %s192 = scalar_select %p191, %s17, 0
        %p193 = scmp.lt.s32.totalorder %s19, 0
        %s194 = scalar_select %p193, %s19, 0
        %s195 = sadd.s32 %s194, %s192
        %s196 = sadd.s32 %s195, %s190
        %s197 = smul.addr %s196, 8
        %s198 = scalar_lea.vmem %s0, %s197
      $region28: #{text_classification_forward.16} parent=23 // pred_fallthru
        _
    $region24: #{text_classification_forward.16} parent=5 // pred_fallthru
      _
    %p199 = scmp.le.s32.totalorder 1, %s9
    %p200 = scmp.lt.s32.totalorder %s9, 3
    %p201 = pnand %p199, %p200
    %p202 = pneg %p201
    // Predicated region
    $region29: #{text_classification_forward.16} parent=5 // pred_check
      _
    $region30: #{text_classification_forward.16} parent=5 // pred_check_branch
      %204 = sbr.rel (%p201) target = $region32
    $region31: #{text_classification_forward.16} parent=5 // pred_region
      %s205 = ssub.s32 %s9, 1
      %p206 = scmp.lt.s32.totalorder %s20, 1
      %s207 = scalar_select %p206, %s20, 1
      %p208 = scmp.lt.s32.totalorder %s21, 0
      %s209 = scalar_select %p208, %s21, 0
      %p210 = scmp.lt.s32.totalorder %s23, 0
      %s211 = scalar_select %p210, %s23, 0
      %s212 = sadd.s32 %s211, %s209
      %s213 = sadd.s32 %s212, %s207
      %s214 = smul.addr %s213, 8
      %s215 = scalar_lea.vmem %s0, %s214
      %p216 = pneg %p65
      %p217 = pneg %p62
      %s218 = smul.u32 4, %s23
      %p219 = scmp.lt.s32.totalorder %s218, 3
      %s220 = scalar_select %p219, %s218, 3
      %p221 = scmp.lt.s32.totalorder %s22, 0
      %s222 = scalar_select %p221, %s22, 0
      %s223 = sadd.s32 %s222, %s220
      %s224 = smul.addr %s223, 4
      %s225 = scalar_lea.vmem %s1, %s224
      %p226 = pneg %p93
      %p227 = pneg %p90
      %p228 = scmp.lt.s32.totalorder %s22, 0
      %s229 = scalar_select %p228, %s22, 0
      %s230 = scalar_lea.vmem %s2, %s229
      %p231 = pneg %p119
      %p232 = pneg %p116
      %p233 = pneg %p149
      %p234 = pneg %p146
      %p235 = scmp.lt.s32.totalorder %s20, 1
      %s236 = scalar_select %p235, %s20, 1
      %p237 = scmp.lt.s32.totalorder %s21, 0
      %s238 = scalar_select %p237, %s21, 0
      %p239 = scmp.lt.s32.totalorder %s22, 0
      %s240 = scalar_select %p239, %s22, 0
      %s241 = sadd.s32 %s240, %s238
      %s242 = sadd.s32 %s241, %s236
      %s243 = smul.addr %s242, 8
      %s244 = scalar_lea.vmem %s3, %s243
      %p245 = scmp.lt.s32.totalorder %s20, 1
      %s246 = scalar_select %p245, %s20, 1
      %p247 = scmp.lt.s32.totalorder %s21, 0
      %s248 = scalar_select %p247, %s21, 0
      %p249 = scmp.lt.s32.totalorder %s23, 0
      %s250 = scalar_select %p249, %s23, 0
      %s251 = sadd.s32 %s250, %s248
      %s252 = sadd.s32 %s251, %s246
      %s253 = smul.addr %s252, 8
      %s254 = scalar_lea.vmem %s0, %s253
      %s255 = smul.u32 4, %s23
      %p256 = scmp.lt.s32.totalorder %s255, 3
      %s257 = scalar_select %p256, %s255, 3
      %p258 = scmp.lt.s32.totalorder %s22, 0
      %s259 = scalar_select %p258, %s22, 0
      %s260 = sadd.s32 %s259, %s257
      %s261 = smul.addr %s260, 4
      %s262 = scalar_lea.vmem %s1, %s261
      %s263 = smul.u32 4, %s23
      %p264 = scmp.lt.s32.totalorder %s22, 0
      %s265 = scalar_select %p264, %s22, 0
      %s266 = scalar_lea.vmem %s2, %s265
      %p267 = scmp.lt.s32.totalorder %s20, 1
      %s268 = scalar_select %p267, %s20, 1
      %p269 = scmp.lt.s32.totalorder %s21, 0
      %s270 = scalar_select %p269, %s21, 0
      %p271 = scmp.lt.s32.totalorder %s22, 0
      %s272 = scalar_select %p271, %s22, 0
      %s273 = sadd.s32 %s272, %s270
      %s274 = sadd.s32 %s273, %s268
      %s275 = smul.addr %s274, 8
      %s276 = scalar_lea.vmem %s3, %s275
      %p278 = scmp.eq.s32.totalorder %s23, 0
      // Predicated region
      $region33: #{text_classification_forward.16} parent=31 // pred_check
        %p279 = pneg %p278
      $region34: #{text_classification_forward.16} parent=31 // pred_check_branch
        %281 = sbr.rel (%p279) target = $region36
      $region35: #{text_classification_forward.16} parent=31 // pred_region
        %vm282 = vcmask 523264
        %283 = vst.msk [vmem:[#allocation2] sm:$0xff] %vm282, 0.0
      $region36: #{text_classification_forward.16} parent=31 // pred_fallthru
        _
      %v284 = vld [vmem:[#allocation2] sm:$0xff]
      %v285 = vld [vmem:[%s254] sm:$0xff]
      %v286 = vpack.c.bf16 %v285, %v285
      %v287 = vld [vmem:[%s262] sm:$0xf]
      %v288 = vld [vmem:[%s262 + $0x4] sm:$0xf]
      %v289 = vld [vmem:[%s262 + $0x8] sm:$0xf]
      %v290 = vld [vmem:[%s262 + $0xc] sm:$0xf]
      %v295 = vunpack.c.l.b16 %v287
      %v296 = vunpack.c.l.b16 %v288
      %v297 = vunpack.c.l.b16 %v289
      %v298 = vunpack.c.l.b16 %v290
      %v299 = vpack.c.b16 %v296, %v295
      %v300 = vpack.c.b16 %v298, %v297
      %vm303 = vcmask 261120
      %v305 = vsel %vm303, %v286, 0
      %307 = vmatprep.subr.bf16.mxu0 0
      %308 = vmatpush1.bf16.msra.mxu0 0
      %309 = vmatprep.subr.bf16.mxu0 0
      %310 = vmatpush1.bf16.msra.mxu0 0
      %311 = vmatprep.subr.bf16.mxu0 0
      %312 = vmatpush1.bf16.msra.mxu0 0
      %313 = vmatprep.subr.bf16.mxu0 0
      %314 = vmatpush1.bf16.msra.mxu0 0
      %315 = vmatprep.subr.bf16.mxu0 0
      %316 = vmatpush1.bf16.msra.mxu0 0
      %317 = vmatprep.subr.bf16.mxu0 0
      %318 = vmatpush1.bf16.msra.mxu0 0
      %319 = vmatprep.subr.bf16.mxu0 0
      %320 = vmatpush1.bf16.msra.mxu0 %v300
      %321 = vmatprep.subr.bf16.mxu0 0
      %322 = vmatpush1.bf16.msra.mxu0 %v299
      %323 = vmatprep.subr.bf16.mxu0 0
      %324 = vmatpush2.bf16.msra.mxu0 0
      %325 = vmatprep.subr.bf16.mxu0 0
      %326 = vmatpush2.bf16.msra.mxu0 0
      %327 = vmatprep.subr.bf16.mxu0 0
      %328 = vmatpush2.bf16.msra.mxu0 0
      %329 = vmatprep.subr.bf16.mxu0 0
      %330 = vmatpush2.bf16.msra.mxu0 0
      %331 = vmatprep.subr.bf16.mxu0 0
      %332 = vmatpush2.bf16.msra.mxu0 0
      %333 = vmatprep.subr.bf16.mxu0 0
      %334 = vmatpush2.bf16.msra.mxu0 0
      %335 = vmatprep.subr.bf16.mxu0 0
      %336 = vmatpush2.bf16.msra.mxu0 0
      %337 = vmatprep.subr.bf16.mxu0 0
      %338 = vmatpush2.bf16.msra.mxu0 0
      %339 = vmatprep.mubr.bf16.mxu0 0
      %340 = vmatmul.mubr.bf16.gmra.mxu0 %v305
      %v341 = vpop.f32.mrf.mxu0
      %v342 = vadd.f32 0.0, %v341
      %v343 = vpop.f32.mrf.mxu0
      %v344 = vpop.f32.mrf.mxu0
      %v345 = vpop.f32.mrf.mxu0
      %346 = vdwg.mxu0
      %v347 = vadd.f32 %v284, %v342
      %vm348 = vcmask 523264
      %349 = vst.msk [vmem:[#allocation2] sm:$0xff] %vm348, %v347
      // Predicated region
      $region37: #{text_classification_forward.16} parent=31 // pred_check
        %p350 = pneg %p278
      $region38: #{text_classification_forward.16} parent=31 // pred_check_branch
        %352 = sbr.rel (%p350) target = $region40
      $region39: #{text_classification_forward.16} parent=31 // pred_region
        %v353 = vld [vmem:[#allocation2] sm:$0xff]
        %v354 = vld [vmem:[%s266] sm:$0x1]
        %v356 = vlaneseq
        %v357 = vshrl.u32 %v356, 7
        %v358 = vsub.s32 0, %v357
        %v359 = vrot.slane %v354, %v358
        %v361 = vadd.f32 %v353, %v359
        %v362 = vmul.f32 %v361, %v361
        %v363 = vmul.f32 %v361, %v362
        %v364 = vmul.f32 %v363, 0.044715
        %v365 = vadd.f32 %v361, %v364
        %v366 = vmul.f32 %v365, 0.7978846
        %v367 = vtanh.pop %v366
        %v368 = vadd.f32 %v367, 1.0
        %v369 = vmul.f32 %v368, 0.5
        %v370 = vmul.f32 %v361, %v369
        %371 = vst.msk [vmem:[%s276] sm:$0xff] %vm348, %v370
      $region40: #{text_classification_forward.16} parent=31 // pred_fallthru
        _
      %p372 = scmp.lt.s32.totalorder %s20, 1
      %s373 = scalar_select %p372, %s20, 1
      %p374 = scmp.lt.s32.totalorder %s21, 0
      %s375 = scalar_select %p374, %s21, 0
      %p376 = scmp.lt.s32.totalorder %s22, 0
      %s377 = scalar_select %p376, %s22, 0
      %s378 = sadd.s32 %s377, %s375
      %s379 = sadd.s32 %s378, %s373
      %s380 = smul.addr %s379, 8
      %s381 = scalar_lea.vmem %s3, %s380
      // Predicated region
      $region41: #{text_classification_forward.16} parent=31 // pred_check
        %p382 = pneg %p146
      $region42: #{text_classification_forward.16} parent=31 // pred_check_branch
        %384 = sbr.rel (%p382) target = $region44
      $region43: #{text_classification_forward.16} parent=31 // pred_region
        _
      $region44: #{text_classification_forward.16} parent=31 // pred_fallthru
        _
    $region32: #{text_classification_forward.16} parent=5 // pred_fallthru
      _
    %p385 = scmp.le.s32.totalorder 2, %s9
    // Predicated region
    $region45: #{text_classification_forward.16} parent=5 // pred_check
      %p386 = pneg %p385
    $region46: #{text_classification_forward.16} parent=5 // pred_check_branch
      %388 = sbr.rel (%p386) target = $region48
    $region47: #{text_classification_forward.16} parent=5 // pred_region
      %s389 = ssub.s32 %s9, 2
      // Predicated region
      $region49: #{text_classification_forward.16} parent=47 // pred_check
        %p390 = pneg %p152
      $region50: #{text_classification_forward.16} parent=47 // pred_check_branch
        %392 = sbr.rel (%p390) target = $region52
      $region51: #{text_classification_forward.16} parent=47 // pred_region
        %p393 = scmp.lt.s32.totalorder %s24, 1
        %s394 = scalar_select %p393, %s24, 1
        %p395 = scmp.lt.s32.totalorder %s25, 0
        %s396 = scalar_select %p395, %s25, 0
        %p397 = scmp.lt.s32.totalorder %s26, 0
        %s398 = scalar_select %p397, %s26, 0
        %s399 = sadd.s32 %s398, %s396
        %s400 = sadd.s32 %s399, %s394
        %s401 = smul.addr %s400, 8
        %s402 = scalar_lea.vmem %s3, %s401
      $region52: #{text_classification_forward.16} parent=47 // pred_fallthru
        _
    $region48: #{text_classification_forward.16} parent=5 // pred_fallthru
      _
  $region6: #{text_classification_forward.16} parent=0 // loop_footer
    %s13 = sadd.s32 1, %s9
  $region7: #{text_classification_forward.16} parent=0 // loop_footer_branch
    %8 = sbr.rel target = $region3
  $region8: #{text_classification_forward.16} parent=0 // loop_exit
    _

</llo_original>
